<compile_context>
chip_gen: v6e
topology: v6e:2x2x1
jax: 0.10.0
libtpu: 0.0.40
codegen_flags: <defaults>
</compile_context>

<pallas_src>
import math

import jax
import jax.numpy as jnp
from jax import lax
from jax.experimental import pallas as pl
from jax.experimental.pallas import tpu as pltpu

# ---- model hyper-parameters (small, consistent with the PyTorch module) ----
B = 2        # batch
S = 8        # sequence length
E = 32       # embed_dim
H = 4        # heads
HD = E // H  # head dim
FF = 64      # ff_dim
V = 64       # vocab_size
DEPTH = 2    # number of encoder blocks
LN_EPS = 1e-5
BS = B * S   # flattened token count handled in one grid step
VPAD = 128   # lane-padded logits width (V=64 -> 128 for unmasked stores)

# packed per-layer vector rows in the (DEPTH, 8, 128) constant slab
_R_BQKV, _R_BO, _R_LN1W, _R_LN1B, _R_B1, _R_B2, _R_LN2W, _R_LN2B = range(8)
# packed final vector rows in the (8, 128) constant slab
_R_FNW, _R_FNB, _R_MLMB = 0, 1, 2


def _erf(x):
    # Abramowitz & Stegun 7.1.26 rational approximation (~1.5e-7 abs err).
    a1, a2, a3, a4, a5 = 0.254829592, -0.284496736, 1.421413741, -1.453152027, 1.061405429
    p = 0.3275911
    s = jnp.where(x >= 0.0, 1.0, -1.0)
    z = jnp.abs(x)
    t = 1.0 / (1.0 + p * z)
    poly = ((((a5 * t + a4) * t + a3) * t + a2) * t + a1) * t
    return s * (1.0 - poly * jnp.exp(-z * z))


def _gelu_exact(x):
    # nn.GELU() default (erf-based, not tanh approximation)
    return 0.5 * x * (1.0 + _erf(x * 0.7071067811865476))


def _layer_norm(x, w, b):
    mu = jnp.mean(x, axis=-1, keepdims=True)
    var = jnp.mean((x - mu) ** 2, axis=-1, keepdims=True)
    return (x - mu) * lax.rsqrt(var + LN_EPS) * w + b


def encoder_kernel(tok_ids_ref, tok_tab_ref, pe_ref,
                   wqkv_ref, wo_ref, w1_ref, w2_ref, lvec_ref,
                   mlmw_ref, fvec_ref, out_ref):
    # --- embedding gather as one-hot matmul + positional encoding (fused) ---
    ids = tok_ids_ref[...]                                        # (BS, 1) int32
    onehot = (ids == lax.broadcasted_iota(jnp.int32, (BS, V), 1)).astype(jnp.float32)
    x = jnp.dot(onehot, tok_tab_ref[...],
                preferred_element_type=jnp.float32) + pe_ref[...]  # (BS, E)

    for l in range(DEPTH):                       # static unroll over layers
        vecs = lvec_ref[l]                       # (8, 128) packed bias/LN rows

        # fused QKV projection (scale already folded into the Q third)
        qkv = jnp.dot(x, wqkv_ref[l], preferred_element_type=jnp.float32)
        qkv = qkv + vecs[_R_BQKV:_R_BQKV + 1, 0:3 * E]            # (BS, 3E)
        q = qkv[:, 0:E]
        k = qkv[:, E:2 * E]
        v = qkv[:, 2 * E:3 * E]

        # per-(b,h) scores, then ONE collapsed softmax over (B*H*S, S)
        sc_blocks = []
        for b in range(B):
            r = slice(b * S, (b + 1) * S)
            for h in range(H):
                c = slice(h * HD, (h + 1) * HD)
                sc_blocks.append(
                    lax.dot_general(q[r, c], k[r, c],
                                    dimension_numbers=(((1,), (1,)), ((), ())),
                                    preferred_element_type=jnp.float32))
        sc = jnp.concatenate(sc_blocks, axis=0)                   # (B*H*S, S)
        sc = sc - jnp.max(sc, axis=-1, keepdims=True)
        p = jnp.exp(sc)
        p = p * pl.reciprocal(jnp.sum(p, axis=-1, keepdims=True), approx=True)

        # per-(b,h) P@V, lane-concatenate heads, sublane-concatenate batches
        rows = []
        for b in range(B):
            r = slice(b * S, (b + 1) * S)
            head_outs = []
            for h in range(H):
                i = (b * H + h) * S
                c = slice(h * HD, (h + 1) * HD)
                head_outs.append(jnp.dot(p[i:i + S, :], v[r, c],
                                         preferred_element_type=jnp.float32))
            rows.append(jnp.concatenate(head_outs, axis=-1))      # (S, E)
        attn = jnp.concatenate(rows, axis=0)                      # (BS, E)

        # fused output projection: one (BS,E)@(E,E) matmul + bias
        attn = jnp.dot(attn, wo_ref[l], preferred_element_type=jnp.float32)
        attn = attn + vecs[_R_BO:_R_BO + 1, 0:E]

        # residual + LayerNorm 1
        x = _layer_norm(x + attn,
                        vecs[_R_LN1W:_R_LN1W + 1, 0:E],
                        vecs[_R_LN1B:_R_LN1B + 1, 0:E])

        # feed-forward: Linear -> GELU(exact erf) -> Linear (pre-transposed)
        hdn = jnp.dot(x, w1_ref[l], preferred_element_type=jnp.float32)
        hdn = _gelu_exact(hdn + vecs[_R_B1:_R_B1 + 1, 0:FF])
        ffo = jnp.dot(hdn, w2_ref[l], preferred_element_type=jnp.float32)
        ffo = ffo + vecs[_R_B2:_R_B2 + 1, 0:E]

        # residual + LayerNorm 2
        x = _layer_norm(x + ffo,
                        vecs[_R_LN2W:_R_LN2W + 1, 0:E],
                        vecs[_R_LN2B:_R_LN2B + 1, 0:E])

    # final LayerNorm + lane-padded MLM head (128-wide unmasked store)
    fvecs = fvec_ref[...]                                         # (8, VPAD)
    x = _layer_norm(x, fvecs[_R_FNW:_R_FNW + 1, 0:E], fvecs[_R_FNB:_R_FNB + 1, 0:E])
    out_ref[...] = jnp.dot(x, mlmw_ref[...],
                           preferred_element_type=jnp.float32) + fvecs[_R_MLMB:_R_MLMB + 1, :]


def init_params(key):
    # Parameters kept in torch layout; host-side prep reshapes them for the kernel.
    ks = jax.random.split(key, 8)
    std = 0.02
    n = lambda k, shape, s=std: (jax.random.normal(k, shape, jnp.float32) * s)
    p = {}
    p["tok"] = n(ks[0], (V, E))
    p["wqkv"] = n(ks[1], (DEPTH, 3 * E, E))
    p["bqkv"] = n(ks[2], (DEPTH, 1, 3 * E), 0.01)
    p["wo"] = n(ks[3], (DEPTH, E, E))
    p["bo"] = n(ks[4], (DEPTH, 1, E), 0.01)
    p["ln1w"] = jnp.ones((DEPTH, 1, E), jnp.float32)
    p["ln1b"] = jnp.zeros((DEPTH, 1, E), jnp.float32)
    p["ln2w"] = jnp.ones((DEPTH, 1, E), jnp.float32)
    p["ln2b"] = jnp.zeros((DEPTH, 1, E), jnp.float32)
    p["w1"] = n(ks[5], (DEPTH, FF, E))
    p["b1"] = jnp.zeros((DEPTH, 1, FF), jnp.float32)
    p["w2"] = n(ks[6], (DEPTH, E, FF))
    p["b2"] = jnp.zeros((DEPTH, 1, E), jnp.float32)
    p["fnw"] = jnp.ones((1, E), jnp.float32)
    p["fnb"] = jnp.zeros((1, E), jnp.float32)
    p["mlmw"] = n(ks[7], (V, E))
    p["mlmb"] = jnp.zeros((1, V), jnp.float32)
    return p


def _positional_encoding():
    pos = jnp.arange(S, dtype=jnp.float32)[:, None]
    div = jnp.exp(jnp.arange(0, E, 2, dtype=jnp.float32) * (-math.log(10000.0) / E))
    pe = jnp.zeros((S, E), jnp.float32)
    pe = pe.at[:, 0::2].set(jnp.sin(pos * div))
    pe = pe.at[:, 1::2].set(jnp.cos(pos * div))
    return jnp.tile(pe, (B, 1))                  # (BS, E), tiled over the batch


def _prepare_weights(p):
    """Host-side weight prep (done ONCE): fuse QKV, transpose, fold scale, pack vectors."""
    scale = 1.0 / math.sqrt(HD)
    col_scale = jnp.concatenate([jnp.full((E,), scale, dtype=jnp.float32),
                                 jnp.ones((2 * E,), dtype=jnp.float32)])

    # fused QKV: (D, 3E, E) torch layout -> (D, E, 3E), Q columns pre-scaled
    wqkv_t = jnp.transpose(p["wqkv"], (0, 2, 1)) * col_scale[None, None, :]
    bqkv = p["bqkv"][:, 0, :] * col_scale[None, :]               # (D, 3E)

    wo_t = jnp.transpose(p["wo"], (0, 2, 1))                     # (D, E, E)
    w1_t = jnp.transpose(p["w1"], (0, 2, 1))                     # (D, E, FF)
    w2_t = jnp.transpose(p["w2"], (0, 2, 1))                     # (D, FF, E)

    # pack all per-layer bias / LayerNorm vectors into one (D, 8, 128) slab
    lvec = jnp.zeros((DEPTH, 8, VPAD), jnp.float32)
    lvec = lvec.at[:, _R_BQKV, 0:3 * E].set(bqkv)
    lvec = lvec.at[:, _R_BO, 0:E].set(p["bo"][:, 0, :])
    lvec = lvec.at[:, _R_LN1W, 0:E].set(p["ln1w"][:, 0, :])
    lvec = lvec.at[:, _R_LN1B, 0:E].set(p["ln1b"][:, 0, :])
    lvec = lvec.at[:, _R_B1, 0:FF].set(p["b1"][:, 0, :])
    lvec = lvec.at[:, _R_B2, 0:E].set(p["b2"][:, 0, :])
    lvec = lvec.at[:, _R_LN2W, 0:E].set(p["ln2w"][:, 0, :])
    lvec = lvec.at[:, _R_LN2B, 0:E].set(p["ln2b"][:, 0, :])

    # MLM head: transpose + pad output lanes V=64 -> 128 (unmasked store)
    mlmw_t = jnp.zeros((E, VPAD), jnp.float32).at[:, :V].set(p["mlmw"].T)

    # final norm weights + MLM bias packed into one (8, 128) slab
    fvec = jnp.zeros((8, VPAD), jnp.float32)
    fvec = fvec.at[_R_FNW, 0:E].set(p["fnw"][0])
    fvec = fvec.at[_R_FNB, 0:E].set(p["fnb"][0])
    fvec = fvec.at[_R_MLMB, 0:V].set(p["mlmb"][0])

    return [wqkv_t, wo_t, w1_t, w2_t, lvec, mlmw_t, fvec]


def make_forward(params):
    """Builds a jitted forward fn with all weight prep hoisted out of the call path."""
    ins = [params["tok"], _positional_encoding()] + _prepare_weights(params)

    def full_spec(a):
        nd = a.ndim
        return pl.BlockSpec(a.shape, lambda i, _nd=nd: (0,) * _nd)

    kernel_call = pl.pallas_call(
        encoder_kernel,
        out_shape=jax.ShapeDtypeStruct((BS, VPAD), jnp.float32),
        grid=(1,),
        in_specs=[pl.BlockSpec((BS, 1), lambda i: (0, 0))] + [full_spec(a) for a in ins],
        out_specs=pl.BlockSpec((BS, VPAD), lambda i: (0, 0)),
        compiler_params=pltpu.CompilerParams(dimension_semantics=("arbitrary",)),
    )

    @jax.jit
    def forward(tokens):
        ids = tokens.reshape(BS, 1).astype(jnp.int32)
        out = kernel_call(ids, *ins)
        return out[:, :V].reshape(B, S, V)       # drop lane padding -> (B, S, V)

    return forward


if __name__ == "__main__":
    key = jax.random.PRNGKey(0)
    tok_key, param_key = jax.random.split(key)
    tokens = jax.random.randint(tok_key, (B, S), 0, V, dtype=jnp.int32)
    params = init_params(param_key)

    forward = make_forward(params)
    logits = forward(tokens)
    jax.block_until_ready(logits)

    assert logits.shape == (B, S, V), logits.shape
    assert bool(jnp.all(jnp.isfinite(logits)))
    print("KERNEL_OK")
</pallas_src>

<mosaic_0001>
module attributes {stable_mosaic.version = 11 : i64} {
  func.func @encoder_kernel(%arg0: i32, %arg1: memref<16x1xi32, #tpu.memory_space<vmem>>, %arg2: memref<64x32xf32, #tpu.memory_space<vmem>>, %arg3: memref<16x32xf32, #tpu.memory_space<vmem>>, %arg4: memref<2x32x96xf32, #tpu.memory_space<vmem>>, %arg5: memref<2x32x32xf32, #tpu.memory_space<vmem>>, %arg6: memref<2x32x64xf32, #tpu.memory_space<vmem>>, %arg7: memref<2x64x32xf32, #tpu.memory_space<vmem>>, %arg8: memref<2x8x128xf32, #tpu.memory_space<vmem>>, %arg9: memref<32x128xf32, #tpu.memory_space<vmem>>, %arg10: memref<8x128xf32, #tpu.memory_space<vmem>>, %arg11: memref<16x128xf32, #tpu.memory_space<vmem>>) attributes {dimension_semantics = [#tpu.dimension_semantics<arbitrary>], iteration_bounds = array<i64: 1>, scalar_prefetch = 0 : i64, scratch_operands = 0 : i64, tpu.core_type = #tpu.core_type<tc>, window_params = [{pipeline_mode = #tpu.pipeline_mode<synchronous>, transform_indices = @transform_0, window_bounds = array<i64: 16, 1>}, {pipeline_mode = #tpu.pipeline_mode<synchronous>, transform_indices = @transform_1, window_bounds = array<i64: 64, 32>}, {pipeline_mode = #tpu.pipeline_mode<synchronous>, transform_indices = @transform_2, window_bounds = array<i64: 16, 32>}, {pipeline_mode = #tpu.pipeline_mode<synchronous>, transform_indices = @transform_3, window_bounds = array<i64: 2, 32, 96>}, {pipeline_mode = #tpu.pipeline_mode<synchronous>, transform_indices = @transform_4, window_bounds = array<i64: 2, 32, 32>}, {pipeline_mode = #tpu.pipeline_mode<synchronous>, transform_indices = @transform_5, window_bounds = array<i64: 2, 32, 64>}, {pipeline_mode = #tpu.pipeline_mode<synchronous>, transform_indices = @transform_6, window_bounds = array<i64: 2, 64, 32>}, {pipeline_mode = #tpu.pipeline_mode<synchronous>, transform_indices = @transform_7, window_bounds = array<i64: 2, 8, 128>}, {pipeline_mode = #tpu.pipeline_mode<synchronous>, transform_indices = @transform_8, window_bounds = array<i64: 32, 128>}, {pipeline_mode = #tpu.pipeline_mode<synchronous>, transform_indices = @transform_9, window_bounds = array<i64: 8, 128>}, {pipeline_mode = #tpu.pipeline_mode<synchronous>, transform_indices = @transform_10, window_bounds = array<i64: 16, 128>}]} {
    %c0 = arith.constant 0 : index
    %c0_0 = arith.constant 0 : index
    %0 = vector.load %arg1[%c0, %c0_0] : memref<16x1xi32, #tpu.memory_space<vmem>>, vector<16x1xi32>
    %1 = tpu.iota {dimensions = array<i32: 1>} : vector<16x64xi32>
    %2 = vector.broadcast %0 : vector<16x1xi32> to vector<16x64xi32>
    %3 = arith.cmpi eq, %2, %1 : vector<16x64xi32>
    %4 = arith.extui %3 : vector<16x64xi1> to vector<16x64xi32>
    %5 = arith.sitofp %4 : vector<16x64xi32> to vector<16x64xf32>
    %c0_1 = arith.constant 0 : index
    %c0_2 = arith.constant 0 : index
    %6 = vector.load %arg2[%c0_1, %c0_2] : memref<64x32xf32, #tpu.memory_space<vmem>>, vector<64x32xf32>
    %cst = arith.constant dense<0.000000e+00> : vector<16x32xf32>
    %7 = tpu.matmul %5, %6, %cst {dimension_numbers = #tpu.dot_dimension_numbers<[1], [0], [0], [1], [0, 0, 1, 1], [], []>} : vector<16x64xf32>, vector<64x32xf32>, vector<16x32xf32> -> vector<16x32xf32>
    %c0_3 = arith.constant 0 : index
    %c0_4 = arith.constant 0 : index
    %8 = vector.load %arg3[%c0_3, %c0_4] : memref<16x32xf32, #tpu.memory_space<vmem>>, vector<16x32xf32>
    %9 = arith.addf %7, %8 : vector<16x32xf32>
    %c0_5 = arith.constant 0 : index
    %c0_6 = arith.constant 0 : index
    %c0_7 = arith.constant 0 : index
    %10 = vector.load %arg8[%c0_5, %c0_6, %c0_7] : memref<2x8x128xf32, #tpu.memory_space<vmem>>, vector<1x8x128xf32>
    %11 = vector.shape_cast %10 : vector<1x8x128xf32> to vector<8x128xf32>
    %c0_8 = arith.constant 0 : index
    %c0_9 = arith.constant 0 : index
    %c0_10 = arith.constant 0 : index
    %12 = vector.load %arg4[%c0_8, %c0_9, %c0_10] : memref<2x32x96xf32, #tpu.memory_space<vmem>>, vector<1x32x96xf32>
    %13 = vector.shape_cast %12 : vector<1x32x96xf32> to vector<32x96xf32>
    %cst_11 = arith.constant dense<0.000000e+00> : vector<16x96xf32>
    %14 = tpu.matmul %9, %13, %cst_11 {dimension_numbers = #tpu.dot_dimension_numbers<[1], [0], [0], [1], [0, 0, 1, 1], [], []>} : vector<16x32xf32>, vector<32x96xf32>, vector<16x96xf32> -> vector<16x96xf32>
    %15 = vector.extract_strided_slice %11 {offsets = [0, 0], sizes = [1, 96], strides = [1, 1]} : vector<8x128xf32> to vector<1x96xf32>
    %16 = vector.broadcast %15 : vector<1x96xf32> to vector<16x96xf32>
    %17 = arith.addf %14, %16 : vector<16x96xf32>
    %18 = vector.extract_strided_slice %17 {offsets = [0, 0], sizes = [16, 32], strides = [1, 1]} : vector<16x96xf32> to vector<16x32xf32>
    %19 = vector.extract_strided_slice %17 {offsets = [0, 32], sizes = [16, 32], strides = [1, 1]} : vector<16x96xf32> to vector<16x32xf32>
    %20 = vector.extract_strided_slice %17 {offsets = [0, 64], sizes = [16, 32], strides = [1, 1]} : vector<16x96xf32> to vector<16x32xf32>
    %21 = vector.extract_strided_slice %18 {offsets = [0, 0], sizes = [8, 8], strides = [1, 1]} : vector<16x32xf32> to vector<8x8xf32>
    %22 = vector.extract_strided_slice %19 {offsets = [0, 0], sizes = [8, 8], strides = [1, 1]} : vector<16x32xf32> to vector<8x8xf32>
    %cst_12 = arith.constant dense<0.000000e+00> : vector<8x8xf32>
    %23 = tpu.matmul %21, %22, %cst_12 {dimension_numbers = #tpu.dot_dimension_numbers<[1], [1], [0], [0], [0, 0, 1, 0], [], []>} : vector<8x8xf32>, vector<8x8xf32>, vector<8x8xf32> -> vector<8x8xf32>
    %24 = vector.extract_strided_slice %18 {offsets = [0, 8], sizes = [8, 8], strides = [1, 1]} : vector<16x32xf32> to vector<8x8xf32>
    %25 = vector.extract_strided_slice %19 {offsets = [0, 8], sizes = [8, 8], strides = [1, 1]} : vector<16x32xf32> to vector<8x8xf32>
    %cst_13 = arith.constant dense<0.000000e+00> : vector<8x8xf32>
    %26 = tpu.matmul %24, %25, %cst_13 {dimension_numbers = #tpu.dot_dimension_numbers<[1], [1], [0], [0], [0, 0, 1, 0], [], []>} : vector<8x8xf32>, vector<8x8xf32>, vector<8x8xf32> -> vector<8x8xf32>
    %27 = vector.extract_strided_slice %18 {offsets = [0, 16], sizes = [8, 8], strides = [1, 1]} : vector<16x32xf32> to vector<8x8xf32>
    %28 = vector.extract_strided_slice %19 {offsets = [0, 16], sizes = [8, 8], strides = [1, 1]} : vector<16x32xf32> to vector<8x8xf32>
    %cst_14 = arith.constant dense<0.000000e+00> : vector<8x8xf32>
    %29 = tpu.matmul %27, %28, %cst_14 {dimension_numbers = #tpu.dot_dimension_numbers<[1], [1], [0], [0], [0, 0, 1, 0], [], []>} : vector<8x8xf32>, vector<8x8xf32>, vector<8x8xf32> -> vector<8x8xf32>
    %30 = vector.extract_strided_slice %18 {offsets = [0, 24], sizes = [8, 8], strides = [1, 1]} : vector<16x32xf32> to vector<8x8xf32>
    %31 = vector.extract_strided_slice %19 {offsets = [0, 24], sizes = [8, 8], strides = [1, 1]} : vector<16x32xf32> to vector<8x8xf32>
    %cst_15 = arith.constant dense<0.000000e+00> : vector<8x8xf32>
    %32 = tpu.matmul %30, %31, %cst_15 {dimension_numbers = #tpu.dot_dimension_numbers<[1], [1], [0], [0], [0, 0, 1, 0], [], []>} : vector<8x8xf32>, vector<8x8xf32>, vector<8x8xf32> -> vector<8x8xf32>
    %33 = vector.extract_strided_slice %18 {offsets = [8, 0], sizes = [8, 8], strides = [1, 1]} : vector<16x32xf32> to vector<8x8xf32>
    %34 = vector.extract_strided_slice %19 {offsets = [8, 0], sizes = [8, 8], strides = [1, 1]} : vector<16x32xf32> to vector<8x8xf32>
    %cst_16 = arith.constant dense<0.000000e+00> : vector<8x8xf32>
    %35 = tpu.matmul %33, %34, %cst_16 {dimension_numbers = #tpu.dot_dimension_numbers<[1], [1], [0], [0], [0, 0, 1, 0], [], []>} : vector<8x8xf32>, vector<8x8xf32>, vector<8x8xf32> -> vector<8x8xf32>
    %36 = vector.extract_strided_slice %18 {offsets = [8, 8], sizes = [8, 8], strides = [1, 1]} : vector<16x32xf32> to vector<8x8xf32>
    %37 = vector.extract_strided_slice %19 {offsets = [8, 8], sizes = [8, 8], strides = [1, 1]} : vector<16x32xf32> to vector<8x8xf32>
    %cst_17 = arith.constant dense<0.000000e+00> : vector<8x8xf32>
    %38 = tpu.matmul %36, %37, %cst_17 {dimension_numbers = #tpu.dot_dimension_numbers<[1], [1], [0], [0], [0, 0, 1, 0], [], []>} : vector<8x8xf32>, vector<8x8xf32>, vector<8x8xf32> -> vector<8x8xf32>
    %39 = vector.extract_strided_slice %18 {offsets = [8, 16], sizes = [8, 8], strides = [1, 1]} : vector<16x32xf32> to vector<8x8xf32>
    %40 = vector.extract_strided_slice %19 {offsets = [8, 16], sizes = [8, 8], strides = [1, 1]} : vector<16x32xf32> to vector<8x8xf32>
    %cst_18 = arith.constant dense<0.000000e+00> : vector<8x8xf32>
    %41 = tpu.matmul %39, %40, %cst_18 {dimension_numbers = #tpu.dot_dimension_numbers<[1], [1], [0], [0], [0, 0, 1, 0], [], []>} : vector<8x8xf32>, vector<8x8xf32>, vector<8x8xf32> -> vector<8x8xf32>
    %42 = vector.extract_strided_slice %18 {offsets = [8, 24], sizes = [8, 8], strides = [1, 1]} : vector<16x32xf32> to vector<8x8xf32>
    %43 = vector.extract_strided_slice %19 {offsets = [8, 24], sizes = [8, 8], strides = [1, 1]} : vector<16x32xf32> to vector<8x8xf32>
    %cst_19 = arith.constant dense<0.000000e+00> : vector<8x8xf32>
    %44 = tpu.matmul %42, %43, %cst_19 {dimension_numbers = #tpu.dot_dimension_numbers<[1], [1], [0], [0], [0, 0, 1, 0], [], []>} : vector<8x8xf32>, vector<8x8xf32>, vector<8x8xf32> -> vector<8x8xf32>
    %45 = tpu.concatenate %23, %26, %29, %32, %35, %38, %41, %44 in 0 : vector<8x8xf32>, vector<8x8xf32>, vector<8x8xf32>, vector<8x8xf32>, vector<8x8xf32>, vector<8x8xf32>, vector<8x8xf32>, vector<8x8xf32> -> vector<64x8xf32>
    %cst_20 = arith.constant dense<0xFF800000> : vector<64xf32>
    %46 = vector.multi_reduction <maximumf>, %45, %cst_20 [1] : vector<64x8xf32> to vector<64xf32>
    %47 = vector.shape_cast %46 : vector<64xf32> to vector<64x1xf32>
    %48 = vector.broadcast %47 : vector<64x1xf32> to vector<64x8xf32>
    %49 = arith.subf %45, %48 : vector<64x8xf32>
    %50 = math.exp %49 : vector<64x8xf32>
    %cst_21 = arith.constant dense<0.000000e+00> : vector<64xf32>
    %51 = vector.multi_reduction <add>, %50, %cst_21 [1] : vector<64x8xf32> to vector<64xf32>
    %52 = vector.shape_cast %51 : vector<64xf32> to vector<64x1xf32>
    %53 = tpu.reciprocal %52 {approx = true} : vector<64x1xf32> -> vector<64x1xf32>
    %54 = vector.broadcast %53 : vector<64x1xf32> to vector<64x8xf32>
    %55 = arith.mulf %50, %54 : vector<64x8xf32>
    %56 = vector.extract_strided_slice %55 {offsets = [0, 0], sizes = [8, 8], strides = [1, 1]} : vector<64x8xf32> to vector<8x8xf32>
    %57 = vector.extract_strided_slice %20 {offsets = [0, 0], sizes = [8, 8], strides = [1, 1]} : vector<16x32xf32> to vector<8x8xf32>
    %cst_22 = arith.constant dense<0.000000e+00> : vector<8x8xf32>
    %58 = tpu.matmul %56, %57, %cst_22 {dimension_numbers = #tpu.dot_dimension_numbers<[1], [0], [0], [1], [0, 0, 1, 1], [], []>} : vector<8x8xf32>, vector<8x8xf32>, vector<8x8xf32> -> vector<8x8xf32>
    %59 = vector.extract_strided_slice %55 {offsets = [8, 0], sizes = [8, 8], strides = [1, 1]} : vector<64x8xf32> to vector<8x8xf32>
    %60 = vector.extract_strided_slice %20 {offsets = [0, 8], sizes = [8, 8], strides = [1, 1]} : vector<16x32xf32> to vector<8x8xf32>
    %cst_23 = arith.constant dense<0.000000e+00> : vector<8x8xf32>
    %61 = tpu.matmul %59, %60, %cst_23 {dimension_numbers = #tpu.dot_dimension_numbers<[1], [0], [0], [1], [0, 0, 1, 1], [], []>} : vector<8x8xf32>, vector<8x8xf32>, vector<8x8xf32> -> vector<8x8xf32>
    %62 = vector.extract_strided_slice %55 {offsets = [16, 0], sizes = [8, 8], strides = [1, 1]} : vector<64x8xf32> to vector<8x8xf32>
    %63 = vector.extract_strided_slice %20 {offsets = [0, 16], sizes = [8, 8], strides = [1, 1]} : vector<16x32xf32> to vector<8x8xf32>
    %cst_24 = arith.constant dense<0.000000e+00> : vector<8x8xf32>
    %64 = tpu.matmul %62, %63, %cst_24 {dimension_numbers = #tpu.dot_dimension_numbers<[1], [0], [0], [1], [0, 0, 1, 1], [], []>} : vector<8x8xf32>, vector<8x8xf32>, vector<8x8xf32> -> vector<8x8xf32>
    %65 = vector.extract_strided_slice %55 {offsets = [24, 0], sizes = [8, 8], strides = [1, 1]} : vector<64x8xf32> to vector<8x8xf32>
    %66 = vector.extract_strided_slice %20 {offsets = [0, 24], sizes = [8, 8], strides = [1, 1]} : vector<16x32xf32> to vector<8x8xf32>
    %cst_25 = arith.constant dense<0.000000e+00> : vector<8x8xf32>
    %67 = tpu.matmul %65, %66, %cst_25 {dimension_numbers = #tpu.dot_dimension_numbers<[1], [0], [0], [1], [0, 0, 1, 1], [], []>} : vector<8x8xf32>, vector<8x8xf32>, vector<8x8xf32> -> vector<8x8xf32>
    %68 = tpu.concatenate %58, %61, %64, %67 in 1 : vector<8x8xf32>, vector<8x8xf32>, vector<8x8xf32>, vector<8x8xf32> -> vector<8x32xf32>
    %69 = vector.extract_strided_slice %55 {offsets = [32, 0], sizes = [8, 8], strides = [1, 1]} : vector<64x8xf32> to vector<8x8xf32>
    %70 = vector.extract_strided_slice %20 {offsets = [8, 0], sizes = [8, 8], strides = [1, 1]} : vector<16x32xf32> to vector<8x8xf32>
    %cst_26 = arith.constant dense<0.000000e+00> : vector<8x8xf32>
    %71 = tpu.matmul %69, %70, %cst_26 {dimension_numbers = #tpu.dot_dimension_numbers<[1], [0], [0], [1], [0, 0, 1, 1], [], []>} : vector<8x8xf32>, vector<8x8xf32>, vector<8x8xf32> -> vector<8x8xf32>
    %72 = vector.extract_strided_slice %55 {offsets = [40, 0], sizes = [8, 8], strides = [1, 1]} : vector<64x8xf32> to vector<8x8xf32>
    %73 = vector.extract_strided_slice %20 {offsets = [8, 8], sizes = [8, 8], strides = [1, 1]} : vector<16x32xf32> to vector<8x8xf32>
    %cst_27 = arith.constant dense<0.000000e+00> : vector<8x8xf32>
    %74 = tpu.matmul %72, %73, %cst_27 {dimension_numbers = #tpu.dot_dimension_numbers<[1], [0], [0], [1], [0, 0, 1, 1], [], []>} : vector<8x8xf32>, vector<8x8xf32>, vector<8x8xf32> -> vector<8x8xf32>
    %75 = vector.extract_strided_slice %55 {offsets = [48, 0], sizes = [8, 8], strides = [1, 1]} : vector<64x8xf32> to vector<8x8xf32>
    %76 = vector.extract_strided_slice %20 {offsets = [8, 16], sizes = [8, 8], strides = [1, 1]} : vector<16x32xf32> to vector<8x8xf32>
    %cst_28 = arith.constant dense<0.000000e+00> : vector<8x8xf32>
    %77 = tpu.matmul %75, %76, %cst_28 {dimension_numbers = #tpu.dot_dimension_numbers<[1], [0], [0], [1], [0, 0, 1, 1], [], []>} : vector<8x8xf32>, vector<8x8xf32>, vector<8x8xf32> -> vector<8x8xf32>
    %78 = vector.extract_strided_slice %55 {offsets = [56, 0], sizes = [8, 8], strides = [1, 1]} : vector<64x8xf32> to vector<8x8xf32>
    %79 = vector.extract_strided_slice %20 {offsets = [8, 24], sizes = [8, 8], strides = [1, 1]} : vector<16x32xf32> to vector<8x8xf32>
    %cst_29 = arith.constant dense<0.000000e+00> : vector<8x8xf32>
    %80 = tpu.matmul %78, %79, %cst_29 {dimension_numbers = #tpu.dot_dimension_numbers<[1], [0], [0], [1], [0, 0, 1, 1], [], []>} : vector<8x8xf32>, vector<8x8xf32>, vector<8x8xf32> -> vector<8x8xf32>
    %81 = tpu.concatenate %71, %74, %77, %80 in 1 : vector<8x8xf32>, vector<8x8xf32>, vector<8x8xf32>, vector<8x8xf32> -> vector<8x32xf32>
    %82 = tpu.concatenate %68, %81 in 0 : vector<8x32xf32>, vector<8x32xf32> -> vector<16x32xf32>
    %c0_30 = arith.constant 0 : index
    %c0_31 = arith.constant 0 : index
    %c0_32 = arith.constant 0 : index
    %83 = vector.load %arg5[%c0_30, %c0_31, %c0_32] : memref<2x32x32xf32, #tpu.memory_space<vmem>>, vector<1x32x32xf32>
    %84 = vector.shape_cast %83 : vector<1x32x32xf32> to vector<32x32xf32>
    %cst_33 = arith.constant dense<0.000000e+00> : vector<16x32xf32>
    %85 = tpu.matmul %82, %84, %cst_33 {dimension_numbers = #tpu.dot_dimension_numbers<[1], [0], [0], [1], [0, 0, 1, 1], [], []>} : vector<16x32xf32>, vector<32x32xf32>, vector<16x32xf32> -> vector<16x32xf32>
    %86 = vector.extract_strided_slice %11 {offsets = [1, 0], sizes = [1, 32], strides = [1, 1]} : vector<8x128xf32> to vector<1x32xf32>
    %87 = vector.broadcast %86 : vector<1x32xf32> to vector<16x32xf32>
    %88 = arith.addf %85, %87 : vector<16x32xf32>
    %89 = arith.addf %9, %88 : vector<16x32xf32>
    %90 = vector.extract_strided_slice %11 {offsets = [2, 0], sizes = [1, 32], strides = [1, 1]} : vector<8x128xf32> to vector<1x32xf32>
    %91 = vector.extract_strided_slice %11 {offsets = [3, 0], sizes = [1, 32], strides = [1, 1]} : vector<8x128xf32> to vector<1x32xf32>
    %cst_34 = arith.constant dense<0.000000e+00> : vector<16xf32>
    %92 = vector.multi_reduction <add>, %89, %cst_34 [1] : vector<16x32xf32> to vector<16xf32>
    %93 = vector.shape_cast %92 : vector<16xf32> to vector<16x1xf32>
    %cst_35 = arith.constant 3.200000e+01 : f32
    %94 = vector.broadcast %cst_35 : f32 to vector<16x1xf32>
    %95 = arith.divf %93, %94 : vector<16x1xf32>
    %96 = vector.broadcast %95 : vector<16x1xf32> to vector<16x32xf32>
    %97 = arith.subf %89, %96 : vector<16x32xf32>
    %98 = arith.mulf %97, %97 : vector<16x32xf32>
    %cst_36 = arith.constant dense<0.000000e+00> : vector<16xf32>
    %99 = vector.multi_reduction <add>, %98, %cst_36 [1] : vector<16x32xf32> to vector<16xf32>
    %100 = vector.shape_cast %99 : vector<16xf32> to vector<16x1xf32>
    %cst_37 = arith.constant 3.200000e+01 : f32
    %101 = vector.broadcast %cst_37 : f32 to vector<16x1xf32>
    %102 = arith.divf %100, %101 : vector<16x1xf32>
    %103 = vector.broadcast %95 : vector<16x1xf32> to vector<16x32xf32>
    %104 = arith.subf %89, %103 : vector<16x32xf32>
    %cst_38 = arith.constant 9.99999974E-6 : f32
    %105 = vector.broadcast %cst_38 : f32 to vector<16x1xf32>
    %106 = arith.addf %102, %105 : vector<16x1xf32>
    %107 = math.rsqrt %106 : vector<16x1xf32>
    %108 = vector.broadcast %107 : vector<16x1xf32> to vector<16x32xf32>
    %109 = arith.mulf %104, %108 : vector<16x32xf32>
    %110 = vector.broadcast %90 : vector<1x32xf32> to vector<16x32xf32>
    %111 = arith.mulf %109, %110 : vector<16x32xf32>
    %112 = vector.broadcast %91 : vector<1x32xf32> to vector<16x32xf32>
    %113 = arith.addf %111, %112 : vector<16x32xf32>
    %c0_39 = arith.constant 0 : index
    %c0_40 = arith.constant 0 : index
    %c0_41 = arith.constant 0 : index
    %114 = vector.load %arg6[%c0_39, %c0_40, %c0_41] : memref<2x32x64xf32, #tpu.memory_space<vmem>>, vector<1x32x64xf32>
    %115 = vector.shape_cast %114 : vector<1x32x64xf32> to vector<32x64xf32>
    %cst_42 = arith.constant dense<0.000000e+00> : vector<16x64xf32>
    %116 = tpu.matmul %113, %115, %cst_42 {dimension_numbers = #tpu.dot_dimension_numbers<[1], [0], [0], [1], [0, 0, 1, 1], [], []>} : vector<16x32xf32>, vector<32x64xf32>, vector<16x64xf32> -> vector<16x64xf32>
    %117 = vector.extract_strided_slice %11 {offsets = [4, 0], sizes = [1, 64], strides = [1, 1]} : vector<8x128xf32> to vector<1x64xf32>
    %118 = vector.broadcast %117 : vector<1x64xf32> to vector<16x64xf32>
    %119 = arith.addf %116, %118 : vector<16x64xf32>
    %cst_43 = arith.constant 5.000000e-01 : f32
    %120 = vector.broadcast %cst_43 : f32 to vector<16x64xf32>
    %121 = arith.mulf %120, %119 : vector<16x64xf32>
    %cst_44 = arith.constant 0.707106769 : f32
    %122 = vector.broadcast %cst_44 : f32 to vector<16x64xf32>
    %123 = arith.mulf %119, %122 : vector<16x64xf32>
    %cst_45 = arith.constant 0.000000e+00 : f32
    %124 = vector.broadcast %cst_45 : f32 to vector<16x64xf32>
    %125 = arith.cmpf oge, %123, %124 : vector<16x64xf32>
    %cst_46 = arith.constant 1.000000e+00 : f32
    %cst_47 = arith.constant -1.000000e+00 : f32
    %126 = vector.broadcast %cst_46 : f32 to vector<16x64xf32>
    %127 = vector.broadcast %cst_47 : f32 to vector<16x64xf32>
    %128 = arith.select %125, %126, %127 : vector<16x64xi1>, vector<16x64xf32>
    %129 = math.absf %123 : vector<16x64xf32>
    %cst_48 = arith.constant 0.327591091 : f32
    %130 = vector.broadcast %cst_48 : f32 to vector<16x64xf32>
    %131 = arith.mulf %130, %129 : vector<16x64xf32>
    %cst_49 = arith.constant 1.000000e+00 : f32
    %132 = vector.broadcast %cst_49 : f32 to vector<16x64xf32>
    %133 = arith.addf %132, %131 : vector<16x64xf32>
    %cst_50 = arith.constant 1.000000e+00 : f32
    %134 = vector.broadcast %cst_50 : f32 to vector<16x64xf32>
    %135 = arith.divf %134, %133 : vector<16x64xf32>
    %cst_51 = arith.constant 1.06140542 : f32
    %136 = vector.broadcast %cst_51 : f32 to vector<16x64xf32>
    %137 = arith.mulf %136, %135 : vector<16x64xf32>
    %cst_52 = arith.constant -1.45315206 : f32
    %138 = vector.broadcast %cst_52 : f32 to vector<16x64xf32>
    %139 = arith.addf %137, %138 : vector<16x64xf32>
    %140 = arith.mulf %139, %135 : vector<16x64xf32>
    %cst_53 = arith.constant 1.42141378 : f32
    %141 = vector.broadcast %cst_53 : f32 to vector<16x64xf32>
    %142 = arith.addf %140, %141 : vector<16x64xf32>
    %143 = arith.mulf %142, %135 : vector<16x64xf32>
    %cst_54 = arith.constant -0.284496725 : f32
    %144 = vector.broadcast %cst_54 : f32 to vector<16x64xf32>
    %145 = arith.addf %143, %144 : vector<16x64xf32>
    %146 = arith.mulf %145, %135 : vector<16x64xf32>
    %cst_55 = arith.constant 0.254829586 : f32
    %147 = vector.broadcast %cst_55 : f32 to vector<16x64xf32>
    %148 = arith.addf %146, %147 : vector<16x64xf32>
    %149 = arith.mulf %148, %135 : vector<16x64xf32>
    %cst_56 = arith.constant 0.000000e+00 : f32
    %150 = vector.broadcast %cst_56 : f32 to vector<16x64xf32>
    %151 = arith.subf %150, %129 : vector<16x64xf32>
    %152 = arith.mulf %151, %129 : vector<16x64xf32>
    %153 = math.exp %152 : vector<16x64xf32>
    %154 = arith.mulf %149, %153 : vector<16x64xf32>
    %cst_57 = arith.constant 1.000000e+00 : f32
    %155 = vector.broadcast %cst_57 : f32 to vector<16x64xf32>
    %156 = arith.subf %155, %154 : vector<16x64xf32>
    %157 = arith.mulf %128, %156 : vector<16x64xf32>
    %cst_58 = arith.constant 1.000000e+00 : f32
    %158 = vector.broadcast %cst_58 : f32 to vector<16x64xf32>
    %159 = arith.addf %158, %157 : vector<16x64xf32>
    %160 = arith.mulf %121, %159 : vector<16x64xf32>
    %c0_59 = arith.constant 0 : index
    %c0_60 = arith.constant 0 : index
    %c0_61 = arith.constant 0 : index
    %161 = vector.load %arg7[%c0_59, %c0_60, %c0_61] : memref<2x64x32xf32, #tpu.memory_space<vmem>>, vector<1x64x32xf32>
    %162 = vector.shape_cast %161 : vector<1x64x32xf32> to vector<64x32xf32>
    %cst_62 = arith.constant dense<0.000000e+00> : vector<16x32xf32>
    %163 = tpu.matmul %160, %162, %cst_62 {dimension_numbers = #tpu.dot_dimension_numbers<[1], [0], [0], [1], [0, 0, 1, 1], [], []>} : vector<16x64xf32>, vector<64x32xf32>, vector<16x32xf32> -> vector<16x32xf32>
    %164 = vector.extract_strided_slice %11 {offsets = [5, 0], sizes = [1, 32], strides = [1, 1]} : vector<8x128xf32> to vector<1x32xf32>
    %165 = vector.broadcast %164 : vector<1x32xf32> to vector<16x32xf32>
    %166 = arith.addf %163, %165 : vector<16x32xf32>
    %167 = arith.addf %113, %166 : vector<16x32xf32>
    %168 = vector.extract_strided_slice %11 {offsets = [6, 0], sizes = [1, 32], strides = [1, 1]} : vector<8x128xf32> to vector<1x32xf32>
    %169 = vector.extract_strided_slice %11 {offsets = [7, 0], sizes = [1, 32], strides = [1, 1]} : vector<8x128xf32> to vector<1x32xf32>
    %cst_63 = arith.constant dense<0.000000e+00> : vector<16xf32>
    %170 = vector.multi_reduction <add>, %167, %cst_63 [1] : vector<16x32xf32> to vector<16xf32>
    %171 = vector.shape_cast %170 : vector<16xf32> to vector<16x1xf32>
    %cst_64 = arith.constant 3.200000e+01 : f32
    %172 = vector.broadcast %cst_64 : f32 to vector<16x1xf32>
    %173 = arith.divf %171, %172 : vector<16x1xf32>
    %174 = vector.broadcast %173 : vector<16x1xf32> to vector<16x32xf32>
    %175 = arith.subf %167, %174 : vector<16x32xf32>
    %176 = arith.mulf %175, %175 : vector<16x32xf32>
    %cst_65 = arith.constant dense<0.000000e+00> : vector<16xf32>
    %177 = vector.multi_reduction <add>, %176, %cst_65 [1] : vector<16x32xf32> to vector<16xf32>
    %178 = vector.shape_cast %177 : vector<16xf32> to vector<16x1xf32>
    %cst_66 = arith.constant 3.200000e+01 : f32
    %179 = vector.broadcast %cst_66 : f32 to vector<16x1xf32>
    %180 = arith.divf %178, %179 : vector<16x1xf32>
    %181 = vector.broadcast %173 : vector<16x1xf32> to vector<16x32xf32>
    %182 = arith.subf %167, %181 : vector<16x32xf32>
    %cst_67 = arith.constant 9.99999974E-6 : f32
    %183 = vector.broadcast %cst_67 : f32 to vector<16x1xf32>
    %184 = arith.addf %180, %183 : vector<16x1xf32>
    %185 = math.rsqrt %184 : vector<16x1xf32>
    %186 = vector.broadcast %185 : vector<16x1xf32> to vector<16x32xf32>
    %187 = arith.mulf %182, %186 : vector<16x32xf32>
    %188 = vector.broadcast %168 : vector<1x32xf32> to vector<16x32xf32>
    %189 = arith.mulf %187, %188 : vector<16x32xf32>
    %190 = vector.broadcast %169 : vector<1x32xf32> to vector<16x32xf32>
    %191 = arith.addf %189, %190 : vector<16x32xf32>
    %c1 = arith.constant 1 : index
    %c0_68 = arith.constant 0 : index
    %c0_69 = arith.constant 0 : index
    %192 = vector.load %arg8[%c1, %c0_68, %c0_69] : memref<2x8x128xf32, #tpu.memory_space<vmem>>, vector<1x8x128xf32>
    %193 = vector.shape_cast %192 : vector<1x8x128xf32> to vector<8x128xf32>
    %c1_70 = arith.constant 1 : index
    %c0_71 = arith.constant 0 : index
    %c0_72 = arith.constant 0 : index
    %194 = vector.load %arg4[%c1_70, %c0_71, %c0_72] : memref<2x32x96xf32, #tpu.memory_space<vmem>>, vector<1x32x96xf32>
    %195 = vector.shape_cast %194 : vector<1x32x96xf32> to vector<32x96xf32>
    %cst_73 = arith.constant dense<0.000000e+00> : vector<16x96xf32>
    %196 = tpu.matmul %191, %195, %cst_73 {dimension_numbers = #tpu.dot_dimension_numbers<[1], [0], [0], [1], [0, 0, 1, 1], [], []>} : vector<16x32xf32>, vector<32x96xf32>, vector<16x96xf32> -> vector<16x96xf32>
    %197 = vector.extract_strided_slice %193 {offsets = [0, 0], sizes = [1, 96], strides = [1, 1]} : vector<8x128xf32> to vector<1x96xf32>
    %198 = vector.broadcast %197 : vector<1x96xf32> to vector<16x96xf32>
    %199 = arith.addf %196, %198 : vector<16x96xf32>
    %200 = vector.extract_strided_slice %199 {offsets = [0, 0], sizes = [16, 32], strides = [1, 1]} : vector<16x96xf32> to vector<16x32xf32>
    %201 = vector.extract_strided_slice %199 {offsets = [0, 32], sizes = [16, 32], strides = [1, 1]} : vector<16x96xf32> to vector<16x32xf32>
    %202 = vector.extract_strided_slice %199 {offsets = [0, 64], sizes = [16, 32], strides = [1, 1]} : vector<16x96xf32> to vector<16x32xf32>
    %203 = vector.extract_strided_slice %200 {offsets = [0, 0], sizes = [8, 8], strides = [1, 1]} : vector<16x32xf32> to vector<8x8xf32>
    %204 = vector.extract_strided_slice %201 {offsets = [0, 0], sizes = [8, 8], strides = [1, 1]} : vector<16x32xf32> to vector<8x8xf32>
    %cst_74 = arith.constant dense<0.000000e+00> : vector<8x8xf32>
    %205 = tpu.matmul %203, %204, %cst_74 {dimension_numbers = #tpu.dot_dimension_numbers<[1], [1], [0], [0], [0, 0, 1, 0], [], []>} : vector<8x8xf32>, vector<8x8xf32>, vector<8x8xf32> -> vector<8x8xf32>
    %206 = vector.extract_strided_slice %200 {offsets = [0, 8], sizes = [8, 8], strides = [1, 1]} : vector<16x32xf32> to vector<8x8xf32>
    %207 = vector.extract_strided_slice %201 {offsets = [0, 8], sizes = [8, 8], strides = [1, 1]} : vector<16x32xf32> to vector<8x8xf32>
    %cst_75 = arith.constant dense<0.000000e+00> : vector<8x8xf32>
    %208 = tpu.matmul %206, %207, %cst_75 {dimension_numbers = #tpu.dot_dimension_numbers<[1], [1], [0], [0], [0, 0, 1, 0], [], []>} : vector<8x8xf32>, vector<8x8xf32>, vector<8x8xf32> -> vector<8x8xf32>
    %209 = vector.extract_strided_slice %200 {offsets = [0, 16], sizes = [8, 8], strides = [1, 1]} : vector<16x32xf32> to vector<8x8xf32>
    %210 = vector.extract_strided_slice %201 {offsets = [0, 16], sizes = [8, 8], strides = [1, 1]} : vector<16x32xf32> to vector<8x8xf32>
    %cst_76 = arith.constant dense<0.000000e+00> : vector<8x8xf32>
    %211 = tpu.matmul %209, %210, %cst_76 {dimension_numbers = #tpu.dot_dimension_numbers<[1], [1], [0], [0], [0, 0, 1, 0], [], []>} : vector<8x8xf32>, vector<8x8xf32>, vector<8x8xf32> -> vector<8x8xf32>
    %212 = vector.extract_strided_slice %200 {offsets = [0, 24], sizes = [8, 8], strides = [1, 1]} : vector<16x32xf32> to vector<8x8xf32>
    %213 = vector.extract_strided_slice %201 {offsets = [0, 24], sizes = [8, 8], strides = [1, 1]} : vector<16x32xf32> to vector<8x8xf32>
    %cst_77 = arith.constant dense<0.000000e+00> : vector<8x8xf32>
    %214 = tpu.matmul %212, %213, %cst_77 {dimension_numbers = #tpu.dot_dimension_numbers<[1], [1], [0], [0], [0, 0, 1, 0], [], []>} : vector<8x8xf32>, vector<8x8xf32>, vector<8x8xf32> -> vector<8x8xf32>
    %215 = vector.extract_strided_slice %200 {offsets = [8, 0], sizes = [8, 8], strides = [1, 1]} : vector<16x32xf32> to vector<8x8xf32>
    %216 = vector.extract_strided_slice %201 {offsets = [8, 0], sizes = [8, 8], strides = [1, 1]} : vector<16x32xf32> to vector<8x8xf32>
    %cst_78 = arith.constant dense<0.000000e+00> : vector<8x8xf32>
    %217 = tpu.matmul %215, %216, %cst_78 {dimension_numbers = #tpu.dot_dimension_numbers<[1], [1], [0], [0], [0, 0, 1, 0], [], []>} : vector<8x8xf32>, vector<8x8xf32>, vector<8x8xf32> -> vector<8x8xf32>
    %218 = vector.extract_strided_slice %200 {offsets = [8, 8], sizes = [8, 8], strides = [1, 1]} : vector<16x32xf32> to vector<8x8xf32>
    %219 = vector.extract_strided_slice %201 {offsets = [8, 8], sizes = [8, 8], strides = [1, 1]} : vector<16x32xf32> to vector<8x8xf32>
    %cst_79 = arith.constant dense<0.000000e+00> : vector<8x8xf32>
    %220 = tpu.matmul %218, %219, %cst_79 {dimension_numbers = #tpu.dot_dimension_numbers<[1], [1], [0], [0], [0, 0, 1, 0], [], []>} : vector<8x8xf32>, vector<8x8xf32>, vector<8x8xf32> -> vector<8x8xf32>
    %221 = vector.extract_strided_slice %200 {offsets = [8, 16], sizes = [8, 8], strides = [1, 1]} : vector<16x32xf32> to vector<8x8xf32>
    %222 = vector.extract_strided_slice %201 {offsets = [8, 16], sizes = [8, 8], strides = [1, 1]} : vector<16x32xf32> to vector<8x8xf32>
    %cst_80 = arith.constant dense<0.000000e+00> : vector<8x8xf32>
    %223 = tpu.matmul %221, %222, %cst_80 {dimension_numbers = #tpu.dot_dimension_numbers<[1], [1], [0], [0], [0, 0, 1, 0], [], []>} : vector<8x8xf32>, vector<8x8xf32>, vector<8x8xf32> -> vector<8x8xf32>
    %224 = vector.extract_strided_slice %200 {offsets = [8, 24], sizes = [8, 8], strides = [1, 1]} : vector<16x32xf32> to vector<8x8xf32>
    %225 = vector.extract_strided_slice %201 {offsets = [8, 24], sizes = [8, 8], strides = [1, 1]} : vector<16x32xf32> to vector<8x8xf32>
    %cst_81 = arith.constant dense<0.000000e+00> : vector<8x8xf32>
    %226 = tpu.matmul %224, %225, %cst_81 {dimension_numbers = #tpu.dot_dimension_numbers<[1], [1], [0], [0], [0, 0, 1, 0], [], []>} : vector<8x8xf32>, vector<8x8xf32>, vector<8x8xf32> -> vector<8x8xf32>
    %227 = tpu.concatenate %205, %208, %211, %214, %217, %220, %223, %226 in 0 : vector<8x8xf32>, vector<8x8xf32>, vector<8x8xf32>, vector<8x8xf32>, vector<8x8xf32>, vector<8x8xf32>, vector<8x8xf32>, vector<8x8xf32> -> vector<64x8xf32>
    %cst_82 = arith.constant dense<0xFF800000> : vector<64xf32>
    %228 = vector.multi_reduction <maximumf>, %227, %cst_82 [1] : vector<64x8xf32> to vector<64xf32>
    %229 = vector.shape_cast %228 : vector<64xf32> to vector<64x1xf32>
    %230 = vector.broadcast %229 : vector<64x1xf32> to vector<64x8xf32>
    %231 = arith.subf %227, %230 : vector<64x8xf32>
    %232 = math.exp %231 : vector<64x8xf32>
    %cst_83 = arith.constant dense<0.000000e+00> : vector<64xf32>
    %233 = vector.multi_reduction <add>, %232, %cst_83 [1] : vector<64x8xf32> to vector<64xf32>
    %234 = vector.shape_cast %233 : vector<64xf32> to vector<64x1xf32>
    %235 = tpu.reciprocal %234 {approx = true} : vector<64x1xf32> -> vector<64x1xf32>
    %236 = vector.broadcast %235 : vector<64x1xf32> to vector<64x8xf32>
    %237 = arith.mulf %232, %236 : vector<64x8xf32>
    %238 = vector.extract_strided_slice %237 {offsets = [0, 0], sizes = [8, 8], strides = [1, 1]} : vector<64x8xf32> to vector<8x8xf32>
    %239 = vector.extract_strided_slice %202 {offsets = [0, 0], sizes = [8, 8], strides = [1, 1]} : vector<16x32xf32> to vector<8x8xf32>
    %cst_84 = arith.constant dense<0.000000e+00> : vector<8x8xf32>
    %240 = tpu.matmul %238, %239, %cst_84 {dimension_numbers = #tpu.dot_dimension_numbers<[1], [0], [0], [1], [0, 0, 1, 1], [], []>} : vector<8x8xf32>, vector<8x8xf32>, vector<8x8xf32> -> vector<8x8xf32>
    %241 = vector.extract_strided_slice %237 {offsets = [8, 0], sizes = [8, 8], strides = [1, 1]} : vector<64x8xf32> to vector<8x8xf32>
    %242 = vector.extract_strided_slice %202 {offsets = [0, 8], sizes = [8, 8], strides = [1, 1]} : vector<16x32xf32> to vector<8x8xf32>
    %cst_85 = arith.constant dense<0.000000e+00> : vector<8x8xf32>
    %243 = tpu.matmul %241, %242, %cst_85 {dimension_numbers = #tpu.dot_dimension_numbers<[1], [0], [0], [1], [0, 0, 1, 1], [], []>} : vector<8x8xf32>, vector<8x8xf32>, vector<8x8xf32> -> vector<8x8xf32>
    %244 = vector.extract_strided_slice %237 {offsets = [16, 0], sizes = [8, 8], strides = [1, 1]} : vector<64x8xf32> to vector<8x8xf32>
    %245 = vector.extract_strided_slice %202 {offsets = [0, 16], sizes = [8, 8], strides = [1, 1]} : vector<16x32xf32> to vector<8x8xf32>
    %cst_86 = arith.constant dense<0.000000e+00> : vector<8x8xf32>
    %246 = tpu.matmul %244, %245, %cst_86 {dimension_numbers = #tpu.dot_dimension_numbers<[1], [0], [0], [1], [0, 0, 1, 1], [], []>} : vector<8x8xf32>, vector<8x8xf32>, vector<8x8xf32> -> vector<8x8xf32>
    %247 = vector.extract_strided_slice %237 {offsets = [24, 0], sizes = [8, 8], strides = [1, 1]} : vector<64x8xf32> to vector<8x8xf32>
    %248 = vector.extract_strided_slice %202 {offsets = [0, 24], sizes = [8, 8], strides = [1, 1]} : vector<16x32xf32> to vector<8x8xf32>
    %cst_87 = arith.constant dense<0.000000e+00> : vector<8x8xf32>
    %249 = tpu.matmul %247, %248, %cst_87 {dimension_numbers = #tpu.dot_dimension_numbers<[1], [0], [0], [1], [0, 0, 1, 1], [], []>} : vector<8x8xf32>, vector<8x8xf32>, vector<8x8xf32> -> vector<8x8xf32>
    %250 = tpu.concatenate %240, %243, %246, %249 in 1 : vector<8x8xf32>, vector<8x8xf32>, vector<8x8xf32>, vector<8x8xf32> -> vector<8x32xf32>
    %251 = vector.extract_strided_slice %237 {offsets = [32, 0], sizes = [8, 8], strides = [1, 1]} : vector<64x8xf32> to vector<8x8xf32>
    %252 = vector.extract_strided_slice %202 {offsets = [8, 0], sizes = [8, 8], strides = [1, 1]} : vector<16x32xf32> to vector<8x8xf32>
    %cst_88 = arith.constant dense<0.000000e+00> : vector<8x8xf32>
    %253 = tpu.matmul %251, %252, %cst_88 {dimension_numbers = #tpu.dot_dimension_numbers<[1], [0], [0], [1], [0, 0, 1, 1], [], []>} : vector<8x8xf32>, vector<8x8xf32>, vector<8x8xf32> -> vector<8x8xf32>
    %254 = vector.extract_strided_slice %237 {offsets = [40, 0], sizes = [8, 8], strides = [1, 1]} : vector<64x8xf32> to vector<8x8xf32>
    %255 = vector.extract_strided_slice %202 {offsets = [8, 8], sizes = [8, 8], strides = [1, 1]} : vector<16x32xf32> to vector<8x8xf32>
    %cst_89 = arith.constant dense<0.000000e+00> : vector<8x8xf32>
    %256 = tpu.matmul %254, %255, %cst_89 {dimension_numbers = #tpu.dot_dimension_numbers<[1], [0], [0], [1], [0, 0, 1, 1], [], []>} : vector<8x8xf32>, vector<8x8xf32>, vector<8x8xf32> -> vector<8x8xf32>
    %257 = vector.extract_strided_slice %237 {offsets = [48, 0], sizes = [8, 8], strides = [1, 1]} : vector<64x8xf32> to vector<8x8xf32>
    %258 = vector.extract_strided_slice %202 {offsets = [8, 16], sizes = [8, 8], strides = [1, 1]} : vector<16x32xf32> to vector<8x8xf32>
    %cst_90 = arith.constant dense<0.000000e+00> : vector<8x8xf32>
    %259 = tpu.matmul %257, %258, %cst_90 {dimension_numbers = #tpu.dot_dimension_numbers<[1], [0], [0], [1], [0, 0, 1, 1], [], []>} : vector<8x8xf32>, vector<8x8xf32>, vector<8x8xf32> -> vector<8x8xf32>
    %260 = vector.extract_strided_slice %237 {offsets = [56, 0], sizes = [8, 8], strides = [1, 1]} : vector<64x8xf32> to vector<8x8xf32>
    %261 = vector.extract_strided_slice %202 {offsets = [8, 24], sizes = [8, 8], strides = [1, 1]} : vector<16x32xf32> to vector<8x8xf32>
    %cst_91 = arith.constant dense<0.000000e+00> : vector<8x8xf32>
    %262 = tpu.matmul %260, %261, %cst_91 {dimension_numbers = #tpu.dot_dimension_numbers<[1], [0], [0], [1], [0, 0, 1, 1], [], []>} : vector<8x8xf32>, vector<8x8xf32>, vector<8x8xf32> -> vector<8x8xf32>
    %263 = tpu.concatenate %253, %256, %259, %262 in 1 : vector<8x8xf32>, vector<8x8xf32>, vector<8x8xf32>, vector<8x8xf32> -> vector<8x32xf32>
    %264 = tpu.concatenate %250, %263 in 0 : vector<8x32xf32>, vector<8x32xf32> -> vector<16x32xf32>
    %c1_92 = arith.constant 1 : index
    %c0_93 = arith.constant 0 : index
    %c0_94 = arith.constant 0 : index
    %265 = vector.load %arg5[%c1_92, %c0_93, %c0_94] : memref<2x32x32xf32, #tpu.memory_space<vmem>>, vector<1x32x32xf32>
    %266 = vector.shape_cast %265 : vector<1x32x32xf32> to vector<32x32xf32>
    %cst_95 = arith.constant dense<0.000000e+00> : vector<16x32xf32>
    %267 = tpu.matmul %264, %266, %cst_95 {dimension_numbers = #tpu.dot_dimension_numbers<[1], [0], [0], [1], [0, 0, 1, 1], [], []>} : vector<16x32xf32>, vector<32x32xf32>, vector<16x32xf32> -> vector<16x32xf32>
    %268 = vector.extract_strided_slice %193 {offsets = [1, 0], sizes = [1, 32], strides = [1, 1]} : vector<8x128xf32> to vector<1x32xf32>
    %269 = vector.broadcast %268 : vector<1x32xf32> to vector<16x32xf32>
    %270 = arith.addf %267, %269 : vector<16x32xf32>
    %271 = arith.addf %191, %270 : vector<16x32xf32>
    %272 = vector.extract_strided_slice %193 {offsets = [2, 0], sizes = [1, 32], strides = [1, 1]} : vector<8x128xf32> to vector<1x32xf32>
    %273 = vector.extract_strided_slice %193 {offsets = [3, 0], sizes = [1, 32], strides = [1, 1]} : vector<8x128xf32> to vector<1x32xf32>
    %cst_96 = arith.constant dense<0.000000e+00> : vector<16xf32>
    %274 = vector.multi_reduction <add>, %271, %cst_96 [1] : vector<16x32xf32> to vector<16xf32>
    %275 = vector.shape_cast %274 : vector<16xf32> to vector<16x1xf32>
    %cst_97 = arith.constant 3.200000e+01 : f32
    %276 = vector.broadcast %cst_97 : f32 to vector<16x1xf32>
    %277 = arith.divf %275, %276 : vector<16x1xf32>
    %278 = vector.broadcast %277 : vector<16x1xf32> to vector<16x32xf32>
    %279 = arith.subf %271, %278 : vector<16x32xf32>
    %280 = arith.mulf %279, %279 : vector<16x32xf32>
    %cst_98 = arith.constant dense<0.000000e+00> : vector<16xf32>
    %281 = vector.multi_reduction <add>, %280, %cst_98 [1] : vector<16x32xf32> to vector<16xf32>
    %282 = vector.shape_cast %281 : vector<16xf32> to vector<16x1xf32>
    %cst_99 = arith.constant 3.200000e+01 : f32
    %283 = vector.broadcast %cst_99 : f32 to vector<16x1xf32>
    %284 = arith.divf %282, %283 : vector<16x1xf32>
    %285 = vector.broadcast %277 : vector<16x1xf32> to vector<16x32xf32>
    %286 = arith.subf %271, %285 : vector<16x32xf32>
    %cst_100 = arith.constant 9.99999974E-6 : f32
    %287 = vector.broadcast %cst_100 : f32 to vector<16x1xf32>
    %288 = arith.addf %284, %287 : vector<16x1xf32>
    %289 = math.rsqrt %288 : vector<16x1xf32>
    %290 = vector.broadcast %289 : vector<16x1xf32> to vector<16x32xf32>
    %291 = arith.mulf %286, %290 : vector<16x32xf32>
    %292 = vector.broadcast %272 : vector<1x32xf32> to vector<16x32xf32>
    %293 = arith.mulf %291, %292 : vector<16x32xf32>
    %294 = vector.broadcast %273 : vector<1x32xf32> to vector<16x32xf32>
    %295 = arith.addf %293, %294 : vector<16x32xf32>
    %c1_101 = arith.constant 1 : index
    %c0_102 = arith.constant 0 : index
    %c0_103 = arith.constant 0 : index
    %296 = vector.load %arg6[%c1_101, %c0_102, %c0_103] : memref<2x32x64xf32, #tpu.memory_space<vmem>>, vector<1x32x64xf32>
    %297 = vector.shape_cast %296 : vector<1x32x64xf32> to vector<32x64xf32>
    %cst_104 = arith.constant dense<0.000000e+00> : vector<16x64xf32>
    %298 = tpu.matmul %295, %297, %cst_104 {dimension_numbers = #tpu.dot_dimension_numbers<[1], [0], [0], [1], [0, 0, 1, 1], [], []>} : vector<16x32xf32>, vector<32x64xf32>, vector<16x64xf32> -> vector<16x64xf32>
    %299 = vector.extract_strided_slice %193 {offsets = [4, 0], sizes = [1, 64], strides = [1, 1]} : vector<8x128xf32> to vector<1x64xf32>
    %300 = vector.broadcast %299 : vector<1x64xf32> to vector<16x64xf32>
    %301 = arith.addf %298, %300 : vector<16x64xf32>
    %cst_105 = arith.constant 5.000000e-01 : f32
    %302 = vector.broadcast %cst_105 : f32 to vector<16x64xf32>
    %303 = arith.mulf %302, %301 : vector<16x64xf32>
    %cst_106 = arith.constant 0.707106769 : f32
    %304 = vector.broadcast %cst_106 : f32 to vector<16x64xf32>
    %305 = arith.mulf %301, %304 : vector<16x64xf32>
    %cst_107 = arith.constant 0.000000e+00 : f32
    %306 = vector.broadcast %cst_107 : f32 to vector<16x64xf32>
    %307 = arith.cmpf oge, %305, %306 : vector<16x64xf32>
    %cst_108 = arith.constant 1.000000e+00 : f32
    %cst_109 = arith.constant -1.000000e+00 : f32
    %308 = vector.broadcast %cst_108 : f32 to vector<16x64xf32>
    %309 = vector.broadcast %cst_109 : f32 to vector<16x64xf32>
    %310 = arith.select %307, %308, %309 : vector<16x64xi1>, vector<16x64xf32>
    %311 = math.absf %305 : vector<16x64xf32>
    %cst_110 = arith.constant 0.327591091 : f32
    %312 = vector.broadcast %cst_110 : f32 to vector<16x64xf32>
    %313 = arith.mulf %312, %311 : vector<16x64xf32>
    %cst_111 = arith.constant 1.000000e+00 : f32
    %314 = vector.broadcast %cst_111 : f32 to vector<16x64xf32>
    %315 = arith.addf %314, %313 : vector<16x64xf32>
    %cst_112 = arith.constant 1.000000e+00 : f32
    %316 = vector.broadcast %cst_112 : f32 to vector<16x64xf32>
    %317 = arith.divf %316, %315 : vector<16x64xf32>
    %cst_113 = arith.constant 1.06140542 : f32
    %318 = vector.broadcast %cst_113 : f32 to vector<16x64xf32>
    %319 = arith.mulf %318, %317 : vector<16x64xf32>
    %cst_114 = arith.constant -1.45315206 : f32
    %320 = vector.broadcast %cst_114 : f32 to vector<16x64xf32>
    %321 = arith.addf %319, %320 : vector<16x64xf32>
    %322 = arith.mulf %321, %317 : vector<16x64xf32>
    %cst_115 = arith.constant 1.42141378 : f32
    %323 = vector.broadcast %cst_115 : f32 to vector<16x64xf32>
    %324 = arith.addf %322, %323 : vector<16x64xf32>
    %325 = arith.mulf %324, %317 : vector<16x64xf32>
    %cst_116 = arith.constant -0.284496725 : f32
    %326 = vector.broadcast %cst_116 : f32 to vector<16x64xf32>
    %327 = arith.addf %325, %326 : vector<16x64xf32>
    %328 = arith.mulf %327, %317 : vector<16x64xf32>
    %cst_117 = arith.constant 0.254829586 : f32
    %329 = vector.broadcast %cst_117 : f32 to vector<16x64xf32>
    %330 = arith.addf %328, %329 : vector<16x64xf32>
    %331 = arith.mulf %330, %317 : vector<16x64xf32>
    %cst_118 = arith.constant 0.000000e+00 : f32
    %332 = vector.broadcast %cst_118 : f32 to vector<16x64xf32>
    %333 = arith.subf %332, %311 : vector<16x64xf32>
    %334 = arith.mulf %333, %311 : vector<16x64xf32>
    %335 = math.exp %334 : vector<16x64xf32>
    %336 = arith.mulf %331, %335 : vector<16x64xf32>
    %cst_119 = arith.constant 1.000000e+00 : f32
    %337 = vector.broadcast %cst_119 : f32 to vector<16x64xf32>
    %338 = arith.subf %337, %336 : vector<16x64xf32>
    %339 = arith.mulf %310, %338 : vector<16x64xf32>
    %cst_120 = arith.constant 1.000000e+00 : f32
    %340 = vector.broadcast %cst_120 : f32 to vector<16x64xf32>
    %341 = arith.addf %340, %339 : vector<16x64xf32>
    %342 = arith.mulf %303, %341 : vector<16x64xf32>
    %c1_121 = arith.constant 1 : index
    %c0_122 = arith.constant 0 : index
    %c0_123 = arith.constant 0 : index
    %343 = vector.load %arg7[%c1_121, %c0_122, %c0_123] : memref<2x64x32xf32, #tpu.memory_space<vmem>>, vector<1x64x32xf32>
    %344 = vector.shape_cast %343 : vector<1x64x32xf32> to vector<64x32xf32>
    %cst_124 = arith.constant dense<0.000000e+00> : vector<16x32xf32>
    %345 = tpu.matmul %342, %344, %cst_124 {dimension_numbers = #tpu.dot_dimension_numbers<[1], [0], [0], [1], [0, 0, 1, 1], [], []>} : vector<16x64xf32>, vector<64x32xf32>, vector<16x32xf32> -> vector<16x32xf32>
    %346 = vector.extract_strided_slice %193 {offsets = [5, 0], sizes = [1, 32], strides = [1, 1]} : vector<8x128xf32> to vector<1x32xf32>
    %347 = vector.broadcast %346 : vector<1x32xf32> to vector<16x32xf32>
    %348 = arith.addf %345, %347 : vector<16x32xf32>
    %349 = arith.addf %295, %348 : vector<16x32xf32>
    %350 = vector.extract_strided_slice %193 {offsets = [6, 0], sizes = [1, 32], strides = [1, 1]} : vector<8x128xf32> to vector<1x32xf32>
    %351 = vector.extract_strided_slice %193 {offsets = [7, 0], sizes = [1, 32], strides = [1, 1]} : vector<8x128xf32> to vector<1x32xf32>
    %cst_125 = arith.constant dense<0.000000e+00> : vector<16xf32>
    %352 = vector.multi_reduction <add>, %349, %cst_125 [1] : vector<16x32xf32> to vector<16xf32>
    %353 = vector.shape_cast %352 : vector<16xf32> to vector<16x1xf32>
    %cst_126 = arith.constant 3.200000e+01 : f32
    %354 = vector.broadcast %cst_126 : f32 to vector<16x1xf32>
    %355 = arith.divf %353, %354 : vector<16x1xf32>
    %356 = vector.broadcast %355 : vector<16x1xf32> to vector<16x32xf32>
    %357 = arith.subf %349, %356 : vector<16x32xf32>
    %358 = arith.mulf %357, %357 : vector<16x32xf32>
    %cst_127 = arith.constant dense<0.000000e+00> : vector<16xf32>
    %359 = vector.multi_reduction <add>, %358, %cst_127 [1] : vector<16x32xf32> to vector<16xf32>
    %360 = vector.shape_cast %359 : vector<16xf32> to vector<16x1xf32>
    %cst_128 = arith.constant 3.200000e+01 : f32
    %361 = vector.broadcast %cst_128 : f32 to vector<16x1xf32>
    %362 = arith.divf %360, %361 : vector<16x1xf32>
    %363 = vector.broadcast %355 : vector<16x1xf32> to vector<16x32xf32>
    %364 = arith.subf %349, %363 : vector<16x32xf32>
    %cst_129 = arith.constant 9.99999974E-6 : f32
    %365 = vector.broadcast %cst_129 : f32 to vector<16x1xf32>
    %366 = arith.addf %362, %365 : vector<16x1xf32>
    %367 = math.rsqrt %366 : vector<16x1xf32>
    %368 = vector.broadcast %367 : vector<16x1xf32> to vector<16x32xf32>
    %369 = arith.mulf %364, %368 : vector<16x32xf32>
    %370 = vector.broadcast %350 : vector<1x32xf32> to vector<16x32xf32>
    %371 = arith.mulf %369, %370 : vector<16x32xf32>
    %372 = vector.broadcast %351 : vector<1x32xf32> to vector<16x32xf32>
    %373 = arith.addf %371, %372 : vector<16x32xf32>
    %c0_130 = arith.constant 0 : index
    %c0_131 = arith.constant 0 : index
    %374 = vector.load %arg10[%c0_130, %c0_131] : memref<8x128xf32, #tpu.memory_space<vmem>>, vector<8x128xf32>
    %375 = vector.extract_strided_slice %374 {offsets = [0, 0], sizes = [1, 32], strides = [1, 1]} : vector<8x128xf32> to vector<1x32xf32>
    %376 = vector.extract_strided_slice %374 {offsets = [1, 0], sizes = [1, 32], strides = [1, 1]} : vector<8x128xf32> to vector<1x32xf32>
    %cst_132 = arith.constant dense<0.000000e+00> : vector<16xf32>
    %377 = vector.multi_reduction <add>, %373, %cst_132 [1] : vector<16x32xf32> to vector<16xf32>
    %378 = vector.shape_cast %377 : vector<16xf32> to vector<16x1xf32>
    %cst_133 = arith.constant 3.200000e+01 : f32
    %379 = vector.broadcast %cst_133 : f32 to vector<16x1xf32>
    %380 = arith.divf %378, %379 : vector<16x1xf32>
    %381 = vector.broadcast %380 : vector<16x1xf32> to vector<16x32xf32>
    %382 = arith.subf %373, %381 : vector<16x32xf32>
    %383 = arith.mulf %382, %382 : vector<16x32xf32>
    %cst_134 = arith.constant dense<0.000000e+00> : vector<16xf32>
    %384 = vector.multi_reduction <add>, %383, %cst_134 [1] : vector<16x32xf32> to vector<16xf32>
    %385 = vector.shape_cast %384 : vector<16xf32> to vector<16x1xf32>
    %cst_135 = arith.constant 3.200000e+01 : f32
    %386 = vector.broadcast %cst_135 : f32 to vector<16x1xf32>
    %387 = arith.divf %385, %386 : vector<16x1xf32>
    %388 = vector.broadcast %380 : vector<16x1xf32> to vector<16x32xf32>
    %389 = arith.subf %373, %388 : vector<16x32xf32>
    %cst_136 = arith.constant 9.99999974E-6 : f32
    %390 = vector.broadcast %cst_136 : f32 to vector<16x1xf32>
    %391 = arith.addf %387, %390 : vector<16x1xf32>
    %392 = math.rsqrt %391 : vector<16x1xf32>
    %393 = vector.broadcast %392 : vector<16x1xf32> to vector<16x32xf32>
    %394 = arith.mulf %389, %393 : vector<16x32xf32>
    %395 = vector.broadcast %375 : vector<1x32xf32> to vector<16x32xf32>
    %396 = arith.mulf %394, %395 : vector<16x32xf32>
    %397 = vector.broadcast %376 : vector<1x32xf32> to vector<16x32xf32>
    %398 = arith.addf %396, %397 : vector<16x32xf32>
    %c0_137 = arith.constant 0 : index
    %c0_138 = arith.constant 0 : index
    %399 = vector.load %arg9[%c0_137, %c0_138] : memref<32x128xf32, #tpu.memory_space<vmem>>, vector<32x128xf32>
    %cst_139 = arith.constant dense<0.000000e+00> : vector<16x128xf32>
    %400 = tpu.matmul %398, %399, %cst_139 {dimension_numbers = #tpu.dot_dimension_numbers<[1], [0], [0], [1], [0, 0, 1, 1], [], []>} : vector<16x32xf32>, vector<32x128xf32>, vector<16x128xf32> -> vector<16x128xf32>
    %401 = vector.extract_strided_slice %374 {offsets = [2, 0], sizes = [1, 128], strides = [1, 1]} : vector<8x128xf32> to vector<1x128xf32>
    %402 = vector.broadcast %401 : vector<1x128xf32> to vector<16x128xf32>
    %403 = arith.addf %400, %402 : vector<16x128xf32>
    %c0_140 = arith.constant 0 : index
    %c0_141 = arith.constant 0 : index
    %404 = vector.load %arg11[%c0_140, %c0_141] : memref<16x128xf32, #tpu.memory_space<vmem>>, vector<16x128xf32>
    tpu.vector_store %arg11[%c0_140, %c0_141], %403 {strides = array<i32>} : memref<16x128xf32, #tpu.memory_space<vmem>>, vector<16x128xf32>,
    return
  }
  func.func @transform_0(%arg0: i32) -> (i32, i32) {
    %c0_i32 = arith.constant 0 : i32
    %c0_i32_0 = arith.constant 0 : i32
    %c0_i32_1 = arith.constant 0 : i32
    return %c0_i32, %c0_i32_0 : i32, i32
  }
  func.func @transform_1(%arg0: i32) -> (i32, i32) {
    %c0_i32 = arith.constant 0 : i32
    %c0_i32_0 = arith.constant 0 : i32
    %c0_i32_1 = arith.constant 0 : i32
    return %c0_i32, %c0_i32_0 : i32, i32
  }
  func.func @transform_2(%arg0: i32) -> (i32, i32) {
    %c0_i32 = arith.constant 0 : i32
    %c0_i32_0 = arith.constant 0 : i32
    %c0_i32_1 = arith.constant 0 : i32
    return %c0_i32, %c0_i32_0 : i32, i32
  }
  func.func @transform_3(%arg0: i32) -> (i32, i32, i32) {
    %c0_i32 = arith.constant 0 : i32
    %c0_i32_0 = arith.constant 0 : i32
    %c0_i32_1 = arith.constant 0 : i32
    %c0_i32_2 = arith.constant 0 : i32
    return %c0_i32, %c0_i32_0, %c0_i32_1 : i32, i32, i32
  }
  func.func @transform_4(%arg0: i32) -> (i32, i32, i32) {
    %c0_i32 = arith.constant 0 : i32
    %c0_i32_0 = arith.constant 0 : i32
    %c0_i32_1 = arith.constant 0 : i32
    %c0_i32_2 = arith.constant 0 : i32
    return %c0_i32, %c0_i32_0, %c0_i32_1 : i32, i32, i32
  }
  func.func @transform_5(%arg0: i32) -> (i32, i32, i32) {
    %c0_i32 = arith.constant 0 : i32
    %c0_i32_0 = arith.constant 0 : i32
    %c0_i32_1 = arith.constant 0 : i32
    %c0_i32_2 = arith.constant 0 : i32
    return %c0_i32, %c0_i32_0, %c0_i32_1 : i32, i32, i32
  }
  func.func @transform_6(%arg0: i32) -> (i32, i32, i32) {
    %c0_i32 = arith.constant 0 : i32
    %c0_i32_0 = arith.constant 0 : i32
    %c0_i32_1 = arith.constant 0 : i32
    %c0_i32_2 = arith.constant 0 : i32
    return %c0_i32, %c0_i32_0, %c0_i32_1 : i32, i32, i32
  }
  func.func @transform_7(%arg0: i32) -> (i32, i32, i32) {
    %c0_i32 = arith.constant 0 : i32
    %c0_i32_0 = arith.constant 0 : i32
    %c0_i32_1 = arith.constant 0 : i32
    %c0_i32_2 = arith.constant 0 : i32
    return %c0_i32, %c0_i32_0, %c0_i32_1 : i32, i32, i32
  }
  func.func @transform_8(%arg0: i32) -> (i32, i32) {
    %c0_i32 = arith.constant 0 : i32
    %c0_i32_0 = arith.constant 0 : i32
    %c0_i32_1 = arith.constant 0 : i32
    return %c0_i32, %c0_i32_0 : i32, i32
  }
  func.func @transform_9(%arg0: i32) -> (i32, i32) {
    %c0_i32 = arith.constant 0 : i32
    %c0_i32_0 = arith.constant 0 : i32
    %c0_i32_1 = arith.constant 0 : i32
    return %c0_i32, %c0_i32_0 : i32, i32
  }
  func.func @transform_10(%arg0: i32) -> (i32, i32) {
    %c0_i32 = arith.constant 0 : i32
    %c0_i32_0 = arith.constant 0 : i32
    %c0_i32_1 = arith.constant 0 : i32
    return %c0_i32, %c0_i32_0 : i32, i32
  }
}

</mosaic_0001>

<llo_original>
// kernel: forward.1
$region0: #{forward.1}
  #allocation0 [shape = 'u32[]', space=smem, size = 0x4, offset = 0x4, fixed_abs, tag = 'smem constant byte address 0x4 - core index']
  #allocation1 [shape = 'u32[144,128]{1,0:T(1,128)}', space=vmem, size = 0x12000, scoped, tag = 'internal scratch']
  %s0 = inlined_call_operand.vmem [shape: s32[16,1], index: 0, kind: input, shape index: {}]
  %s1 = inlined_call_operand.hbm [shape: f32[64,32], index: 1, kind: input, shape index: {}]
  %s2 = inlined_call_operand.hbm [shape: f32[16,32], index: 2, kind: input, shape index: {}]
  %s3 = inlined_call_operand.hbm [shape: f32[2,32,96], index: 3, kind: input, shape index: {}]
  %s4 = inlined_call_operand.hbm [shape: f32[2,32,32], index: 4, kind: input, shape index: {}]
  %s5 = inlined_call_operand.hbm [shape: f32[2,32,64], index: 5, kind: input, shape index: {}]
  %s6 = inlined_call_operand.hbm [shape: f32[2,64,32], index: 6, kind: input, shape index: {}]
  %s7 = inlined_call_operand.hbm [shape: f32[2,8,128], index: 7, kind: input, shape index: {}]
  %s8 = inlined_call_operand.vmem [shape: f32[32,128], index: 8, kind: input, shape index: {}]
  %s9 = inlined_call_operand.hbm [shape: f32[8,128], index: 9, kind: input, shape index: {}]
  %s10 = inlined_call_operand.vmem [shape: f32[16,128], index: 10, kind: output, shape index: {}]
  %s11 = sld [smem:[#allocation0]]
  $region82: #{forward.1} parent=0
    _
  %s13 = ssub.s32 1, %s11
  %s14 = scalar_select 0, %s13, %s11
  $region1: #{forward.1} parent=0
    #allocation2 [shape = 'u8[32768]{0}', space=vmem, size = 0x8000, scoped, tag = 'input window, operand 1, single buffered']
    #allocation3 [shape = 's32[1]{0}', space=sflag, size = 0x4, scoped, tag = 'scoped memory for forward.1']
    #allocation4 [shape = 'u8[8192]{0}', space=vmem, size = 0x2000, scoped, tag = 'input window, operand 2, single buffered']
    #allocation5 [shape = 's32[1]{0}', space=sflag, size = 0x4, scoped, tag = 'scoped memory for forward.1']
    #allocation6 [shape = 'u8[32768]{0}', space=vmem, size = 0x8000, scoped, tag = 'input window, operand 3, single buffered']
    #allocation7 [shape = 'u8[32768]{0}', space=vmem, size = 0x8000, scoped, tag = 'input window, operand 4, single buffered']
    #allocation8 [shape = 's32[1]{0}', space=sflag, size = 0x4, scoped, tag = 'scoped memory for forward.1']
    #allocation9 [shape = 'u8[32768]{0}', space=vmem, size = 0x8000, scoped, tag = 'input window, operand 5, single buffered']
    #allocation10 [shape = 'u8[65536]{0}', space=vmem, size = 0x10000, scoped, tag = 'input window, operand 6, single buffered']
    #allocation11 [shape = 's32[1]{0}', space=sflag, size = 0x4, scoped, tag = 'scoped memory for forward.1']
    #allocation12 [shape = 'u8[8192]{0}', space=vmem, size = 0x2000, scoped, tag = 'input window, operand 7, single buffered']
    #allocation13 [shape = 'u8[4096]{0}', space=vmem, size = 0x1000, scoped, tag = 'input window, operand 9, single buffered']
    #allocation14 [shape = 's32[1]{0}', space=sflag, size = 0x4, scoped, tag = 'scoped memory for forward.1']
    %15 = vsyncpa [#allocation3], 0
    %16 = vsyncpa [#allocation5], 0
    %17 = vsyncpa [#allocation8], 0
    %18 = vsyncpa [#allocation11], 0
    %19 = vsyncpa [#allocation14], 0
    // Predicated region
    $region2: #{forward.1} parent=1 // pred_check
      _
    $region3: #{forward.1} parent=1 // pred_check_branch
      %21 = sbr.rel (0) target = $region5
    $region4: #{forward.1} parent=1 // pred_region
      _
    $region5: #{forward.1} parent=1 // pred_fallthru
      _
    // Predicated region
    $region6: #{forward.1} parent=1 // pred_check
      _
    $region7: #{forward.1} parent=1 // pred_check_branch
      %23 = sbr.rel (0) target = $region9
    $region8: #{forward.1} parent=1 // pred_region
      %s25 = ssub.s32 1024, 1024
      %26 = vsyncadd [#allocation3], %s25
      %s27 = sshll.u32 [#allocation2], 4
      %s28 = int_to_ptr.vmem [resolvable:$true] %s27
      %33 = dma.hbm_to_vmem [thread:$0]  %s1, 1024, %s28, [#allocation3], 128, 128, 8
    $region9: #{forward.1} parent=1 // pred_fallthru
      _
    // Predicated region
    $region10: #{forward.1} parent=1 // pred_check
      _
    $region11: #{forward.1} parent=1 // pred_check_branch
      %35 = sbr.rel (0) target = $region13
    $region12: #{forward.1} parent=1 // pred_region
      %s37 = ssub.s32 256, 256
      %38 = vsyncadd [#allocation5], %s37
      %s39 = sshll.u32 [#allocation4], 4
      %s40 = int_to_ptr.vmem [resolvable:$true] %s39
      %45 = dma.hbm_to_vmem [thread:$0]  %s2, 256, %s40, [#allocation5], 128, 128, 8
    $region13: #{forward.1} parent=1 // pred_fallthru
      _
    // Predicated region
    $region14: #{forward.1} parent=1 // pred_check
      _
    $region15: #{forward.1} parent=1 // pred_check_branch
      %47 = sbr.rel (0) target = $region17
    $region16: #{forward.1} parent=1 // pred_region
      %s49 = ssub.s32 1024, 1024
      %50 = vsyncadd [#allocation5], %s49
      %s51 = sshll.u32 [#allocation6], 4
      %s52 = int_to_ptr.vmem [resolvable:$true] %s51
      %57 = dma.hbm_to_vmem [thread:$0]  %s3, 1024, %s52, [#allocation5], 128, 128, 8
    $region17: #{forward.1} parent=1 // pred_fallthru
      _
    // Predicated region
    $region18: #{forward.1} parent=1 // pred_check
      _
    $region19: #{forward.1} parent=1 // pred_check_branch
      %59 = sbr.rel (0) target = $region21
    $region20: #{forward.1} parent=1 // pred_region
      %s61 = ssub.s32 1024, 1024
      %62 = vsyncadd [#allocation8], %s61
      %s63 = sshll.u32 [#allocation7], 4
      %s64 = int_to_ptr.vmem [resolvable:$true] %s63
      %69 = dma.hbm_to_vmem [thread:$0]  %s4, 1024, %s64, [#allocation8], 128, 128, 8
    $region21: #{forward.1} parent=1 // pred_fallthru
      _
    // Predicated region
    $region22: #{forward.1} parent=1 // pred_check
      _
    $region23: #{forward.1} parent=1 // pred_check_branch
      %71 = sbr.rel (0) target = $region25
    $region24: #{forward.1} parent=1 // pred_region
      %s73 = ssub.s32 1024, 1024
      %74 = vsyncadd [#allocation8], %s73
      %s75 = sshll.u32 [#allocation9], 4
      %s76 = int_to_ptr.vmem [resolvable:$true] %s75
      %81 = dma.hbm_to_vmem [thread:$0]  %s5, 1024, %s76, [#allocation8], 128, 128, 8
    $region25: #{forward.1} parent=1 // pred_fallthru
      _
    // Predicated region
    $region26: #{forward.1} parent=1 // pred_check
      _
    $region27: #{forward.1} parent=1 // pred_check_branch
      %83 = sbr.rel (0) target = $region29
    $region28: #{forward.1} parent=1 // pred_region
      %s85 = ssub.s32 2048, 2048
      %86 = vsyncadd [#allocation11], %s85
      %s87 = sshll.u32 [#allocation10], 4
      %s88 = int_to_ptr.vmem [resolvable:$true] %s87
      %93 = dma.hbm_to_vmem [thread:$0]  %s6, 2048, %s88, [#allocation11], 128, 128, 8
    $region29: #{forward.1} parent=1 // pred_fallthru
      _
    // Predicated region
    $region30: #{forward.1} parent=1 // pred_check
      _
    $region31: #{forward.1} parent=1 // pred_check_branch
      %95 = sbr.rel (0) target = $region33
    $region32: #{forward.1} parent=1 // pred_region
      %s97 = ssub.s32 256, 256
      %98 = vsyncadd [#allocation11], %s97
      %s99 = sshll.u32 [#allocation12], 4
      %s100 = int_to_ptr.vmem [resolvable:$true] %s99
      %105 = dma.hbm_to_vmem [thread:$0]  %s7, 256, %s100, [#allocation11], 128, 128, 8
    $region33: #{forward.1} parent=1 // pred_fallthru
      _
    // Predicated region
    $region34: #{forward.1} parent=1 // pred_check
      _
    $region35: #{forward.1} parent=1 // pred_check_branch
      %107 = sbr.rel (0) target = $region37
    $region36: #{forward.1} parent=1 // pred_region
      _
    $region37: #{forward.1} parent=1 // pred_fallthru
      _
    // Predicated region
    $region38: #{forward.1} parent=1 // pred_check
      _
    $region39: #{forward.1} parent=1 // pred_check_branch
      %109 = sbr.rel (0) target = $region41
    $region40: #{forward.1} parent=1 // pred_region
      %s111 = ssub.s32 128, 128
      %112 = vsyncadd [#allocation14], %s111
      %s114 = sshll.u32 [#allocation13], 4
      %s115 = int_to_ptr.vmem [resolvable:$true] %s114
      %117 = dma.hbm_to_vmem [thread:$0]  %s9, 128, %s115, [#allocation14]
    $region41: #{forward.1} parent=1 // pred_fallthru
      _
    // Predicated region
    $region42: #{forward.1} parent=1 // pred_check
      _
    $region43: #{forward.1} parent=1 // pred_check_branch
      %119 = sbr.rel (0) target = $region45
    $region44: #{forward.1} parent=1 // pred_region
      %120 = dma.done [#allocation3], 1024
    $region45: #{forward.1} parent=1 // pred_fallthru
      _
    // Predicated region
    $region46: #{forward.1} parent=1 // pred_check
      _
    $region47: #{forward.1} parent=1 // pred_check_branch
      %122 = sbr.rel (0) target = $region49
    $region48: #{forward.1} parent=1 // pred_region
      %123 = dma.done [#allocation5], 256
    $region49: #{forward.1} parent=1 // pred_fallthru
      _
    // Predicated region
    $region50: #{forward.1} parent=1 // pred_check
      _
    $region51: #{forward.1} parent=1 // pred_check_branch
      %125 = sbr.rel (0) target = $region53
    $region52: #{forward.1} parent=1 // pred_region
      %126 = dma.done [#allocation5], 1024
    $region53: #{forward.1} parent=1 // pred_fallthru
      _
    // Predicated region
    $region54: #{forward.1} parent=1 // pred_check
      _
    $region55: #{forward.1} parent=1 // pred_check_branch
      %128 = sbr.rel (0) target = $region57
    $region56: #{forward.1} parent=1 // pred_region
      %129 = dma.done [#allocation8], 1024
    $region57: #{forward.1} parent=1 // pred_fallthru
      _
    // Predicated region
    $region58: #{forward.1} parent=1 // pred_check
      _
    $region59: #{forward.1} parent=1 // pred_check_branch
      %131 = sbr.rel (0) target = $region61
    $region60: #{forward.1} parent=1 // pred_region
      %132 = dma.done [#allocation8], 1024
    $region61: #{forward.1} parent=1 // pred_fallthru
      _
    // Predicated region
    $region62: #{forward.1} parent=1 // pred_check
      _
    $region63: #{forward.1} parent=1 // pred_check_branch
      %134 = sbr.rel (0) target = $region65
    $region64: #{forward.1} parent=1 // pred_region
      %135 = dma.done [#allocation11], 2048
    $region65: #{forward.1} parent=1 // pred_fallthru
      _
    // Predicated region
    $region66: #{forward.1} parent=1 // pred_check
      _
    $region67: #{forward.1} parent=1 // pred_check_branch
      %137 = sbr.rel (0) target = $region69
    $region68: #{forward.1} parent=1 // pred_region
      %138 = dma.done [#allocation11], 256
    $region69: #{forward.1} parent=1 // pred_fallthru
      _
    // Predicated region
    $region70: #{forward.1} parent=1 // pred_check
      _
    $region71: #{forward.1} parent=1 // pred_check_branch
      %140 = sbr.rel (0) target = $region73
    $region72: #{forward.1} parent=1 // pred_region
      %141 = dma.done [#allocation14], 128
    $region73: #{forward.1} parent=1 // pred_fallthru
      _
    %v142 = vld [vmem:[%s0] sm:$0xff]
    %v143 = vld [vmem:[%s0 + $0x8] sm:$0xff]
    %v144 = vlaneseq
    %v145 = vand.u32 %v144, 127
    %146 = vset.pattern.permute.xlu0 0
    %147 = vperm.xlu0 %146, %v142
    %v148 = vpop.permute.xlu0 %147
    %149 = vset.pattern.permute.xlu0 0
    %150 = vperm.xlu0 %149, %v143
    %v151 = vpop.permute.xlu0 %150
    %vm152 = vcmp.eq.s32.totalorder %v148, %v145
    %vm153 = vcmp.eq.s32.totalorder %v151, %v145
    %v154 = vsel %vm152, 1, 0
    %v155 = vsel %vm153, 1, 0
    %v156 = vcvt.s32.f32 %v154
    %v157 = vcvt.s32.f32 %v155
    %v158 = vld [vmem:[#allocation2] sm:$0xff]
    %v159 = vld [vmem:[#allocation2 + $0x8] sm:$0xff]
    %v160 = vld [vmem:[#allocation2 + $0x10] sm:$0xff]
    %v161 = vld [vmem:[#allocation2 + $0x18] sm:$0xff]
    %v162 = vld [vmem:[#allocation2 + $0x20] sm:$0xff]
    %v163 = vld [vmem:[#allocation2 + $0x28] sm:$0xff]
    %v164 = vld [vmem:[#allocation2 + $0x30] sm:$0xff]
    %v165 = vld [vmem:[#allocation2 + $0x38] sm:$0xff]
    %v166 = vld [vmem:[#allocation4] sm:$0xff]
    %v167 = vld [vmem:[#allocation4 + $0x8] sm:$0xff]
    %vm168 = vcmask 523264
    %v170 = vsel %vm168, %v156, 0
    %v173 = vsel %vm168, %v157, 0
    %175 = vmatprep.subr.mxu0 0.0
    %176 = vmatpush1.msra.mxu0 0.0
    %177 = vmatprep.subr.mxu0 0.0
    %178 = vmatpush1.msra.mxu0 0.0
    %179 = vmatprep.subr.mxu0 0.0
    %180 = vmatpush1.msra.mxu0 0.0
    %181 = vmatprep.subr.mxu0 0.0
    %182 = vmatpush1.msra.mxu0 0.0
    %183 = vmatprep.subr.mxu0 0.0
    %184 = vmatpush1.msra.mxu0 0.0
    %185 = vmatprep.subr.mxu0 0.0
    %186 = vmatpush1.msra.mxu0 0.0
    %187 = vmatprep.subr.mxu0 0.0
    %188 = vmatpush1.msra.mxu0 0.0
    %189 = vmatprep.subr.mxu0 0.0
    %190 = vmatpush1.msra.mxu0 0.0
    %191 = vmatprep.subr.mxu0 0.0
    %192 = vmatpush1.msra.mxu0 %v165
    %193 = vmatprep.subr.mxu0 0.0
    %194 = vmatpush1.msra.mxu0 %v164
    %195 = vmatprep.subr.mxu0 0.0
    %196 = vmatpush1.msra.mxu0 %v163
    %197 = vmatprep.subr.mxu0 0.0
    %198 = vmatpush1.msra.mxu0 %v162
    %199 = vmatprep.subr.mxu0 0.0
    %200 = vmatpush1.msra.mxu0 %v161
    %201 = vmatprep.subr.mxu0 0.0
    %202 = vmatpush1.msra.mxu0 %v160
    %203 = vmatprep.subr.mxu0 0.0
    %204 = vmatpush1.msra.mxu0 %v159
    %205 = vmatprep.subr.mxu0 0.0
    %206 = vmatpush1.msra.mxu0 %v158
    %207 = vmatprep.subr.mxu0 0.0
    %208 = vmatpush2.msra.mxu0 0.0
    %209 = vmatprep.subr.mxu0 0.0
    %210 = vmatpush2.msra.mxu0 0.0
    %211 = vmatprep.subr.mxu0 0.0
    %212 = vmatpush2.msra.mxu0 0.0
    %213 = vmatprep.subr.mxu0 0.0
    %214 = vmatpush2.msra.mxu0 0.0
    %215 = vmatprep.subr.mxu0 0.0
    %216 = vmatpush2.msra.mxu0 0.0
    %217 = vmatprep.subr.mxu0 0.0
    %218 = vmatpush2.msra.mxu0 0.0
    %219 = vmatprep.subr.mxu0 0.0
    %220 = vmatpush2.msra.mxu0 0.0
    %221 = vmatprep.subr.mxu0 0.0
    %222 = vmatpush2.msra.mxu0 0.0
    %223 = vmatprep.subr.mxu0 0.0
    %224 = vmatpush2.msra.mxu0 0.0
    %225 = vmatprep.subr.mxu0 0.0
    %226 = vmatpush2.msra.mxu0 0.0
    %227 = vmatprep.subr.mxu0 0.0
    %228 = vmatpush2.msra.mxu0 0.0
    %229 = vmatprep.subr.mxu0 0.0
    %230 = vmatpush2.msra.mxu0 0.0
    %231 = vmatprep.subr.mxu0 0.0
    %232 = vmatpush2.msra.mxu0 0.0
    %233 = vmatprep.subr.mxu0 0.0
    %234 = vmatpush2.msra.mxu0 0.0
    %235 = vmatprep.subr.mxu0 0.0
    %236 = vmatpush2.msra.mxu0 0.0
    %237 = vmatprep.subr.mxu0 0.0
    %238 = vmatpush2.msra.mxu0 0.0
    %239 = vmatprep.mubr.f32.mxu0 0.0
    %240 = vmatmul.mubr.f32.gmra.mxu0 %v170
    %v241 = vpop.f32.mrf.mxu0
    %v242 = vadd.f32 %v166, %v241
    %v243 = vpop.f32.mrf.mxu0
    %244 = vmatprep.mubr.f32.mxu0 0.0
    %245 = vmatmul.mubr.f32.gmra.mxu0 %v173
    %v246 = vpop.f32.mrf.mxu0
    %v247 = vadd.f32 %v167, %v246
    %v248 = vpop.f32.mrf.mxu0
    %249 = vdwg.mxu0
    %v250 = vld [vmem:[#allocation12] sm:$0xff]
    %v251 = vld [vmem:[#allocation6] sm:$0xff]
    %v252 = vld [vmem:[#allocation6 + $0x8] sm:$0xff]
    %v253 = vld [vmem:[#allocation6 + $0x10] sm:$0xff]
    %v254 = vld [vmem:[#allocation6 + $0x18] sm:$0xff]
    %v255 = vlaneseq
    %v256 = vshrl.u32 %v255, 7
    %v257 = vsub.s32 0, %v256
    %v258 = vrot.slane %v250, %v257
    %vm259 = vcmask 261120
    %v261 = vsel %vm259, %v242, 0
    %v264 = vsel %vm259, %v247, 0
    %266 = vmatprep.subr.mxu0 0.0
    %267 = vmatpush1.msra.mxu0 0.0
    %268 = vmatprep.subr.mxu0 0.0
    %269 = vmatpush1.msra.mxu0 0.0
    %270 = vmatprep.subr.mxu0 0.0
    %271 = vmatpush1.msra.mxu0 0.0
    %272 = vmatprep.subr.mxu0 0.0
    %273 = vmatpush1.msra.mxu0 0.0
    %274 = vmatprep.subr.mxu0 0.0
    %275 = vmatpush1.msra.mxu0 0.0
    %276 = vmatprep.subr.mxu0 0.0
    %277 = vmatpush1.msra.mxu0 0.0
    %278 = vmatprep.subr.mxu0 0.0
    %279 = vmatpush1.msra.mxu0 0.0
    %280 = vmatprep.subr.mxu0 0.0
    %281 = vmatpush1.msra.mxu0 0.0
    %282 = vmatprep.subr.mxu0 0.0
    %283 = vmatpush1.msra.mxu0 0.0
    %284 = vmatprep.subr.mxu0 0.0
    %285 = vmatpush1.msra.mxu0 0.0
    %286 = vmatprep.subr.mxu0 0.0
    %287 = vmatpush1.msra.mxu0 0.0
    %288 = vmatprep.subr.mxu0 0.0
    %289 = vmatpush1.msra.mxu0 0.0
    %290 = vmatprep.subr.mxu0 0.0
    %291 = vmatpush1.msra.mxu0 %v254
    %292 = vmatprep.subr.mxu0 0.0
    %293 = vmatpush1.msra.mxu0 %v253
    %294 = vmatprep.subr.mxu0 0.0
    %295 = vmatpush1.msra.mxu0 %v252
    %296 = vmatprep.subr.mxu0 0.0
    %297 = vmatpush1.msra.mxu0 %v251
    %298 = vmatprep.subr.mxu0 0.0
    %299 = vmatpush2.msra.mxu0 0.0
    %300 = vmatprep.subr.mxu0 0.0
    %301 = vmatpush2.msra.mxu0 0.0
    %302 = vmatprep.subr.mxu0 0.0
    %303 = vmatpush2.msra.mxu0 0.0
    %304 = vmatprep.subr.mxu0 0.0
    %305 = vmatpush2.msra.mxu0 0.0
    %306 = vmatprep.subr.mxu0 0.0
    %307 = vmatpush2.msra.mxu0 0.0
    %308 = vmatprep.subr.mxu0 0.0
    %309 = vmatpush2.msra.mxu0 0.0
    %310 = vmatprep.subr.mxu0 0.0
    %311 = vmatpush2.msra.mxu0 0.0
    %312 = vmatprep.subr.mxu0 0.0
    %313 = vmatpush2.msra.mxu0 0.0
    %314 = vmatprep.subr.mxu0 0.0
    %315 = vmatpush2.msra.mxu0 0.0
    %316 = vmatprep.subr.mxu0 0.0
    %317 = vmatpush2.msra.mxu0 0.0
    %318 = vmatprep.subr.mxu0 0.0
    %319 = vmatpush2.msra.mxu0 0.0
    %320 = vmatprep.subr.mxu0 0.0
    %321 = vmatpush2.msra.mxu0 0.0
    %322 = vmatprep.subr.mxu0 0.0
    %323 = vmatpush2.msra.mxu0 0.0
    %324 = vmatprep.subr.mxu0 0.0
    %325 = vmatpush2.msra.mxu0 0.0
    %326 = vmatprep.subr.mxu0 0.0
    %327 = vmatpush2.msra.mxu0 0.0
    %328 = vmatprep.subr.mxu0 0.0
    %329 = vmatpush2.msra.mxu0 0.0
    %330 = vmatprep.mubr.f32.mxu0 0.0
    %331 = vmatmul.mubr.f32.gmra.mxu0 %v261
    %v332 = vpop.f32.mrf.mxu0
    %v333 = vadd.f32 %v258, %v332
    %v334 = vpop.f32.mrf.mxu0
    %335 = vmatprep.mubr.f32.mxu0 0.0
    %336 = vmatmul.mubr.f32.gmra.mxu0 %v264
    %v337 = vpop.f32.mrf.mxu0
    %v338 = vadd.f32 %v258, %v337
    %v339 = vpop.f32.mrf.mxu0
    %340 = vdwg.mxu0
    %342 = vrot.lane.b32.xlu0 %v333, 96
    %v343 = vpop.permute.xlu0 %342
    %vm344 = vcmask 64512
    %v345 = vsel %vm344, %v333, 0
    %v347 = vsel %vm344, %v343, 0
    %349 = vmatprep.subr.mxu0 0.0
    %350 = vmatpush1.xpose.msra.mxu0 0.0
    %351 = vmatprep.subr.mxu0 0.0
    %352 = vmatpush1.xpose.msra.mxu0 0.0
    %353 = vmatprep.subr.mxu0 0.0
    %354 = vmatpush1.xpose.msra.mxu0 0.0
    %355 = vmatprep.subr.mxu0 0.0
    %356 = vmatpush1.xpose.msra.mxu0 0.0
    %357 = vmatprep.subr.mxu0 0.0
    %358 = vmatpush1.xpose.msra.mxu0 0.0
    %359 = vmatprep.subr.mxu0 0.0
    %360 = vmatpush1.xpose.msra.mxu0 0.0
    %361 = vmatprep.subr.mxu0 0.0
    %362 = vmatpush1.xpose.msra.mxu0 0.0
    %363 = vmatprep.subr.mxu0 0.0
    %364 = vmatpush1.xpose.msra.mxu0 0.0
    %365 = vmatprep.subr.mxu0 0.0
    %366 = vmatpush1.xpose.msra.mxu0 0.0
    %367 = vmatprep.subr.mxu0 0.0
    %368 = vmatpush1.xpose.msra.mxu0 0.0
    %369 = vmatprep.subr.mxu0 0.0
    %370 = vmatpush1.xpose.msra.mxu0 0.0
    %371 = vmatprep.subr.mxu0 0.0
    %372 = vmatpush1.xpose.msra.mxu0 0.0
    %373 = vmatprep.subr.mxu0 0.0
    %374 = vmatpush1.xpose.msra.mxu0 0.0
    %375 = vmatprep.subr.mxu0 0.0
    %376 = vmatpush1.xpose.msra.mxu0 0.0
    %377 = vmatprep.subr.mxu0 0.0
    %378 = vmatpush1.xpose.msra.mxu0 0.0
    %379 = vmatprep.subr.mxu0 0.0
    %380 = vmatpush1.xpose.msra.mxu0 %v347
    %381 = vmatprep.subr.mxu0 0.0
    %382 = vmatpush2.xpose.msra.mxu0 0.0
    %383 = vmatprep.subr.mxu0 0.0
    %384 = vmatpush2.xpose.msra.mxu0 0.0
    %385 = vmatprep.subr.mxu0 0.0
    %386 = vmatpush2.xpose.msra.mxu0 0.0
    %387 = vmatprep.subr.mxu0 0.0
    %388 = vmatpush2.xpose.msra.mxu0 0.0
    %389 = vmatprep.subr.mxu0 0.0
    %390 = vmatpush2.xpose.msra.mxu0 0.0
    %391 = vmatprep.subr.mxu0 0.0
    %392 = vmatpush2.xpose.msra.mxu0 0.0
    %393 = vmatprep.subr.mxu0 0.0
    %394 = vmatpush2.xpose.msra.mxu0 0.0
    %395 = vmatprep.subr.mxu0 0.0
    %396 = vmatpush2.xpose.msra.mxu0 0.0
    %397 = vmatprep.subr.mxu0 0.0
    %398 = vmatpush2.xpose.msra.mxu0 0.0
    %399 = vmatprep.subr.mxu0 0.0
    %400 = vmatpush2.xpose.msra.mxu0 0.0
    %401 = vmatprep.subr.mxu0 0.0
    %402 = vmatpush2.xpose.msra.mxu0 0.0
    %403 = vmatprep.subr.mxu0 0.0
    %404 = vmatpush2.xpose.msra.mxu0 0.0
    %405 = vmatprep.subr.mxu0 0.0
    %406 = vmatpush2.xpose.msra.mxu0 0.0
    %407 = vmatprep.subr.mxu0 0.0
    %408 = vmatpush2.xpose.msra.mxu0 0.0
    %409 = vmatprep.subr.mxu0 0.0
    %410 = vmatpush2.xpose.msra.mxu0 0.0
    %411 = vmatprep.subr.mxu0 0.0
    %412 = vmatpush2.xpose.msra.mxu0 0.0
    %413 = vmatprep.mubr.f32.mxu0 0.0
    %414 = vmatmul.mubr.f32.gmra.mxu0 %v345
    %v415 = vpop.f32.mrf.mxu0
    %v416 = vadd.f32 0.0, %v415
    %v417 = vpop.f32.mrf.mxu0
    %418 = vdwg.mxu0
    %419 = vrot.lane.b32.xlu0 %v333, 120
    %v420 = vpop.permute.xlu0 %419
    %421 = vrot.lane.b32.xlu0 %v333, 88
    %v422 = vpop.permute.xlu0 %421
    %v423 = vsel %vm344, %v420, 0
    %v425 = vsel %vm344, %v422, 0
    %427 = vmatprep.subr.mxu0 0.0
    %428 = vmatpush1.xpose.msra.mxu0 0.0
    %429 = vmatprep.subr.mxu0 0.0
    %430 = vmatpush1.xpose.msra.mxu0 0.0
    %431 = vmatprep.subr.mxu0 0.0
    %432 = vmatpush1.xpose.msra.mxu0 0.0
    %433 = vmatprep.subr.mxu0 0.0
    %434 = vmatpush1.xpose.msra.mxu0 0.0
    %435 = vmatprep.subr.mxu0 0.0
    %436 = vmatpush1.xpose.msra.mxu0 0.0
    %437 = vmatprep.subr.mxu0 0.0
    %438 = vmatpush1.xpose.msra.mxu0 0.0
    %439 = vmatprep.subr.mxu0 0.0
    %440 = vmatpush1.xpose.msra.mxu0 0.0
    %441 = vmatprep.subr.mxu0 0.0
    %442 = vmatpush1.xpose.msra.mxu0 0.0
    %443 = vmatprep.subr.mxu0 0.0
    %444 = vmatpush1.xpose.msra.mxu0 0.0
    %445 = vmatprep.subr.mxu0 0.0
    %446 = vmatpush1.xpose.msra.mxu0 0.0
    %447 = vmatprep.subr.mxu0 0.0
    %448 = vmatpush1.xpose.msra.mxu0 0.0
    %449 = vmatprep.subr.mxu0 0.0
    %450 = vmatpush1.xpose.msra.mxu0 0.0
    %451 = vmatprep.subr.mxu0 0.0
    %452 = vmatpush1.xpose.msra.mxu0 0.0
    %453 = vmatprep.subr.mxu0 0.0
    %454 = vmatpush1.xpose.msra.mxu0 0.0
    %455 = vmatprep.subr.mxu0 0.0
    %456 = vmatpush1.xpose.msra.mxu0 0.0
    %457 = vmatprep.subr.mxu0 0.0
    %458 = vmatpush1.xpose.msra.mxu0 %v425
    %459 = vmatprep.subr.mxu0 0.0
    %460 = vmatpush2.xpose.msra.mxu0 0.0
    %461 = vmatprep.subr.mxu0 0.0
    %462 = vmatpush2.xpose.msra.mxu0 0.0
    %463 = vmatprep.subr.mxu0 0.0
    %464 = vmatpush2.xpose.msra.mxu0 0.0
    %465 = vmatprep.subr.mxu0 0.0
    %466 = vmatpush2.xpose.msra.mxu0 0.0
    %467 = vmatprep.subr.mxu0 0.0
    %468 = vmatpush2.xpose.msra.mxu0 0.0
    %469 = vmatprep.subr.mxu0 0.0
    %470 = vmatpush2.xpose.msra.mxu0 0.0
    %471 = vmatprep.subr.mxu0 0.0
    %472 = vmatpush2.xpose.msra.mxu0 0.0
    %473 = vmatprep.subr.mxu0 0.0
    %474 = vmatpush2.xpose.msra.mxu0 0.0
    %475 = vmatprep.subr.mxu0 0.0
    %476 = vmatpush2.xpose.msra.mxu0 0.0
    %477 = vmatprep.subr.mxu0 0.0
    %478 = vmatpush2.xpose.msra.mxu0 0.0
    %479 = vmatprep.subr.mxu0 0.0
    %480 = vmatpush2.xpose.msra.mxu0 0.0
    %481 = vmatprep.subr.mxu0 0.0
    %482 = vmatpush2.xpose.msra.mxu0 0.0
    %483 = vmatprep.subr.mxu0 0.0
    %484 = vmatpush2.xpose.msra.mxu0 0.0
    %485 = vmatprep.subr.mxu0 0.0
    %486 = vmatpush2.xpose.msra.mxu0 0.0
    %487 = vmatprep.subr.mxu0 0.0
    %488 = vmatpush2.xpose.msra.mxu0 0.0
    %489 = vmatprep.subr.mxu0 0.0
    %490 = vmatpush2.xpose.msra.mxu0 0.0
    %491 = vmatprep.mubr.f32.mxu0 0.0
    %492 = vmatmul.mubr.f32.gmra.mxu0 %v423
    %v493 = vpop.f32.mrf.mxu0
    %v494 = vadd.f32 0.0, %v493
    %v495 = vpop.f32.mrf.mxu0
    %496 = vdwg.mxu0
    %497 = vrot.lane.b32.xlu0 %v333, 112
    %v498 = vpop.permute.xlu0 %497
    %499 = vrot.lane.b32.xlu0 %v333, 80
    %v500 = vpop.permute.xlu0 %499
    %v501 = vsel %vm344, %v498, 0
    %v503 = vsel %vm344, %v500, 0
    %505 = vmatprep.subr.mxu0 0.0
    %506 = vmatpush1.xpose.msra.mxu0 0.0
    %507 = vmatprep.subr.mxu0 0.0
    %508 = vmatpush1.xpose.msra.mxu0 0.0
    %509 = vmatprep.subr.mxu0 0.0
    %510 = vmatpush1.xpose.msra.mxu0 0.0
    %511 = vmatprep.subr.mxu0 0.0
    %512 = vmatpush1.xpose.msra.mxu0 0.0
    %513 = vmatprep.subr.mxu0 0.0
    %514 = vmatpush1.xpose.msra.mxu0 0.0
    %515 = vmatprep.subr.mxu0 0.0
    %516 = vmatpush1.xpose.msra.mxu0 0.0
    %517 = vmatprep.subr.mxu0 0.0
    %518 = vmatpush1.xpose.msra.mxu0 0.0
    %519 = vmatprep.subr.mxu0 0.0
    %520 = vmatpush1.xpose.msra.mxu0 0.0
    %521 = vmatprep.subr.mxu0 0.0
    %522 = vmatpush1.xpose.msra.mxu0 0.0
    %523 = vmatprep.subr.mxu0 0.0
    %524 = vmatpush1.xpose.msra.mxu0 0.0
    %525 = vmatprep.subr.mxu0 0.0
    %526 = vmatpush1.xpose.msra.mxu0 0.0
    %527 = vmatprep.subr.mxu0 0.0
    %528 = vmatpush1.xpose.msra.mxu0 0.0
    %529 = vmatprep.subr.mxu0 0.0
    %530 = vmatpush1.xpose.msra.mxu0 0.0
    %531 = vmatprep.subr.mxu0 0.0
    %532 = vmatpush1.xpose.msra.mxu0 0.0
    %533 = vmatprep.subr.mxu0 0.0
    %534 = vmatpush1.xpose.msra.mxu0 0.0
    %535 = vmatprep.subr.mxu0 0.0
    %536 = vmatpush1.xpose.msra.mxu0 %v503
    %537 = vmatprep.subr.mxu0 0.0
    %538 = vmatpush2.xpose.msra.mxu0 0.0
    %539 = vmatprep.subr.mxu0 0.0
    %540 = vmatpush2.xpose.msra.mxu0 0.0
    %541 = vmatprep.subr.mxu0 0.0
    %542 = vmatpush2.xpose.msra.mxu0 0.0
    %543 = vmatprep.subr.mxu0 0.0
    %544 = vmatpush2.xpose.msra.mxu0 0.0
    %545 = vmatprep.subr.mxu0 0.0
    %546 = vmatpush2.xpose.msra.mxu0 0.0
    %547 = vmatprep.subr.mxu0 0.0
    %548 = vmatpush2.xpose.msra.mxu0 0.0
    %549 = vmatprep.subr.mxu0 0.0
    %550 = vmatpush2.xpose.msra.mxu0 0.0
    %551 = vmatprep.subr.mxu0 0.0
    %552 = vmatpush2.xpose.msra.mxu0 0.0
    %553 = vmatprep.subr.mxu0 0.0
    %554 = vmatpush2.xpose.msra.mxu0 0.0
    %555 = vmatprep.subr.mxu0 0.0
    %556 = vmatpush2.xpose.msra.mxu0 0.0
    %557 = vmatprep.subr.mxu0 0.0
    %558 = vmatpush2.xpose.msra.mxu0 0.0
    %559 = vmatprep.subr.mxu0 0.0
    %560 = vmatpush2.xpose.msra.mxu0 0.0
    %561 = vmatprep.subr.mxu0 0.0
    %562 = vmatpush2.xpose.msra.mxu0 0.0
    %563 = vmatprep.subr.mxu0 0.0
    %564 = vmatpush2.xpose.msra.mxu0 0.0
    %565 = vmatprep.subr.mxu0 0.0
    %566 = vmatpush2.xpose.msra.mxu0 0.0
    %567 = vmatprep.subr.mxu0 0.0
    %568 = vmatpush2.xpose.msra.mxu0 0.0
    %569 = vmatprep.mubr.f32.mxu0 0.0
    %570 = vmatmul.mubr.f32.gmra.mxu0 %v501
    %v571 = vpop.f32.mrf.mxu0
    %v572 = vadd.f32 0.0, %v571
    %v573 = vpop.f32.mrf.mxu0
    %574 = vdwg.mxu0
    %575 = vrot.lane.b32.xlu0 %v333, 104
    %v576 = vpop.permute.xlu0 %575
    %577 = vrot.lane.b32.xlu0 %v333, 72
    %v578 = vpop.permute.xlu0 %577
    %v579 = vsel %vm344, %v576, 0
    %v581 = vsel %vm344, %v578, 0
    %583 = vmatprep.subr.mxu0 0.0
    %584 = vmatpush1.xpose.msra.mxu0 0.0
    %585 = vmatprep.subr.mxu0 0.0
    %586 = vmatpush1.xpose.msra.mxu0 0.0
    %587 = vmatprep.subr.mxu0 0.0
    %588 = vmatpush1.xpose.msra.mxu0 0.0
    %589 = vmatprep.subr.mxu0 0.0
    %590 = vmatpush1.xpose.msra.mxu0 0.0
    %591 = vmatprep.subr.mxu0 0.0
    %592 = vmatpush1.xpose.msra.mxu0 0.0
    %593 = vmatprep.subr.mxu0 0.0
    %594 = vmatpush1.xpose.msra.mxu0 0.0
    %595 = vmatprep.subr.mxu0 0.0
    %596 = vmatpush1.xpose.msra.mxu0 0.0
    %597 = vmatprep.subr.mxu0 0.0
    %598 = vmatpush1.xpose.msra.mxu0 0.0
    %599 = vmatprep.subr.mxu0 0.0
    %600 = vmatpush1.xpose.msra.mxu0 0.0
    %601 = vmatprep.subr.mxu0 0.0
    %602 = vmatpush1.xpose.msra.mxu0 0.0
    %603 = vmatprep.subr.mxu0 0.0
    %604 = vmatpush1.xpose.msra.mxu0 0.0
    %605 = vmatprep.subr.mxu0 0.0
    %606 = vmatpush1.xpose.msra.mxu0 0.0
    %607 = vmatprep.subr.mxu0 0.0
    %608 = vmatpush1.xpose.msra.mxu0 0.0
    %609 = vmatprep.subr.mxu0 0.0
    %610 = vmatpush1.xpose.msra.mxu0 0.0
    %611 = vmatprep.subr.mxu0 0.0
    %612 = vmatpush1.xpose.msra.mxu0 0.0
    %613 = vmatprep.subr.mxu0 0.0
    %614 = vmatpush1.xpose.msra.mxu0 %v581
    %615 = vmatprep.subr.mxu0 0.0
    %616 = vmatpush2.xpose.msra.mxu0 0.0
    %617 = vmatprep.subr.mxu0 0.0
    %618 = vmatpush2.xpose.msra.mxu0 0.0
    %619 = vmatprep.subr.mxu0 0.0
    %620 = vmatpush2.xpose.msra.mxu0 0.0
    %621 = vmatprep.subr.mxu0 0.0
    %622 = vmatpush2.xpose.msra.mxu0 0.0
    %623 = vmatprep.subr.mxu0 0.0
    %624 = vmatpush2.xpose.msra.mxu0 0.0
    %625 = vmatprep.subr.mxu0 0.0
    %626 = vmatpush2.xpose.msra.mxu0 0.0
    %627 = vmatprep.subr.mxu0 0.0
    %628 = vmatpush2.xpose.msra.mxu0 0.0
    %629 = vmatprep.subr.mxu0 0.0
    %630 = vmatpush2.xpose.msra.mxu0 0.0
    %631 = vmatprep.subr.mxu0 0.0
    %632 = vmatpush2.xpose.msra.mxu0 0.0
    %633 = vmatprep.subr.mxu0 0.0
    %634 = vmatpush2.xpose.msra.mxu0 0.0
    %635 = vmatprep.subr.mxu0 0.0
    %636 = vmatpush2.xpose.msra.mxu0 0.0
    %637 = vmatprep.subr.mxu0 0.0
    %638 = vmatpush2.xpose.msra.mxu0 0.0
    %639 = vmatprep.subr.mxu0 0.0
    %640 = vmatpush2.xpose.msra.mxu0 0.0
    %641 = vmatprep.subr.mxu0 0.0
    %642 = vmatpush2.xpose.msra.mxu0 0.0
    %643 = vmatprep.subr.mxu0 0.0
    %644 = vmatpush2.xpose.msra.mxu0 0.0
    %645 = vmatprep.subr.mxu0 0.0
    %646 = vmatpush2.xpose.msra.mxu0 0.0
    %647 = vmatprep.mubr.f32.mxu0 0.0
    %648 = vmatmul.mubr.f32.gmra.mxu0 %v579
    %v649 = vpop.f32.mrf.mxu0
    %v650 = vadd.f32 0.0, %v649
    %v651 = vpop.f32.mrf.mxu0
    %652 = vdwg.mxu0
    %654 = vrot.lane.b32.xlu0 %v338, 96
    %v655 = vpop.permute.xlu0 %654
    %v656 = vsel %vm344, %v338, 0
    %v658 = vsel %vm344, %v655, 0
    %660 = vmatprep.subr.mxu0 0.0
    %661 = vmatpush1.xpose.msra.mxu0 0.0
    %662 = vmatprep.subr.mxu0 0.0
    %663 = vmatpush1.xpose.msra.mxu0 0.0
    %664 = vmatprep.subr.mxu0 0.0
    %665 = vmatpush1.xpose.msra.mxu0 0.0
    %666 = vmatprep.subr.mxu0 0.0
    %667 = vmatpush1.xpose.msra.mxu0 0.0
    %668 = vmatprep.subr.mxu0 0.0
    %669 = vmatpush1.xpose.msra.mxu0 0.0
    %670 = vmatprep.subr.mxu0 0.0
    %671 = vmatpush1.xpose.msra.mxu0 0.0
    %672 = vmatprep.subr.mxu0 0.0
    %673 = vmatpush1.xpose.msra.mxu0 0.0
    %674 = vmatprep.subr.mxu0 0.0
    %675 = vmatpush1.xpose.msra.mxu0 0.0
    %676 = vmatprep.subr.mxu0 0.0
    %677 = vmatpush1.xpose.msra.mxu0 0.0
    %678 = vmatprep.subr.mxu0 0.0
    %679 = vmatpush1.xpose.msra.mxu0 0.0
    %680 = vmatprep.subr.mxu0 0.0
    %681 = vmatpush1.xpose.msra.mxu0 0.0
    %682 = vmatprep.subr.mxu0 0.0
    %683 = vmatpush1.xpose.msra.mxu0 0.0
    %684 = vmatprep.subr.mxu0 0.0
    %685 = vmatpush1.xpose.msra.mxu0 0.0
    %686 = vmatprep.subr.mxu0 0.0
    %687 = vmatpush1.xpose.msra.mxu0 0.0
    %688 = vmatprep.subr.mxu0 0.0
    %689 = vmatpush1.xpose.msra.mxu0 0.0
    %690 = vmatprep.subr.mxu0 0.0
    %691 = vmatpush1.xpose.msra.mxu0 %v658
    %692 = vmatprep.subr.mxu0 0.0
    %693 = vmatpush2.xpose.msra.mxu0 0.0
    %694 = vmatprep.subr.mxu0 0.0
    %695 = vmatpush2.xpose.msra.mxu0 0.0
    %696 = vmatprep.subr.mxu0 0.0
    %697 = vmatpush2.xpose.msra.mxu0 0.0
    %698 = vmatprep.subr.mxu0 0.0
    %699 = vmatpush2.xpose.msra.mxu0 0.0
    %700 = vmatprep.subr.mxu0 0.0
    %701 = vmatpush2.xpose.msra.mxu0 0.0
    %702 = vmatprep.subr.mxu0 0.0
    %703 = vmatpush2.xpose.msra.mxu0 0.0
    %704 = vmatprep.subr.mxu0 0.0
    %705 = vmatpush2.xpose.msra.mxu0 0.0
    %706 = vmatprep.subr.mxu0 0.0
    %707 = vmatpush2.xpose.msra.mxu0 0.0
    %708 = vmatprep.subr.mxu0 0.0
    %709 = vmatpush2.xpose.msra.mxu0 0.0
    %710 = vmatprep.subr.mxu0 0.0
    %711 = vmatpush2.xpose.msra.mxu0 0.0
    %712 = vmatprep.subr.mxu0 0.0
    %713 = vmatpush2.xpose.msra.mxu0 0.0
    %714 = vmatprep.subr.mxu0 0.0
    %715 = vmatpush2.xpose.msra.mxu0 0.0
    %716 = vmatprep.subr.mxu0 0.0
    %717 = vmatpush2.xpose.msra.mxu0 0.0
    %718 = vmatprep.subr.mxu0 0.0
    %719 = vmatpush2.xpose.msra.mxu0 0.0
    %720 = vmatprep.subr.mxu0 0.0
    %721 = vmatpush2.xpose.msra.mxu0 0.0
    %722 = vmatprep.subr.mxu0 0.0
    %723 = vmatpush2.xpose.msra.mxu0 0.0
    %724 = vmatprep.mubr.f32.mxu0 0.0
    %725 = vmatmul.mubr.f32.gmra.mxu0 %v656
    %v726 = vpop.f32.mrf.mxu0
    %v727 = vadd.f32 0.0, %v726
    %v728 = vpop.f32.mrf.mxu0
    %729 = vdwg.mxu0
    %730 = vrot.lane.b32.xlu0 %v338, 120
    %v731 = vpop.permute.xlu0 %730
    %732 = vrot.lane.b32.xlu0 %v338, 88
    %v733 = vpop.permute.xlu0 %732
    %v734 = vsel %vm344, %v731, 0
    %v736 = vsel %vm344, %v733, 0
    %738 = vmatprep.subr.mxu0 0.0
    %739 = vmatpush1.xpose.msra.mxu0 0.0
    %740 = vmatprep.subr.mxu0 0.0
    %741 = vmatpush1.xpose.msra.mxu0 0.0
    %742 = vmatprep.subr.mxu0 0.0
    %743 = vmatpush1.xpose.msra.mxu0 0.0
    %744 = vmatprep.subr.mxu0 0.0
    %745 = vmatpush1.xpose.msra.mxu0 0.0
    %746 = vmatprep.subr.mxu0 0.0
    %747 = vmatpush1.xpose.msra.mxu0 0.0
    %748 = vmatprep.subr.mxu0 0.0
    %749 = vmatpush1.xpose.msra.mxu0 0.0
    %750 = vmatprep.subr.mxu0 0.0
    %751 = vmatpush1.xpose.msra.mxu0 0.0
    %752 = vmatprep.subr.mxu0 0.0
    %753 = vmatpush1.xpose.msra.mxu0 0.0
    %754 = vmatprep.subr.mxu0 0.0
    %755 = vmatpush1.xpose.msra.mxu0 0.0
    %756 = vmatprep.subr.mxu0 0.0
    %757 = vmatpush1.xpose.msra.mxu0 0.0
    %758 = vmatprep.subr.mxu0 0.0
    %759 = vmatpush1.xpose.msra.mxu0 0.0
    %760 = vmatprep.subr.mxu0 0.0
    %761 = vmatpush1.xpose.msra.mxu0 0.0
    %762 = vmatprep.subr.mxu0 0.0
    %763 = vmatpush1.xpose.msra.mxu0 0.0
    %764 = vmatprep.subr.mxu0 0.0
    %765 = vmatpush1.xpose.msra.mxu0 0.0
    %766 = vmatprep.subr.mxu0 0.0
    %767 = vmatpush1.xpose.msra.mxu0 0.0
    %768 = vmatprep.subr.mxu0 0.0
    %769 = vmatpush1.xpose.msra.mxu0 %v736
    %770 = vmatprep.subr.mxu0 0.0
    %771 = vmatpush2.xpose.msra.mxu0 0.0
    %772 = vmatprep.subr.mxu0 0.0
    %773 = vmatpush2.xpose.msra.mxu0 0.0
    %774 = vmatprep.subr.mxu0 0.0
    %775 = vmatpush2.xpose.msra.mxu0 0.0
    %776 = vmatprep.subr.mxu0 0.0
    %777 = vmatpush2.xpose.msra.mxu0 0.0
    %778 = vmatprep.subr.mxu0 0.0
    %779 = vmatpush2.xpose.msra.mxu0 0.0
    %780 = vmatprep.subr.mxu0 0.0
    %781 = vmatpush2.xpose.msra.mxu0 0.0
    %782 = vmatprep.subr.mxu0 0.0
    %783 = vmatpush2.xpose.msra.mxu0 0.0
    %784 = vmatprep.subr.mxu0 0.0
    %785 = vmatpush2.xpose.msra.mxu0 0.0
    %786 = vmatprep.subr.mxu0 0.0
    %787 = vmatpush2.xpose.msra.mxu0 0.0
    %788 = vmatprep.subr.mxu0 0.0
    %789 = vmatpush2.xpose.msra.mxu0 0.0
    %790 = vmatprep.subr.mxu0 0.0
    %791 = vmatpush2.xpose.msra.mxu0 0.0
    %792 = vmatprep.subr.mxu0 0.0
    %793 = vmatpush2.xpose.msra.mxu0 0.0
    %794 = vmatprep.subr.mxu0 0.0
    %795 = vmatpush2.xpose.msra.mxu0 0.0
    %796 = vmatprep.subr.mxu0 0.0
    %797 = vmatpush2.xpose.msra.mxu0 0.0
    %798 = vmatprep.subr.mxu0 0.0
    %799 = vmatpush2.xpose.msra.mxu0 0.0
    %800 = vmatprep.subr.mxu0 0.0
    %801 = vmatpush2.xpose.msra.mxu0 0.0
    %802 = vmatprep.mubr.f32.mxu0 0.0
    %803 = vmatmul.mubr.f32.gmra.mxu0 %v734
    %v804 = vpop.f32.mrf.mxu0
    %v805 = vadd.f32 0.0, %v804
    %v806 = vpop.f32.mrf.mxu0
    %807 = vdwg.mxu0
    %808 = vrot.lane.b32.xlu0 %v338, 112
    %v809 = vpop.permute.xlu0 %808
    %810 = vrot.lane.b32.xlu0 %v338, 80
    %v811 = vpop.permute.xlu0 %810
    %v812 = vsel %vm344, %v809, 0
    %v814 = vsel %vm344, %v811, 0
    %816 = vmatprep.subr.mxu0 0.0
    %817 = vmatpush1.xpose.msra.mxu0 0.0
    %818 = vmatprep.subr.mxu0 0.0
    %819 = vmatpush1.xpose.msra.mxu0 0.0
    %820 = vmatprep.subr.mxu0 0.0
    %821 = vmatpush1.xpose.msra.mxu0 0.0
    %822 = vmatprep.subr.mxu0 0.0
    %823 = vmatpush1.xpose.msra.mxu0 0.0
    %824 = vmatprep.subr.mxu0 0.0
    %825 = vmatpush1.xpose.msra.mxu0 0.0
    %826 = vmatprep.subr.mxu0 0.0
    %827 = vmatpush1.xpose.msra.mxu0 0.0
    %828 = vmatprep.subr.mxu0 0.0
    %829 = vmatpush1.xpose.msra.mxu0 0.0
    %830 = vmatprep.subr.mxu0 0.0
    %831 = vmatpush1.xpose.msra.mxu0 0.0
    %832 = vmatprep.subr.mxu0 0.0
    %833 = vmatpush1.xpose.msra.mxu0 0.0
    %834 = vmatprep.subr.mxu0 0.0
    %835 = vmatpush1.xpose.msra.mxu0 0.0
    %836 = vmatprep.subr.mxu0 0.0
    %837 = vmatpush1.xpose.msra.mxu0 0.0
    %838 = vmatprep.subr.mxu0 0.0
    %839 = vmatpush1.xpose.msra.mxu0 0.0
    %840 = vmatprep.subr.mxu0 0.0
    %841 = vmatpush1.xpose.msra.mxu0 0.0
    %842 = vmatprep.subr.mxu0 0.0
    %843 = vmatpush1.xpose.msra.mxu0 0.0
    %844 = vmatprep.subr.mxu0 0.0
    %845 = vmatpush1.xpose.msra.mxu0 0.0
    %846 = vmatprep.subr.mxu0 0.0
    %847 = vmatpush1.xpose.msra.mxu0 %v814
    %848 = vmatprep.subr.mxu0 0.0
    %849 = vmatpush2.xpose.msra.mxu0 0.0
    %850 = vmatprep.subr.mxu0 0.0
    %851 = vmatpush2.xpose.msra.mxu0 0.0
    %852 = vmatprep.subr.mxu0 0.0
    %853 = vmatpush2.xpose.msra.mxu0 0.0
    %854 = vmatprep.subr.mxu0 0.0
    %855 = vmatpush2.xpose.msra.mxu0 0.0
    %856 = vmatprep.subr.mxu0 0.0
    %857 = vmatpush2.xpose.msra.mxu0 0.0
    %858 = vmatprep.subr.mxu0 0.0
    %859 = vmatpush2.xpose.msra.mxu0 0.0
    %860 = vmatprep.subr.mxu0 0.0
    %861 = vmatpush2.xpose.msra.mxu0 0.0
    %862 = vmatprep.subr.mxu0 0.0
    %863 = vmatpush2.xpose.msra.mxu0 0.0
    %864 = vmatprep.subr.mxu0 0.0
    %865 = vmatpush2.xpose.msra.mxu0 0.0
    %866 = vmatprep.subr.mxu0 0.0
    %867 = vmatpush2.xpose.msra.mxu0 0.0
    %868 = vmatprep.subr.mxu0 0.0
    %869 = vmatpush2.xpose.msra.mxu0 0.0
    %870 = vmatprep.subr.mxu0 0.0
    %871 = vmatpush2.xpose.msra.mxu0 0.0
    %872 = vmatprep.subr.mxu0 0.0
    %873 = vmatpush2.xpose.msra.mxu0 0.0
    %874 = vmatprep.subr.mxu0 0.0
    %875 = vmatpush2.xpose.msra.mxu0 0.0
    %876 = vmatprep.subr.mxu0 0.0
    %877 = vmatpush2.xpose.msra.mxu0 0.0
    %878 = vmatprep.subr.mxu0 0.0
    %879 = vmatpush2.xpose.msra.mxu0 0.0
    %880 = vmatprep.mubr.f32.mxu0 0.0
    %881 = vmatmul.mubr.f32.gmra.mxu0 %v812
    %v882 = vpop.f32.mrf.mxu0
    %v883 = vadd.f32 0.0, %v882
    %v884 = vpop.f32.mrf.mxu0
    %885 = vdwg.mxu0
    %886 = vrot.lane.b32.xlu0 %v338, 104
    %v887 = vpop.permute.xlu0 %886
    %888 = vrot.lane.b32.xlu0 %v338, 72
    %v889 = vpop.permute.xlu0 %888
    %v890 = vsel %vm344, %v887, 0
    %v892 = vsel %vm344, %v889, 0
    %894 = vmatprep.subr.mxu0 0.0
    %895 = vmatpush1.xpose.msra.mxu0 0.0
    %896 = vmatprep.subr.mxu0 0.0
    %897 = vmatpush1.xpose.msra.mxu0 0.0
    %898 = vmatprep.subr.mxu0 0.0
    %899 = vmatpush1.xpose.msra.mxu0 0.0
    %900 = vmatprep.subr.mxu0 0.0
    %901 = vmatpush1.xpose.msra.mxu0 0.0
    %902 = vmatprep.subr.mxu0 0.0
    %903 = vmatpush1.xpose.msra.mxu0 0.0
    %904 = vmatprep.subr.mxu0 0.0
    %905 = vmatpush1.xpose.msra.mxu0 0.0
    %906 = vmatprep.subr.mxu0 0.0
    %907 = vmatpush1.xpose.msra.mxu0 0.0
    %908 = vmatprep.subr.mxu0 0.0
    %909 = vmatpush1.xpose.msra.mxu0 0.0
    %910 = vmatprep.subr.mxu0 0.0
    %911 = vmatpush1.xpose.msra.mxu0 0.0
    %912 = vmatprep.subr.mxu0 0.0
    %913 = vmatpush1.xpose.msra.mxu0 0.0
    %914 = vmatprep.subr.mxu0 0.0
    %915 = vmatpush1.xpose.msra.mxu0 0.0
    %916 = vmatprep.subr.mxu0 0.0
    %917 = vmatpush1.xpose.msra.mxu0 0.0
    %918 = vmatprep.subr.mxu0 0.0
    %919 = vmatpush1.xpose.msra.mxu0 0.0
    %920 = vmatprep.subr.mxu0 0.0
    %921 = vmatpush1.xpose.msra.mxu0 0.0
    %922 = vmatprep.subr.mxu0 0.0
    %923 = vmatpush1.xpose.msra.mxu0 0.0
    %924 = vmatprep.subr.mxu0 0.0
    %925 = vmatpush1.xpose.msra.mxu0 %v892
    %926 = vmatprep.subr.mxu0 0.0
    %927 = vmatpush2.xpose.msra.mxu0 0.0
    %928 = vmatprep.subr.mxu0 0.0
    %929 = vmatpush2.xpose.msra.mxu0 0.0
    %930 = vmatprep.subr.mxu0 0.0
    %931 = vmatpush2.xpose.msra.mxu0 0.0
    %932 = vmatprep.subr.mxu0 0.0
    %933 = vmatpush2.xpose.msra.mxu0 0.0
    %934 = vmatprep.subr.mxu0 0.0
    %935 = vmatpush2.xpose.msra.mxu0 0.0
    %936 = vmatprep.subr.mxu0 0.0
    %937 = vmatpush2.xpose.msra.mxu0 0.0
    %938 = vmatprep.subr.mxu0 0.0
    %939 = vmatpush2.xpose.msra.mxu0 0.0
    %940 = vmatprep.subr.mxu0 0.0
    %941 = vmatpush2.xpose.msra.mxu0 0.0
    %942 = vmatprep.subr.mxu0 0.0
    %943 = vmatpush2.xpose.msra.mxu0 0.0
    %944 = vmatprep.subr.mxu0 0.0
    %945 = vmatpush2.xpose.msra.mxu0 0.0
    %946 = vmatprep.subr.mxu0 0.0
    %947 = vmatpush2.xpose.msra.mxu0 0.0
    %948 = vmatprep.subr.mxu0 0.0
    %949 = vmatpush2.xpose.msra.mxu0 0.0
    %950 = vmatprep.subr.mxu0 0.0
    %951 = vmatpush2.xpose.msra.mxu0 0.0
    %952 = vmatprep.subr.mxu0 0.0
    %953 = vmatpush2.xpose.msra.mxu0 0.0
    %954 = vmatprep.subr.mxu0 0.0
    %955 = vmatpush2.xpose.msra.mxu0 0.0
    %956 = vmatprep.subr.mxu0 0.0
    %957 = vmatpush2.xpose.msra.mxu0 0.0
    %958 = vmatprep.mubr.f32.mxu0 0.0
    %959 = vmatmul.mubr.f32.gmra.mxu0 %v890
    %v960 = vpop.f32.mrf.mxu0
    %v961 = vadd.f32 0.0, %v960
    %v962 = vpop.f32.mrf.mxu0
    %963 = vdwg.mxu0
    %v964 = vsel %vm344, %v416, -inf
    %965 = vmax.xlane.f32.xlu0 %v964
    %v966 = vpop.xlane.xlu0 %965
    %v967 = vsel %vm344, %v494, -inf
    %968 = vmax.xlane.f32.xlu0 %v967
    %v969 = vpop.xlane.xlu0 %968
    %v970 = vsel %vm344, %v572, -inf
    %971 = vmax.xlane.f32.xlu0 %v970
    %v972 = vpop.xlane.xlu0 %971
    %v973 = vsel %vm344, %v650, -inf
    %974 = vmax.xlane.f32.xlu0 %v973
    %v975 = vpop.xlane.xlu0 %974
    %v976 = vsel %vm344, %v727, -inf
    %977 = vmax.xlane.f32.xlu0 %v976
    %v978 = vpop.xlane.xlu0 %977
    %v979 = vsel %vm344, %v805, -inf
    %980 = vmax.xlane.f32.xlu0 %v979
    %v981 = vpop.xlane.xlu0 %980
    %v982 = vsel %vm344, %v883, -inf
    %983 = vmax.xlane.f32.xlu0 %v982
    %v984 = vpop.xlane.xlu0 %983
    %v985 = vsel %vm344, %v961, -inf
    %986 = vmax.xlane.f32.xlu0 %v985
    %v987 = vpop.xlane.xlu0 %986
    %v988 = vsub.f32 %v416, %v966
    %v989 = vsub.f32 %v494, %v969
    %v990 = vsub.f32 %v572, %v972
    %v991 = vsub.f32 %v650, %v975
    %v992 = vsub.f32 %v727, %v978
    %v993 = vsub.f32 %v805, %v981
    %v994 = vsub.f32 %v883, %v984
    %v995 = vsub.f32 %v961, %v987
    %v996 = vmul.f32 %v988, 1.442695
    %v997 = vpow.pop %v996
    %v998 = vmul.f32 %v989, 1.442695
    %v999 = vpow.pop %v998
    %v1000 = vmul.f32 %v990, 1.442695
    %v1001 = vpow.pop %v1000
    %v1002 = vmul.f32 %v991, 1.442695
    %v1003 = vpow.pop %v1002
    %v1004 = vmul.f32 %v992, 1.442695
    %v1005 = vpow.pop %v1004
    %v1006 = vmul.f32 %v993, 1.442695
    %v1007 = vpow.pop %v1006
    %v1008 = vmul.f32 %v994, 1.442695
    %v1009 = vpow.pop %v1008
    %v1010 = vmul.f32 %v995, 1.442695
    %v1011 = vpow.pop %v1010
    %v1012 = vsel %vm344, %v997, 0.0
    %1013 = vadd.xlane.f32.xlu0 %v1012
    %v1014 = vpop.xlane.xlu0 %1013
    %v1015 = vsel %vm344, %v999, 0.0
    %1016 = vadd.xlane.f32.xlu0 %v1015
    %v1017 = vpop.xlane.xlu0 %1016
    %v1018 = vsel %vm344, %v1001, 0.0
    %1019 = vadd.xlane.f32.xlu0 %v1018
    %v1020 = vpop.xlane.xlu0 %1019
    %v1021 = vsel %vm344, %v1003, 0.0
    %1022 = vadd.xlane.f32.xlu0 %v1021
    %v1023 = vpop.xlane.xlu0 %1022
    %v1024 = vsel %vm344, %v1005, 0.0
    %1025 = vadd.xlane.f32.xlu0 %v1024
    %v1026 = vpop.xlane.xlu0 %1025
    %v1027 = vsel %vm344, %v1007, 0.0
    %1028 = vadd.xlane.f32.xlu0 %v1027
    %v1029 = vpop.xlane.xlu0 %1028
    %v1030 = vsel %vm344, %v1009, 0.0
    %1031 = vadd.xlane.f32.xlu0 %v1030
    %v1032 = vpop.xlane.xlu0 %1031
    %v1033 = vsel %vm344, %v1011, 0.0
    %1034 = vadd.xlane.f32.xlu0 %v1033
    %v1035 = vpop.xlane.xlu0 %1034
    %v1036 = vrcp.pop %v1014
    %v1037 = vrcp.pop %v1017
    %v1038 = vrcp.pop %v1020
    %v1039 = vrcp.pop %v1023
    %v1040 = vrcp.pop %v1026
    %v1041 = vrcp.pop %v1029
    %v1042 = vrcp.pop %v1032
    %v1043 = vrcp.pop %v1035
    %v1044 = vmul.f32 %v997, %v1036
    %v1045 = vmul.f32 %v999, %v1037
    %v1046 = vmul.f32 %v1001, %v1038
    %v1047 = vmul.f32 %v1003, %v1039
    %v1048 = vmul.f32 %v1005, %v1040
    %v1049 = vmul.f32 %v1007, %v1041
    %v1050 = vmul.f32 %v1009, %v1042
    %v1051 = vmul.f32 %v1011, %v1043
    %1052 = vrot.lane.b32.xlu0 %v333, 64
    %v1053 = vpop.permute.xlu0 %1052
    %v1056 = vsel %vm344, %v1044, 0
    %1058 = vmatprep.subr.mxu0 0.0
    %1059 = vmatpush1.msra.mxu0 0.0
    %1060 = vmatprep.subr.mxu0 0.0
    %1061 = vmatpush1.msra.mxu0 0.0
    %1062 = vmatprep.subr.mxu0 0.0
    %1063 = vmatpush1.msra.mxu0 0.0
    %1064 = vmatprep.subr.mxu0 0.0
    %1065 = vmatpush1.msra.mxu0 0.0
    %1066 = vmatprep.subr.mxu0 0.0
    %1067 = vmatpush1.msra.mxu0 0.0
    %1068 = vmatprep.subr.mxu0 0.0
    %1069 = vmatpush1.msra.mxu0 0.0
    %1070 = vmatprep.subr.mxu0 0.0
    %1071 = vmatpush1.msra.mxu0 0.0
    %1072 = vmatprep.subr.mxu0 0.0
    %1073 = vmatpush1.msra.mxu0 0.0
    %1074 = vmatprep.subr.mxu0 0.0
    %1075 = vmatpush1.msra.mxu0 0.0
    %1076 = vmatprep.subr.mxu0 0.0
    %1077 = vmatpush1.msra.mxu0 0.0
    %1078 = vmatprep.subr.mxu0 0.0
    %1079 = vmatpush1.msra.mxu0 0.0
    %1080 = vmatprep.subr.mxu0 0.0
    %1081 = vmatpush1.msra.mxu0 0.0
    %1082 = vmatprep.subr.mxu0 0.0
    %1083 = vmatpush1.msra.mxu0 0.0
    %1084 = vmatprep.subr.mxu0 0.0
    %1085 = vmatpush1.msra.mxu0 0.0
    %1086 = vmatprep.subr.mxu0 0.0
    %1087 = vmatpush1.msra.mxu0 0.0
    %1088 = vmatprep.subr.mxu0 0.0
    %1089 = vmatpush1.msra.mxu0 %v1053
    %1090 = vmatprep.subr.mxu0 0.0
    %1091 = vmatpush2.msra.mxu0 0.0
    %1092 = vmatprep.subr.mxu0 0.0
    %1093 = vmatpush2.msra.mxu0 0.0
    %1094 = vmatprep.subr.mxu0 0.0
    %1095 = vmatpush2.msra.mxu0 0.0
    %1096 = vmatprep.subr.mxu0 0.0
    %1097 = vmatpush2.msra.mxu0 0.0
    %1098 = vmatprep.subr.mxu0 0.0
    %1099 = vmatpush2.msra.mxu0 0.0
    %1100 = vmatprep.subr.mxu0 0.0
    %1101 = vmatpush2.msra.mxu0 0.0
    %1102 = vmatprep.subr.mxu0 0.0
    %1103 = vmatpush2.msra.mxu0 0.0
    %1104 = vmatprep.subr.mxu0 0.0
    %1105 = vmatpush2.msra.mxu0 0.0
    %1106 = vmatprep.subr.mxu0 0.0
    %1107 = vmatpush2.msra.mxu0 0.0
    %1108 = vmatprep.subr.mxu0 0.0
    %1109 = vmatpush2.msra.mxu0 0.0
    %1110 = vmatprep.subr.mxu0 0.0
    %1111 = vmatpush2.msra.mxu0 0.0
    %1112 = vmatprep.subr.mxu0 0.0
    %1113 = vmatpush2.msra.mxu0 0.0
    %1114 = vmatprep.subr.mxu0 0.0
    %1115 = vmatpush2.msra.mxu0 0.0
    %1116 = vmatprep.subr.mxu0 0.0
    %1117 = vmatpush2.msra.mxu0 0.0
    %1118 = vmatprep.subr.mxu0 0.0
    %1119 = vmatpush2.msra.mxu0 0.0
    %1120 = vmatprep.subr.mxu0 0.0
    %1121 = vmatpush2.msra.mxu0 0.0
    %1122 = vmatprep.mubr.f32.mxu0 0.0
    %1123 = vmatmul.mubr.f32.gmra.mxu0 %v1056
    %v1124 = vpop.f32.mrf.mxu0
    %v1125 = vadd.f32 0.0, %v1124
    %v1126 = vpop.f32.mrf.mxu0
    %1127 = vdwg.mxu0
    %1128 = vrot.lane.b32.xlu0 %v333, 56
    %v1129 = vpop.permute.xlu0 %1128
    %v1132 = vsel %vm344, %v1045, 0
    %1134 = vmatprep.subr.mxu0 0.0
    %1135 = vmatpush1.msra.mxu0 0.0
    %1136 = vmatprep.subr.mxu0 0.0
    %1137 = vmatpush1.msra.mxu0 0.0
    %1138 = vmatprep.subr.mxu0 0.0
    %1139 = vmatpush1.msra.mxu0 0.0
    %1140 = vmatprep.subr.mxu0 0.0
    %1141 = vmatpush1.msra.mxu0 0.0
    %1142 = vmatprep.subr.mxu0 0.0
    %1143 = vmatpush1.msra.mxu0 0.0
    %1144 = vmatprep.subr.mxu0 0.0
    %1145 = vmatpush1.msra.mxu0 0.0
    %1146 = vmatprep.subr.mxu0 0.0
    %1147 = vmatpush1.msra.mxu0 0.0
    %1148 = vmatprep.subr.mxu0 0.0
    %1149 = vmatpush1.msra.mxu0 0.0
    %1150 = vmatprep.subr.mxu0 0.0
    %1151 = vmatpush1.msra.mxu0 0.0
    %1152 = vmatprep.subr.mxu0 0.0
    %1153 = vmatpush1.msra.mxu0 0.0
    %1154 = vmatprep.subr.mxu0 0.0
    %1155 = vmatpush1.msra.mxu0 0.0
    %1156 = vmatprep.subr.mxu0 0.0
    %1157 = vmatpush1.msra.mxu0 0.0
    %1158 = vmatprep.subr.mxu0 0.0
    %1159 = vmatpush1.msra.mxu0 0.0
    %1160 = vmatprep.subr.mxu0 0.0
    %1161 = vmatpush1.msra.mxu0 0.0
    %1162 = vmatprep.subr.mxu0 0.0
    %1163 = vmatpush1.msra.mxu0 0.0
    %1164 = vmatprep.subr.mxu0 0.0
    %1165 = vmatpush1.msra.mxu0 %v1129
    %1166 = vmatprep.subr.mxu0 0.0
    %1167 = vmatpush2.msra.mxu0 0.0
    %1168 = vmatprep.subr.mxu0 0.0
    %1169 = vmatpush2.msra.mxu0 0.0
    %1170 = vmatprep.subr.mxu0 0.0
    %1171 = vmatpush2.msra.mxu0 0.0
    %1172 = vmatprep.subr.mxu0 0.0
    %1173 = vmatpush2.msra.mxu0 0.0
    %1174 = vmatprep.subr.mxu0 0.0
    %1175 = vmatpush2.msra.mxu0 0.0
    %1176 = vmatprep.subr.mxu0 0.0
    %1177 = vmatpush2.msra.mxu0 0.0
    %1178 = vmatprep.subr.mxu0 0.0
    %1179 = vmatpush2.msra.mxu0 0.0
    %1180 = vmatprep.subr.mxu0 0.0
    %1181 = vmatpush2.msra.mxu0 0.0
    %1182 = vmatprep.subr.mxu0 0.0
    %1183 = vmatpush2.msra.mxu0 0.0
    %1184 = vmatprep.subr.mxu0 0.0
    %1185 = vmatpush2.msra.mxu0 0.0
    %1186 = vmatprep.subr.mxu0 0.0
    %1187 = vmatpush2.msra.mxu0 0.0
    %1188 = vmatprep.subr.mxu0 0.0
    %1189 = vmatpush2.msra.mxu0 0.0
    %1190 = vmatprep.subr.mxu0 0.0
    %1191 = vmatpush2.msra.mxu0 0.0
    %1192 = vmatprep.subr.mxu0 0.0
    %1193 = vmatpush2.msra.mxu0 0.0
    %1194 = vmatprep.subr.mxu0 0.0
    %1195 = vmatpush2.msra.mxu0 0.0
    %1196 = vmatprep.subr.mxu0 0.0
    %1197 = vmatpush2.msra.mxu0 0.0
    %1198 = vmatprep.mubr.f32.mxu0 0.0
    %1199 = vmatmul.mubr.f32.gmra.mxu0 %v1132
    %v1200 = vpop.f32.mrf.mxu0
    %v1201 = vadd.f32 0.0, %v1200
    %v1202 = vpop.f32.mrf.mxu0
    %1203 = vdwg.mxu0
    %1204 = vrot.lane.b32.xlu0 %v333, 48
    %v1205 = vpop.permute.xlu0 %1204
    %v1208 = vsel %vm344, %v1046, 0
    %1210 = vmatprep.subr.mxu0 0.0
    %1211 = vmatpush1.msra.mxu0 0.0
    %1212 = vmatprep.subr.mxu0 0.0
    %1213 = vmatpush1.msra.mxu0 0.0
    %1214 = vmatprep.subr.mxu0 0.0
    %1215 = vmatpush1.msra.mxu0 0.0
    %1216 = vmatprep.subr.mxu0 0.0
    %1217 = vmatpush1.msra.mxu0 0.0
    %1218 = vmatprep.subr.mxu0 0.0
    %1219 = vmatpush1.msra.mxu0 0.0
    %1220 = vmatprep.subr.mxu0 0.0
    %1221 = vmatpush1.msra.mxu0 0.0
    %1222 = vmatprep.subr.mxu0 0.0
    %1223 = vmatpush1.msra.mxu0 0.0
    %1224 = vmatprep.subr.mxu0 0.0
    %1225 = vmatpush1.msra.mxu0 0.0
    %1226 = vmatprep.subr.mxu0 0.0
    %1227 = vmatpush1.msra.mxu0 0.0
    %1228 = vmatprep.subr.mxu0 0.0
    %1229 = vmatpush1.msra.mxu0 0.0
    %1230 = vmatprep.subr.mxu0 0.0
    %1231 = vmatpush1.msra.mxu0 0.0
    %1232 = vmatprep.subr.mxu0 0.0
    %1233 = vmatpush1.msra.mxu0 0.0
    %1234 = vmatprep.subr.mxu0 0.0
    %1235 = vmatpush1.msra.mxu0 0.0
    %1236 = vmatprep.subr.mxu0 0.0
    %1237 = vmatpush1.msra.mxu0 0.0
    %1238 = vmatprep.subr.mxu0 0.0
    %1239 = vmatpush1.msra.mxu0 0.0
    %1240 = vmatprep.subr.mxu0 0.0
    %1241 = vmatpush1.msra.mxu0 %v1205
    %1242 = vmatprep.subr.mxu0 0.0
    %1243 = vmatpush2.msra.mxu0 0.0
    %1244 = vmatprep.subr.mxu0 0.0
    %1245 = vmatpush2.msra.mxu0 0.0
    %1246 = vmatprep.subr.mxu0 0.0
    %1247 = vmatpush2.msra.mxu0 0.0
    %1248 = vmatprep.subr.mxu0 0.0
    %1249 = vmatpush2.msra.mxu0 0.0
    %1250 = vmatprep.subr.mxu0 0.0
    %1251 = vmatpush2.msra.mxu0 0.0
    %1252 = vmatprep.subr.mxu0 0.0
    %1253 = vmatpush2.msra.mxu0 0.0
    %1254 = vmatprep.subr.mxu0 0.0
    %1255 = vmatpush2.msra.mxu0 0.0
    %1256 = vmatprep.subr.mxu0 0.0
    %1257 = vmatpush2.msra.mxu0 0.0
    %1258 = vmatprep.subr.mxu0 0.0
    %1259 = vmatpush2.msra.mxu0 0.0
    %1260 = vmatprep.subr.mxu0 0.0
    %1261 = vmatpush2.msra.mxu0 0.0
    %1262 = vmatprep.subr.mxu0 0.0
    %1263 = vmatpush2.msra.mxu0 0.0
    %1264 = vmatprep.subr.mxu0 0.0
    %1265 = vmatpush2.msra.mxu0 0.0
    %1266 = vmatprep.subr.mxu0 0.0
    %1267 = vmatpush2.msra.mxu0 0.0
    %1268 = vmatprep.subr.mxu0 0.0
    %1269 = vmatpush2.msra.mxu0 0.0
    %1270 = vmatprep.subr.mxu0 0.0
    %1271 = vmatpush2.msra.mxu0 0.0
    %1272 = vmatprep.subr.mxu0 0.0
    %1273 = vmatpush2.msra.mxu0 0.0
    %1274 = vmatprep.mubr.f32.mxu0 0.0
    %1275 = vmatmul.mubr.f32.gmra.mxu0 %v1208
    %v1276 = vpop.f32.mrf.mxu0
    %v1277 = vadd.f32 0.0, %v1276
    %v1278 = vpop.f32.mrf.mxu0
    %1279 = vdwg.mxu0
    %1280 = vrot.lane.b32.xlu0 %v333, 40
    %v1281 = vpop.permute.xlu0 %1280
    %v1284 = vsel %vm344, %v1047, 0
    %1286 = vmatprep.subr.mxu0 0.0
    %1287 = vmatpush1.msra.mxu0 0.0
    %1288 = vmatprep.subr.mxu0 0.0
    %1289 = vmatpush1.msra.mxu0 0.0
    %1290 = vmatprep.subr.mxu0 0.0
    %1291 = vmatpush1.msra.mxu0 0.0
    %1292 = vmatprep.subr.mxu0 0.0
    %1293 = vmatpush1.msra.mxu0 0.0
    %1294 = vmatprep.subr.mxu0 0.0
    %1295 = vmatpush1.msra.mxu0 0.0
    %1296 = vmatprep.subr.mxu0 0.0
    %1297 = vmatpush1.msra.mxu0 0.0
    %1298 = vmatprep.subr.mxu0 0.0
    %1299 = vmatpush1.msra.mxu0 0.0
    %1300 = vmatprep.subr.mxu0 0.0
    %1301 = vmatpush1.msra.mxu0 0.0
    %1302 = vmatprep.subr.mxu0 0.0
    %1303 = vmatpush1.msra.mxu0 0.0
    %1304 = vmatprep.subr.mxu0 0.0
    %1305 = vmatpush1.msra.mxu0 0.0
    %1306 = vmatprep.subr.mxu0 0.0
    %1307 = vmatpush1.msra.mxu0 0.0
    %1308 = vmatprep.subr.mxu0 0.0
    %1309 = vmatpush1.msra.mxu0 0.0
    %1310 = vmatprep.subr.mxu0 0.0
    %1311 = vmatpush1.msra.mxu0 0.0
    %1312 = vmatprep.subr.mxu0 0.0
    %1313 = vmatpush1.msra.mxu0 0.0
    %1314 = vmatprep.subr.mxu0 0.0
    %1315 = vmatpush1.msra.mxu0 0.0
    %1316 = vmatprep.subr.mxu0 0.0
    %1317 = vmatpush1.msra.mxu0 %v1281
    %1318 = vmatprep.subr.mxu0 0.0
    %1319 = vmatpush2.msra.mxu0 0.0
    %1320 = vmatprep.subr.mxu0 0.0
    %1321 = vmatpush2.msra.mxu0 0.0
    %1322 = vmatprep.subr.mxu0 0.0
    %1323 = vmatpush2.msra.mxu0 0.0
    %1324 = vmatprep.subr.mxu0 0.0
    %1325 = vmatpush2.msra.mxu0 0.0
    %1326 = vmatprep.subr.mxu0 0.0
    %1327 = vmatpush2.msra.mxu0 0.0
    %1328 = vmatprep.subr.mxu0 0.0
    %1329 = vmatpush2.msra.mxu0 0.0
    %1330 = vmatprep.subr.mxu0 0.0
    %1331 = vmatpush2.msra.mxu0 0.0
    %1332 = vmatprep.subr.mxu0 0.0
    %1333 = vmatpush2.msra.mxu0 0.0
    %1334 = vmatprep.subr.mxu0 0.0
    %1335 = vmatpush2.msra.mxu0 0.0
    %1336 = vmatprep.subr.mxu0 0.0
    %1337 = vmatpush2.msra.mxu0 0.0
    %1338 = vmatprep.subr.mxu0 0.0
    %1339 = vmatpush2.msra.mxu0 0.0
    %1340 = vmatprep.subr.mxu0 0.0
    %1341 = vmatpush2.msra.mxu0 0.0
    %1342 = vmatprep.subr.mxu0 0.0
    %1343 = vmatpush2.msra.mxu0 0.0
    %1344 = vmatprep.subr.mxu0 0.0
    %1345 = vmatpush2.msra.mxu0 0.0
    %1346 = vmatprep.subr.mxu0 0.0
    %1347 = vmatpush2.msra.mxu0 0.0
    %1348 = vmatprep.subr.mxu0 0.0
    %1349 = vmatpush2.msra.mxu0 0.0
    %1350 = vmatprep.mubr.f32.mxu0 0.0
    %1351 = vmatmul.mubr.f32.gmra.mxu0 %v1284
    %v1352 = vpop.f32.mrf.mxu0
    %v1353 = vadd.f32 0.0, %v1352
    %v1354 = vpop.f32.mrf.mxu0
    %1355 = vdwg.mxu0
    %1357 = vrot.lane.b32.xlu0 %v1201, 8
    %v1358 = vpop.permute.xlu0 %1357
    %1361 = vrot.lane.b32.xlu0 %v1277, 16
    %v1362 = vpop.permute.xlu0 %1361
    %1365 = vrot.lane.b32.xlu0 %v1353, 24
    %v1366 = vpop.permute.xlu0 %1365
    %v1368 = vsel %vm344, %v1125, %v1358
    %vm1369 = vcmask 130048
    %v1370 = vsel %vm1369, %v1368, %v1362
    %vm1371 = vcmask 195584
    %v1372 = vsel %vm1371, %v1370, %v1366
    %1373 = vrot.lane.b32.xlu0 %v338, 64
    %v1374 = vpop.permute.xlu0 %1373
    %v1377 = vsel %vm344, %v1048, 0
    %1379 = vmatprep.subr.mxu0 0.0
    %1380 = vmatpush1.msra.mxu0 0.0
    %1381 = vmatprep.subr.mxu0 0.0
    %1382 = vmatpush1.msra.mxu0 0.0
    %1383 = vmatprep.subr.mxu0 0.0
    %1384 = vmatpush1.msra.mxu0 0.0
    %1385 = vmatprep.subr.mxu0 0.0
    %1386 = vmatpush1.msra.mxu0 0.0
    %1387 = vmatprep.subr.mxu0 0.0
    %1388 = vmatpush1.msra.mxu0 0.0
    %1389 = vmatprep.subr.mxu0 0.0
    %1390 = vmatpush1.msra.mxu0 0.0
    %1391 = vmatprep.subr.mxu0 0.0
    %1392 = vmatpush1.msra.mxu0 0.0
    %1393 = vmatprep.subr.mxu0 0.0
    %1394 = vmatpush1.msra.mxu0 0.0
    %1395 = vmatprep.subr.mxu0 0.0
    %1396 = vmatpush1.msra.mxu0 0.0
    %1397 = vmatprep.subr.mxu0 0.0
    %1398 = vmatpush1.msra.mxu0 0.0
    %1399 = vmatprep.subr.mxu0 0.0
    %1400 = vmatpush1.msra.mxu0 0.0
    %1401 = vmatprep.subr.mxu0 0.0
    %1402 = vmatpush1.msra.mxu0 0.0
    %1403 = vmatprep.subr.mxu0 0.0
    %1404 = vmatpush1.msra.mxu0 0.0
    %1405 = vmatprep.subr.mxu0 0.0
    %1406 = vmatpush1.msra.mxu0 0.0
    %1407 = vmatprep.subr.mxu0 0.0
    %1408 = vmatpush1.msra.mxu0 0.0
    %1409 = vmatprep.subr.mxu0 0.0
    %1410 = vmatpush1.msra.mxu0 %v1374
    %1411 = vmatprep.subr.mxu0 0.0
    %1412 = vmatpush2.msra.mxu0 0.0
    %1413 = vmatprep.subr.mxu0 0.0
    %1414 = vmatpush2.msra.mxu0 0.0
    %1415 = vmatprep.subr.mxu0 0.0
    %1416 = vmatpush2.msra.mxu0 0.0
    %1417 = vmatprep.subr.mxu0 0.0
    %1418 = vmatpush2.msra.mxu0 0.0
    %1419 = vmatprep.subr.mxu0 0.0
    %1420 = vmatpush2.msra.mxu0 0.0
    %1421 = vmatprep.subr.mxu0 0.0
    %1422 = vmatpush2.msra.mxu0 0.0
    %1423 = vmatprep.subr.mxu0 0.0
    %1424 = vmatpush2.msra.mxu0 0.0
    %1425 = vmatprep.subr.mxu0 0.0
    %1426 = vmatpush2.msra.mxu0 0.0
    %1427 = vmatprep.subr.mxu0 0.0
    %1428 = vmatpush2.msra.mxu0 0.0
    %1429 = vmatprep.subr.mxu0 0.0
    %1430 = vmatpush2.msra.mxu0 0.0
    %1431 = vmatprep.subr.mxu0 0.0
    %1432 = vmatpush2.msra.mxu0 0.0
    %1433 = vmatprep.subr.mxu0 0.0
    %1434 = vmatpush2.msra.mxu0 0.0
    %1435 = vmatprep.subr.mxu0 0.0
    %1436 = vmatpush2.msra.mxu0 0.0
    %1437 = vmatprep.subr.mxu0 0.0
    %1438 = vmatpush2.msra.mxu0 0.0
    %1439 = vmatprep.subr.mxu0 0.0
    %1440 = vmatpush2.msra.mxu0 0.0
    %1441 = vmatprep.subr.mxu0 0.0
    %1442 = vmatpush2.msra.mxu0 0.0
    %1443 = vmatprep.mubr.f32.mxu0 0.0
    %1444 = vmatmul.mubr.f32.gmra.mxu0 %v1377
    %v1445 = vpop.f32.mrf.mxu0
    %v1446 = vadd.f32 0.0, %v1445
    %v1447 = vpop.f32.mrf.mxu0
    %1448 = vdwg.mxu0
    %1449 = vrot.lane.b32.xlu0 %v338, 56
    %v1450 = vpop.permute.xlu0 %1449
    %v1453 = vsel %vm344, %v1049, 0
    %1455 = vmatprep.subr.mxu0 0.0
    %1456 = vmatpush1.msra.mxu0 0.0
    %1457 = vmatprep.subr.mxu0 0.0
    %1458 = vmatpush1.msra.mxu0 0.0
    %1459 = vmatprep.subr.mxu0 0.0
    %1460 = vmatpush1.msra.mxu0 0.0
    %1461 = vmatprep.subr.mxu0 0.0
    %1462 = vmatpush1.msra.mxu0 0.0
    %1463 = vmatprep.subr.mxu0 0.0
    %1464 = vmatpush1.msra.mxu0 0.0
    %1465 = vmatprep.subr.mxu0 0.0
    %1466 = vmatpush1.msra.mxu0 0.0
    %1467 = vmatprep.subr.mxu0 0.0
    %1468 = vmatpush1.msra.mxu0 0.0
    %1469 = vmatprep.subr.mxu0 0.0
    %1470 = vmatpush1.msra.mxu0 0.0
    %1471 = vmatprep.subr.mxu0 0.0
    %1472 = vmatpush1.msra.mxu0 0.0
    %1473 = vmatprep.subr.mxu0 0.0
    %1474 = vmatpush1.msra.mxu0 0.0
    %1475 = vmatprep.subr.mxu0 0.0
    %1476 = vmatpush1.msra.mxu0 0.0
    %1477 = vmatprep.subr.mxu0 0.0
    %1478 = vmatpush1.msra.mxu0 0.0
    %1479 = vmatprep.subr.mxu0 0.0
    %1480 = vmatpush1.msra.mxu0 0.0
    %1481 = vmatprep.subr.mxu0 0.0
    %1482 = vmatpush1.msra.mxu0 0.0
    %1483 = vmatprep.subr.mxu0 0.0
    %1484 = vmatpush1.msra.mxu0 0.0
    %1485 = vmatprep.subr.mxu0 0.0
    %1486 = vmatpush1.msra.mxu0 %v1450
    %1487 = vmatprep.subr.mxu0 0.0
    %1488 = vmatpush2.msra.mxu0 0.0
    %1489 = vmatprep.subr.mxu0 0.0
    %1490 = vmatpush2.msra.mxu0 0.0
    %1491 = vmatprep.subr.mxu0 0.0
    %1492 = vmatpush2.msra.mxu0 0.0
    %1493 = vmatprep.subr.mxu0 0.0
    %1494 = vmatpush2.msra.mxu0 0.0
    %1495 = vmatprep.subr.mxu0 0.0
    %1496 = vmatpush2.msra.mxu0 0.0
    %1497 = vmatprep.subr.mxu0 0.0
    %1498 = vmatpush2.msra.mxu0 0.0
    %1499 = vmatprep.subr.mxu0 0.0
    %1500 = vmatpush2.msra.mxu0 0.0
    %1501 = vmatprep.subr.mxu0 0.0
    %1502 = vmatpush2.msra.mxu0 0.0
    %1503 = vmatprep.subr.mxu0 0.0
    %1504 = vmatpush2.msra.mxu0 0.0
    %1505 = vmatprep.subr.mxu0 0.0
    %1506 = vmatpush2.msra.mxu0 0.0
    %1507 = vmatprep.subr.mxu0 0.0
    %1508 = vmatpush2.msra.mxu0 0.0
    %1509 = vmatprep.subr.mxu0 0.0
    %1510 = vmatpush2.msra.mxu0 0.0
    %1511 = vmatprep.subr.mxu0 0.0
    %1512 = vmatpush2.msra.mxu0 0.0
    %1513 = vmatprep.subr.mxu0 0.0
    %1514 = vmatpush2.msra.mxu0 0.0
    %1515 = vmatprep.subr.mxu0 0.0
    %1516 = vmatpush2.msra.mxu0 0.0
    %1517 = vmatprep.subr.mxu0 0.0
    %1518 = vmatpush2.msra.mxu0 0.0
    %1519 = vmatprep.mubr.f32.mxu0 0.0
    %1520 = vmatmul.mubr.f32.gmra.mxu0 %v1453
    %v1521 = vpop.f32.mrf.mxu0
    %v1522 = vadd.f32 0.0, %v1521
    %v1523 = vpop.f32.mrf.mxu0
    %1524 = vdwg.mxu0
    %1525 = vrot.lane.b32.xlu0 %v338, 48
    %v1526 = vpop.permute.xlu0 %1525
    %v1529 = vsel %vm344, %v1050, 0
    %1531 = vmatprep.subr.mxu0 0.0
    %1532 = vmatpush1.msra.mxu0 0.0
    %1533 = vmatprep.subr.mxu0 0.0
    %1534 = vmatpush1.msra.mxu0 0.0
    %1535 = vmatprep.subr.mxu0 0.0
    %1536 = vmatpush1.msra.mxu0 0.0
    %1537 = vmatprep.subr.mxu0 0.0
    %1538 = vmatpush1.msra.mxu0 0.0
    %1539 = vmatprep.subr.mxu0 0.0
    %1540 = vmatpush1.msra.mxu0 0.0
    %1541 = vmatprep.subr.mxu0 0.0
    %1542 = vmatpush1.msra.mxu0 0.0
    %1543 = vmatprep.subr.mxu0 0.0
    %1544 = vmatpush1.msra.mxu0 0.0
    %1545 = vmatprep.subr.mxu0 0.0
    %1546 = vmatpush1.msra.mxu0 0.0
    %1547 = vmatprep.subr.mxu0 0.0
    %1548 = vmatpush1.msra.mxu0 0.0
    %1549 = vmatprep.subr.mxu0 0.0
    %1550 = vmatpush1.msra.mxu0 0.0
    %1551 = vmatprep.subr.mxu0 0.0
    %1552 = vmatpush1.msra.mxu0 0.0
    %1553 = vmatprep.subr.mxu0 0.0
    %1554 = vmatpush1.msra.mxu0 0.0
    %1555 = vmatprep.subr.mxu0 0.0
    %1556 = vmatpush1.msra.mxu0 0.0
    %1557 = vmatprep.subr.mxu0 0.0
    %1558 = vmatpush1.msra.mxu0 0.0
    %1559 = vmatprep.subr.mxu0 0.0
    %1560 = vmatpush1.msra.mxu0 0.0
    %1561 = vmatprep.subr.mxu0 0.0
    %1562 = vmatpush1.msra.mxu0 %v1526
    %1563 = vmatprep.subr.mxu0 0.0
    %1564 = vmatpush2.msra.mxu0 0.0
    %1565 = vmatprep.subr.mxu0 0.0
    %1566 = vmatpush2.msra.mxu0 0.0
    %1567 = vmatprep.subr.mxu0 0.0
    %1568 = vmatpush2.msra.mxu0 0.0
    %1569 = vmatprep.subr.mxu0 0.0
    %1570 = vmatpush2.msra.mxu0 0.0
    %1571 = vmatprep.subr.mxu0 0.0
    %1572 = vmatpush2.msra.mxu0 0.0
    %1573 = vmatprep.subr.mxu0 0.0
    %1574 = vmatpush2.msra.mxu0 0.0
    %1575 = vmatprep.subr.mxu0 0.0
    %1576 = vmatpush2.msra.mxu0 0.0
    %1577 = vmatprep.subr.mxu0 0.0
    %1578 = vmatpush2.msra.mxu0 0.0
    %1579 = vmatprep.subr.mxu0 0.0
    %1580 = vmatpush2.msra.mxu0 0.0
    %1581 = vmatprep.subr.mxu0 0.0
    %1582 = vmatpush2.msra.mxu0 0.0
    %1583 = vmatprep.subr.mxu0 0.0
    %1584 = vmatpush2.msra.mxu0 0.0
    %1585 = vmatprep.subr.mxu0 0.0
    %1586 = vmatpush2.msra.mxu0 0.0
    %1587 = vmatprep.subr.mxu0 0.0
    %1588 = vmatpush2.msra.mxu0 0.0
    %1589 = vmatprep.subr.mxu0 0.0
    %1590 = vmatpush2.msra.mxu0 0.0
    %1591 = vmatprep.subr.mxu0 0.0
    %1592 = vmatpush2.msra.mxu0 0.0
    %1593 = vmatprep.subr.mxu0 0.0
    %1594 = vmatpush2.msra.mxu0 0.0
    %1595 = vmatprep.mubr.f32.mxu0 0.0
    %1596 = vmatmul.mubr.f32.gmra.mxu0 %v1529
    %v1597 = vpop.f32.mrf.mxu0
    %v1598 = vadd.f32 0.0, %v1597
    %v1599 = vpop.f32.mrf.mxu0
    %1600 = vdwg.mxu0
    %1601 = vrot.lane.b32.xlu0 %v338, 40
    %v1602 = vpop.permute.xlu0 %1601
    %v1605 = vsel %vm344, %v1051, 0
    %1607 = vmatprep.subr.mxu0 0.0
    %1608 = vmatpush1.msra.mxu0 0.0
    %1609 = vmatprep.subr.mxu0 0.0
    %1610 = vmatpush1.msra.mxu0 0.0
    %1611 = vmatprep.subr.mxu0 0.0
    %1612 = vmatpush1.msra.mxu0 0.0
    %1613 = vmatprep.subr.mxu0 0.0
    %1614 = vmatpush1.msra.mxu0 0.0
    %1615 = vmatprep.subr.mxu0 0.0
    %1616 = vmatpush1.msra.mxu0 0.0
    %1617 = vmatprep.subr.mxu0 0.0
    %1618 = vmatpush1.msra.mxu0 0.0
    %1619 = vmatprep.subr.mxu0 0.0
    %1620 = vmatpush1.msra.mxu0 0.0
    %1621 = vmatprep.subr.mxu0 0.0
    %1622 = vmatpush1.msra.mxu0 0.0
    %1623 = vmatprep.subr.mxu0 0.0
    %1624 = vmatpush1.msra.mxu0 0.0
    %1625 = vmatprep.subr.mxu0 0.0
    %1626 = vmatpush1.msra.mxu0 0.0
    %1627 = vmatprep.subr.mxu0 0.0
    %1628 = vmatpush1.msra.mxu0 0.0
    %1629 = vmatprep.subr.mxu0 0.0
    %1630 = vmatpush1.msra.mxu0 0.0
    %1631 = vmatprep.subr.mxu0 0.0
    %1632 = vmatpush1.msra.mxu0 0.0
    %1633 = vmatprep.subr.mxu0 0.0
    %1634 = vmatpush1.msra.mxu0 0.0
    %1635 = vmatprep.subr.mxu0 0.0
    %1636 = vmatpush1.msra.mxu0 0.0
    %1637 = vmatprep.subr.mxu0 0.0
    %1638 = vmatpush1.msra.mxu0 %v1602
    %1639 = vmatprep.subr.mxu0 0.0
    %1640 = vmatpush2.msra.mxu0 0.0
    %1641 = vmatprep.subr.mxu0 0.0
    %1642 = vmatpush2.msra.mxu0 0.0
    %1643 = vmatprep.subr.mxu0 0.0
    %1644 = vmatpush2.msra.mxu0 0.0
    %1645 = vmatprep.subr.mxu0 0.0
    %1646 = vmatpush2.msra.mxu0 0.0
    %1647 = vmatprep.subr.mxu0 0.0
    %1648 = vmatpush2.msra.mxu0 0.0
    %1649 = vmatprep.subr.mxu0 0.0
    %1650 = vmatpush2.msra.mxu0 0.0
    %1651 = vmatprep.subr.mxu0 0.0
    %1652 = vmatpush2.msra.mxu0 0.0
    %1653 = vmatprep.subr.mxu0 0.0
    %1654 = vmatpush2.msra.mxu0 0.0
    %1655 = vmatprep.subr.mxu0 0.0
    %1656 = vmatpush2.msra.mxu0 0.0
    %1657 = vmatprep.subr.mxu0 0.0
    %1658 = vmatpush2.msra.mxu0 0.0
    %1659 = vmatprep.subr.mxu0 0.0
    %1660 = vmatpush2.msra.mxu0 0.0
    %1661 = vmatprep.subr.mxu0 0.0
    %1662 = vmatpush2.msra.mxu0 0.0
    %1663 = vmatprep.subr.mxu0 0.0
    %1664 = vmatpush2.msra.mxu0 0.0
    %1665 = vmatprep.subr.mxu0 0.0
    %1666 = vmatpush2.msra.mxu0 0.0
    %1667 = vmatprep.subr.mxu0 0.0
    %1668 = vmatpush2.msra.mxu0 0.0
    %1669 = vmatprep.subr.mxu0 0.0
    %1670 = vmatpush2.msra.mxu0 0.0
    %1671 = vmatprep.mubr.f32.mxu0 0.0
    %1672 = vmatmul.mubr.f32.gmra.mxu0 %v1605
    %v1673 = vpop.f32.mrf.mxu0
    %v1674 = vadd.f32 0.0, %v1673
    %v1675 = vpop.f32.mrf.mxu0
    %1676 = vdwg.mxu0
    %1678 = vrot.lane.b32.xlu0 %v1522, 8
    %v1679 = vpop.permute.xlu0 %1678
    %1682 = vrot.lane.b32.xlu0 %v1598, 16
    %v1683 = vpop.permute.xlu0 %1682
    %1686 = vrot.lane.b32.xlu0 %v1674, 24
    %v1687 = vpop.permute.xlu0 %1686
    %v1689 = vsel %vm344, %v1446, %v1679
    %v1690 = vsel %vm1369, %v1689, %v1683
    %v1691 = vsel %vm1371, %v1690, %v1687
    %v1692 = vld [vmem:[#allocation7] sm:$0xff]
    %v1693 = vld [vmem:[#allocation7 + $0x8] sm:$0xff]
    %v1694 = vld [vmem:[#allocation7 + $0x10] sm:$0xff]
    %v1695 = vld [vmem:[#allocation7 + $0x18] sm:$0xff]
    %v1696 = vlaneseq
    %v1697 = vshrl.u32 %v1696, 7
    %v1698 = vsub.s32 1, %v1697
    %v1699 = vrot.slane %v250, %v1698
    %v1701 = vsel %vm259, %v1372, 0
    %v1704 = vsel %vm259, %v1691, 0
    %1706 = vmatprep.subr.mxu0 0.0
    %1707 = vmatpush1.msra.mxu0 0.0
    %1708 = vmatprep.subr.mxu0 0.0
    %1709 = vmatpush1.msra.mxu0 0.0
    %1710 = vmatprep.subr.mxu0 0.0
    %1711 = vmatpush1.msra.mxu0 0.0
    %1712 = vmatprep.subr.mxu0 0.0
    %1713 = vmatpush1.msra.mxu0 0.0
    %1714 = vmatprep.subr.mxu0 0.0
    %1715 = vmatpush1.msra.mxu0 0.0
    %1716 = vmatprep.subr.mxu0 0.0
    %1717 = vmatpush1.msra.mxu0 0.0
    %1718 = vmatprep.subr.mxu0 0.0
    %1719 = vmatpush1.msra.mxu0 0.0
    %1720 = vmatprep.subr.mxu0 0.0
    %1721 = vmatpush1.msra.mxu0 0.0
    %1722 = vmatprep.subr.mxu0 0.0
    %1723 = vmatpush1.msra.mxu0 0.0
    %1724 = vmatprep.subr.mxu0 0.0
    %1725 = vmatpush1.msra.mxu0 0.0
    %1726 = vmatprep.subr.mxu0 0.0
    %1727 = vmatpush1.msra.mxu0 0.0
    %1728 = vmatprep.subr.mxu0 0.0
    %1729 = vmatpush1.msra.mxu0 0.0
    %1730 = vmatprep.subr.mxu0 0.0
    %1731 = vmatpush1.msra.mxu0 %v1695
    %1732 = vmatprep.subr.mxu0 0.0
    %1733 = vmatpush1.msra.mxu0 %v1694
    %1734 = vmatprep.subr.mxu0 0.0
    %1735 = vmatpush1.msra.mxu0 %v1693
    %1736 = vmatprep.subr.mxu0 0.0
    %1737 = vmatpush1.msra.mxu0 %v1692
    %1738 = vmatprep.subr.mxu0 0.0
    %1739 = vmatpush2.msra.mxu0 0.0
    %1740 = vmatprep.subr.mxu0 0.0
    %1741 = vmatpush2.msra.mxu0 0.0
    %1742 = vmatprep.subr.mxu0 0.0
    %1743 = vmatpush2.msra.mxu0 0.0
    %1744 = vmatprep.subr.mxu0 0.0
    %1745 = vmatpush2.msra.mxu0 0.0
    %1746 = vmatprep.subr.mxu0 0.0
    %1747 = vmatpush2.msra.mxu0 0.0
    %1748 = vmatprep.subr.mxu0 0.0
    %1749 = vmatpush2.msra.mxu0 0.0
    %1750 = vmatprep.subr.mxu0 0.0
    %1751 = vmatpush2.msra.mxu0 0.0
    %1752 = vmatprep.subr.mxu0 0.0
    %1753 = vmatpush2.msra.mxu0 0.0
    %1754 = vmatprep.subr.mxu0 0.0
    %1755 = vmatpush2.msra.mxu0 0.0
    %1756 = vmatprep.subr.mxu0 0.0
    %1757 = vmatpush2.msra.mxu0 0.0
    %1758 = vmatprep.subr.mxu0 0.0
    %1759 = vmatpush2.msra.mxu0 0.0
    %1760 = vmatprep.subr.mxu0 0.0
    %1761 = vmatpush2.msra.mxu0 0.0
    %1762 = vmatprep.subr.mxu0 0.0
    %1763 = vmatpush2.msra.mxu0 0.0
    %1764 = vmatprep.subr.mxu0 0.0
    %1765 = vmatpush2.msra.mxu0 0.0
    %1766 = vmatprep.subr.mxu0 0.0
    %1767 = vmatpush2.msra.mxu0 0.0
    %1768 = vmatprep.subr.mxu0 0.0
    %1769 = vmatpush2.msra.mxu0 0.0
    %1770 = vmatprep.mubr.f32.mxu0 0.0
    %1771 = vmatmul.mubr.f32.gmra.mxu0 %v1701
    %v1772 = vpop.f32.mrf.mxu0
    %v1773 = vadd.f32 %v1699, %v1772
    %v1774 = vpop.f32.mrf.mxu0
    %1775 = vmatprep.mubr.f32.mxu0 0.0
    %1776 = vmatmul.mubr.f32.gmra.mxu0 %v1704
    %v1777 = vpop.f32.mrf.mxu0
    %v1778 = vadd.f32 %v1699, %v1777
    %v1779 = vpop.f32.mrf.mxu0
    %1780 = vdwg.mxu0
    %v1781 = vadd.f32 %v242, %v1773
    %v1782 = vadd.f32 %v247, %v1778
    %v1783 = vsel %vm259, %v1781, 0.0
    %1784 = vadd.xlane.f32.xlu0 %v1783
    %v1785 = vpop.xlane.xlu0 %1784
    %v1786 = vsel %vm259, %v1782, 0.0
    %1787 = vadd.xlane.f32.xlu0 %v1786
    %v1788 = vpop.xlane.xlu0 %1787
    %v1789 = vrcp.pop 32.0
    %v1790 = vmul.f32 %v1785, %v1789
    %v1791 = vmul.f32 %v1788, %v1789
    %v1792 = vsub.f32 %v1781, %v1790
    %v1793 = vsub.f32 %v1782, %v1791
    %v1794 = vmul.f32 %v1792, %v1792
    %v1795 = vmul.f32 %v1793, %v1793
    %v1796 = vsel %vm259, %v1794, 0.0
    %1797 = vadd.xlane.f32.xlu0 %v1796
    %v1798 = vpop.xlane.xlu0 %1797
    %v1799 = vsel %vm259, %v1795, 0.0
    %1800 = vadd.xlane.f32.xlu0 %v1799
    %v1801 = vpop.xlane.xlu0 %1800
    %v1802 = vmul.f32 %v1798, %v1789
    %v1803 = vmul.f32 %v1801, %v1789
    %v1804 = vadd.f32 %v1802, 1e-05
    %v1805 = vadd.f32 %v1803, 1e-05
    %v1806 = vrsqrt.pop %v1804
    %v1807 = vrsqrt.pop %v1805
    %v1808 = vmul.f32 %v1792, %v1806
    %v1809 = vmul.f32 %v1793, %v1807
    %v1810 = vlaneseq
    %v1811 = vshrl.u32 %v1810, 7
    %v1812 = vsub.s32 2, %v1811
    %v1813 = vrot.slane %v250, %v1812
    %v1814 = vmul.f32 %v1808, %v1813
    %v1815 = vmul.f32 %v1809, %v1813
    %v1816 = vlaneseq
    %v1817 = vshrl.u32 %v1816, 7
    %v1818 = vsub.s32 3, %v1817
    %v1819 = vrot.slane %v250, %v1818
    %v1820 = vadd.f32 %v1814, %v1819
    %v1821 = vadd.f32 %v1815, %v1819
    %v1822 = vld [vmem:[#allocation9] sm:$0xff]
    %v1823 = vld [vmem:[#allocation9 + $0x8] sm:$0xff]
    %v1824 = vld [vmem:[#allocation9 + $0x10] sm:$0xff]
    %v1825 = vld [vmem:[#allocation9 + $0x18] sm:$0xff]
    %v1826 = vlaneseq
    %v1827 = vshrl.u32 %v1826, 7
    %v1828 = vsub.s32 4, %v1827
    %v1829 = vrot.slane %v250, %v1828
    %v1831 = vsel %vm259, %v1820, 0
    %v1834 = vsel %vm259, %v1821, 0
    %1836 = vmatprep.subr.mxu0 0.0
    %1837 = vmatpush1.msra.mxu0 0.0
    %1838 = vmatprep.subr.mxu0 0.0
    %1839 = vmatpush1.msra.mxu0 0.0
    %1840 = vmatprep.subr.mxu0 0.0
    %1841 = vmatpush1.msra.mxu0 0.0
    %1842 = vmatprep.subr.mxu0 0.0
    %1843 = vmatpush1.msra.mxu0 0.0
    %1844 = vmatprep.subr.mxu0 0.0
    %1845 = vmatpush1.msra.mxu0 0.0
    %1846 = vmatprep.subr.mxu0 0.0
    %1847 = vmatpush1.msra.mxu0 0.0
    %1848 = vmatprep.subr.mxu0 0.0
    %1849 = vmatpush1.msra.mxu0 0.0
    %1850 = vmatprep.subr.mxu0 0.0
    %1851 = vmatpush1.msra.mxu0 0.0
    %1852 = vmatprep.subr.mxu0 0.0
    %1853 = vmatpush1.msra.mxu0 0.0
    %1854 = vmatprep.subr.mxu0 0.0
    %1855 = vmatpush1.msra.mxu0 0.0
    %1856 = vmatprep.subr.mxu0 0.0
    %1857 = vmatpush1.msra.mxu0 0.0
    %1858 = vmatprep.subr.mxu0 0.0
    %1859 = vmatpush1.msra.mxu0 0.0
    %1860 = vmatprep.subr.mxu0 0.0
    %1861 = vmatpush1.msra.mxu0 %v1825
    %1862 = vmatprep.subr.mxu0 0.0
    %1863 = vmatpush1.msra.mxu0 %v1824
    %1864 = vmatprep.subr.mxu0 0.0
    %1865 = vmatpush1.msra.mxu0 %v1823
    %1866 = vmatprep.subr.mxu0 0.0
    %1867 = vmatpush1.msra.mxu0 %v1822
    %1868 = vmatprep.subr.mxu0 0.0
    %1869 = vmatpush2.msra.mxu0 0.0
    %1870 = vmatprep.subr.mxu0 0.0
    %1871 = vmatpush2.msra.mxu0 0.0
    %1872 = vmatprep.subr.mxu0 0.0
    %1873 = vmatpush2.msra.mxu0 0.0
    %1874 = vmatprep.subr.mxu0 0.0
    %1875 = vmatpush2.msra.mxu0 0.0
    %1876 = vmatprep.subr.mxu0 0.0
    %1877 = vmatpush2.msra.mxu0 0.0
    %1878 = vmatprep.subr.mxu0 0.0
    %1879 = vmatpush2.msra.mxu0 0.0
    %1880 = vmatprep.subr.mxu0 0.0
    %1881 = vmatpush2.msra.mxu0 0.0
    %1882 = vmatprep.subr.mxu0 0.0
    %1883 = vmatpush2.msra.mxu0 0.0
    %1884 = vmatprep.subr.mxu0 0.0
    %1885 = vmatpush2.msra.mxu0 0.0
    %1886 = vmatprep.subr.mxu0 0.0
    %1887 = vmatpush2.msra.mxu0 0.0
    %1888 = vmatprep.subr.mxu0 0.0
    %1889 = vmatpush2.msra.mxu0 0.0
    %1890 = vmatprep.subr.mxu0 0.0
    %1891 = vmatpush2.msra.mxu0 0.0
    %1892 = vmatprep.subr.mxu0 0.0
    %1893 = vmatpush2.msra.mxu0 0.0
    %1894 = vmatprep.subr.mxu0 0.0
    %1895 = vmatpush2.msra.mxu0 0.0
    %1896 = vmatprep.subr.mxu0 0.0
    %1897 = vmatpush2.msra.mxu0 0.0
    %1898 = vmatprep.subr.mxu0 0.0
    %1899 = vmatpush2.msra.mxu0 0.0
    %1900 = vmatprep.mubr.f32.mxu0 0.0
    %1901 = vmatmul.mubr.f32.gmra.mxu0 %v1831
    %v1902 = vpop.f32.mrf.mxu0
    %v1903 = vadd.f32 %v1829, %v1902
    %v1904 = vpop.f32.mrf.mxu0
    %1905 = vmatprep.mubr.f32.mxu0 0.0
    %1906 = vmatmul.mubr.f32.gmra.mxu0 %v1834
    %v1907 = vpop.f32.mrf.mxu0
    %v1908 = vadd.f32 %v1829, %v1907
    %v1909 = vpop.f32.mrf.mxu0
    %1910 = vdwg.mxu0
    %v1911 = vmul.f32 %v1903, 0.5
    %v1912 = vmul.f32 %v1908, 0.5
    %v1913 = vmul.f32 %v1903, 0.70710677
    %v1914 = vmul.f32 %v1908, 0.70710677
    %vm1915 = vcmp.ge.f32.partialorder %v1913, 0.0
    %vm1916 = vcmp.ge.f32.partialorder %v1914, 0.0
    %v1917 = vsel %vm1915, 1.0, -1.0
    %v1918 = vsel %vm1916, 1.0, -1.0
    %v1919 = vand.u32 2147483647, %v1913
    %v1920 = vand.u32 2147483647, %v1914
    %v1921 = vmul.f32 %v1919, 0.3275911
    %v1922 = vmul.f32 %v1920, 0.3275911
    %v1923 = vadd.f32 %v1921, 1.0
    %v1924 = vadd.f32 %v1922, 1.0
    %v1925 = vrcp.pop %v1923
    %v1926 = vmul.f32 1.0, %v1925
    %v1927 = vrcp.pop %v1924
    %v1928 = vmul.f32 1.0, %v1927
    %v1929 = vmul.f32 %v1926, 1.0614054
    %v1930 = vmul.f32 %v1928, 1.0614054
    %v1931 = vadd.f32 %v1929, -1.4531521
    %v1932 = vadd.f32 %v1930, -1.4531521
    %v1933 = vmul.f32 %v1931, %v1926
    %v1934 = vmul.f32 %v1932, %v1928
    %v1935 = vadd.f32 %v1933, 1.4214138
    %v1936 = vadd.f32 %v1934, 1.4214138
    %v1937 = vmul.f32 %v1935, %v1926
    %v1938 = vmul.f32 %v1936, %v1928
    %v1939 = vadd.f32 %v1937, -0.28449672
    %v1940 = vadd.f32 %v1938, -0.28449672
    %v1941 = vmul.f32 %v1939, %v1926
    %v1942 = vmul.f32 %v1940, %v1928
    %v1943 = vadd.f32 %v1941, 0.2548296
    %v1944 = vadd.f32 %v1942, 0.2548296
    %v1945 = vmul.f32 %v1943, %v1926
    %v1946 = vmul.f32 %v1944, %v1928
    %v1947 = vsub.f32 0.0, %v1919
    %v1948 = vsub.f32 0.0, %v1920
    %v1949 = vmul.f32 %v1947, %v1919
    %v1950 = vmul.f32 %v1948, %v1920
    %v1951 = vmul.f32 %v1949, 1.442695
    %v1952 = vpow.pop %v1951
    %v1953 = vmul.f32 %v1950, 1.442695
    %v1954 = vpow.pop %v1953
    %v1955 = vmul.f32 %v1945, %v1952
    %v1956 = vmul.f32 %v1946, %v1954
    %v1957 = vsub.f32 1.0, %v1955
    %v1958 = vsub.f32 1.0, %v1956
    %v1959 = vmul.f32 %v1917, %v1957
    %v1960 = vmul.f32 %v1918, %v1958
    %v1961 = vadd.f32 %v1959, 1.0
    %v1962 = vadd.f32 %v1960, 1.0
    %v1963 = vmul.f32 %v1911, %v1961
    %v1964 = vmul.f32 %v1912, %v1962
    %v1965 = vld [vmem:[#allocation10] sm:$0xff]
    %v1966 = vld [vmem:[#allocation10 + $0x8] sm:$0xff]
    %v1967 = vld [vmem:[#allocation10 + $0x10] sm:$0xff]
    %v1968 = vld [vmem:[#allocation10 + $0x18] sm:$0xff]
    %v1969 = vld [vmem:[#allocation10 + $0x20] sm:$0xff]
    %v1970 = vld [vmem:[#allocation10 + $0x28] sm:$0xff]
    %v1971 = vld [vmem:[#allocation10 + $0x30] sm:$0xff]
    %v1972 = vld [vmem:[#allocation10 + $0x38] sm:$0xff]
    %v1973 = vlaneseq
    %v1974 = vshrl.u32 %v1973, 7
    %v1975 = vsub.s32 5, %v1974
    %v1976 = vrot.slane %v250, %v1975
    %v1978 = vsel %vm168, %v1963, 0
    %v1981 = vsel %vm168, %v1964, 0
    %1983 = vmatprep.subr.mxu0 0.0
    %1984 = vmatpush1.msra.mxu0 0.0
    %1985 = vmatprep.subr.mxu0 0.0
    %1986 = vmatpush1.msra.mxu0 0.0
    %1987 = vmatprep.subr.mxu0 0.0
    %1988 = vmatpush1.msra.mxu0 0.0
    %1989 = vmatprep.subr.mxu0 0.0
    %1990 = vmatpush1.msra.mxu0 0.0
    %1991 = vmatprep.subr.mxu0 0.0
    %1992 = vmatpush1.msra.mxu0 0.0
    %1993 = vmatprep.subr.mxu0 0.0
    %1994 = vmatpush1.msra.mxu0 0.0
    %1995 = vmatprep.subr.mxu0 0.0
    %1996 = vmatpush1.msra.mxu0 0.0
    %1997 = vmatprep.subr.mxu0 0.0
    %1998 = vmatpush1.msra.mxu0 0.0
    %1999 = vmatprep.subr.mxu0 0.0
    %2000 = vmatpush1.msra.mxu0 %v1972
    %2001 = vmatprep.subr.mxu0 0.0
    %2002 = vmatpush1.msra.mxu0 %v1971
    %2003 = vmatprep.subr.mxu0 0.0
    %2004 = vmatpush1.msra.mxu0 %v1970
    %2005 = vmatprep.subr.mxu0 0.0
    %2006 = vmatpush1.msra.mxu0 %v1969
    %2007 = vmatprep.subr.mxu0 0.0
    %2008 = vmatpush1.msra.mxu0 %v1968
    %2009 = vmatprep.subr.mxu0 0.0
    %2010 = vmatpush1.msra.mxu0 %v1967
    %2011 = vmatprep.subr.mxu0 0.0
    %2012 = vmatpush1.msra.mxu0 %v1966
    %2013 = vmatprep.subr.mxu0 0.0
    %2014 = vmatpush1.msra.mxu0 %v1965
    %2015 = vmatprep.subr.mxu0 0.0
    %2016 = vmatpush2.msra.mxu0 0.0
    %2017 = vmatprep.subr.mxu0 0.0
    %2018 = vmatpush2.msra.mxu0 0.0
    %2019 = vmatprep.subr.mxu0 0.0
    %2020 = vmatpush2.msra.mxu0 0.0
    %2021 = vmatprep.subr.mxu0 0.0
    %2022 = vmatpush2.msra.mxu0 0.0
    %2023 = vmatprep.subr.mxu0 0.0
    %2024 = vmatpush2.msra.mxu0 0.0
    %2025 = vmatprep.subr.mxu0 0.0
    %2026 = vmatpush2.msra.mxu0 0.0
    %2027 = vmatprep.subr.mxu0 0.0
    %2028 = vmatpush2.msra.mxu0 0.0
    %2029 = vmatprep.subr.mxu0 0.0
    %2030 = vmatpush2.msra.mxu0 0.0
    %2031 = vmatprep.subr.mxu0 0.0
    %2032 = vmatpush2.msra.mxu0 0.0
    %2033 = vmatprep.subr.mxu0 0.0
    %2034 = vmatpush2.msra.mxu0 0.0
    %2035 = vmatprep.subr.mxu0 0.0
    %2036 = vmatpush2.msra.mxu0 0.0
    %2037 = vmatprep.subr.mxu0 0.0
    %2038 = vmatpush2.msra.mxu0 0.0
    %2039 = vmatprep.subr.mxu0 0.0
    %2040 = vmatpush2.msra.mxu0 0.0
    %2041 = vmatprep.subr.mxu0 0.0
    %2042 = vmatpush2.msra.mxu0 0.0
    %2043 = vmatprep.subr.mxu0 0.0
    %2044 = vmatpush2.msra.mxu0 0.0
    %2045 = vmatprep.subr.mxu0 0.0
    %2046 = vmatpush2.msra.mxu0 0.0
    %2047 = vmatprep.mubr.f32.mxu0 0.0
    %2048 = vmatmul.mubr.f32.gmra.mxu0 %v1978
    %v2049 = vpop.f32.mrf.mxu0
    %v2050 = vadd.f32 %v1976, %v2049
    %v2051 = vpop.f32.mrf.mxu0
    %2052 = vmatprep.mubr.f32.mxu0 0.0
    %2053 = vmatmul.mubr.f32.gmra.mxu0 %v1981
    %v2054 = vpop.f32.mrf.mxu0
    %v2055 = vadd.f32 %v1976, %v2054
    %v2056 = vpop.f32.mrf.mxu0
    %2057 = vdwg.mxu0
    %v2058 = vadd.f32 %v1820, %v2050
    %v2059 = vadd.f32 %v1821, %v2055
    %v2060 = vsel %vm259, %v2058, 0.0
    %2061 = vadd.xlane.f32.xlu0 %v2060
    %v2062 = vpop.xlane.xlu0 %2061
    %v2063 = vsel %vm259, %v2059, 0.0
    %2064 = vadd.xlane.f32.xlu0 %v2063
    %v2065 = vpop.xlane.xlu0 %2064
    %v2066 = vmul.f32 %v2062, %v1789
    %v2067 = vmul.f32 %v2065, %v1789
    %v2068 = vsub.f32 %v2058, %v2066
    %v2069 = vsub.f32 %v2059, %v2067
    %v2070 = vmul.f32 %v2068, %v2068
    %v2071 = vmul.f32 %v2069, %v2069
    %v2072 = vsel %vm259, %v2070, 0.0
    %2073 = vadd.xlane.f32.xlu0 %v2072
    %v2074 = vpop.xlane.xlu0 %2073
    %v2075 = vsel %vm259, %v2071, 0.0
    %2076 = vadd.xlane.f32.xlu0 %v2075
    %v2077 = vpop.xlane.xlu0 %2076
    %v2078 = vmul.f32 %v2074, %v1789
    %v2079 = vmul.f32 %v2077, %v1789
    %v2080 = vadd.f32 %v2078, 1e-05
    %v2081 = vadd.f32 %v2079, 1e-05
    %v2082 = vrsqrt.pop %v2080
    %v2083 = vrsqrt.pop %v2081
    %v2084 = vmul.f32 %v2068, %v2082
    %v2085 = vmul.f32 %v2069, %v2083
    %v2086 = vlaneseq
    %v2087 = vshrl.u32 %v2086, 7
    %v2088 = vsub.s32 6, %v2087
    %v2089 = vrot.slane %v250, %v2088
    %v2090 = vmul.f32 %v2084, %v2089
    %v2091 = vmul.f32 %v2085, %v2089
    %v2092 = vlaneseq
    %v2093 = vshrl.u32 %v2092, 7
    %v2094 = vsub.s32 7, %v2093
    %v2095 = vrot.slane %v250, %v2094
    %v2096 = vadd.f32 %v2090, %v2095
    %v2097 = vadd.f32 %v2091, %v2095
    %s2098 = scalar_lea.vmem [#allocation12], 8
    %v2099 = vld [vmem:[%s2098] sm:$0xff]
    %s2100 = scalar_lea.vmem [#allocation6], 32
    %v2101 = vld [vmem:[%s2100] sm:$0xff]
    %v2102 = vld [vmem:[%s2100 + $0x8] sm:$0xff]
    %v2103 = vld [vmem:[%s2100 + $0x10] sm:$0xff]
    %v2104 = vld [vmem:[%s2100 + $0x18] sm:$0xff]
    %v2105 = vlaneseq
    %v2106 = vshrl.u32 %v2105, 7
    %v2107 = vsub.s32 0, %v2106
    %v2108 = vrot.slane %v2099, %v2107
    %v2110 = vsel %vm259, %v2096, 0
    %v2113 = vsel %vm259, %v2097, 0
    %2115 = vmatprep.subr.mxu0 0.0
    %2116 = vmatpush1.msra.mxu0 0.0
    %2117 = vmatprep.subr.mxu0 0.0
    %2118 = vmatpush1.msra.mxu0 0.0
    %2119 = vmatprep.subr.mxu0 0.0
    %2120 = vmatpush1.msra.mxu0 0.0
    %2121 = vmatprep.subr.mxu0 0.0
    %2122 = vmatpush1.msra.mxu0 0.0
    %2123 = vmatprep.subr.mxu0 0.0
    %2124 = vmatpush1.msra.mxu0 0.0
    %2125 = vmatprep.subr.mxu0 0.0
    %2126 = vmatpush1.msra.mxu0 0.0
    %2127 = vmatprep.subr.mxu0 0.0
    %2128 = vmatpush1.msra.mxu0 0.0
    %2129 = vmatprep.subr.mxu0 0.0
    %2130 = vmatpush1.msra.mxu0 0.0
    %2131 = vmatprep.subr.mxu0 0.0
    %2132 = vmatpush1.msra.mxu0 0.0
    %2133 = vmatprep.subr.mxu0 0.0
    %2134 = vmatpush1.msra.mxu0 0.0
    %2135 = vmatprep.subr.mxu0 0.0
    %2136 = vmatpush1.msra.mxu0 0.0
    %2137 = vmatprep.subr.mxu0 0.0
    %2138 = vmatpush1.msra.mxu0 0.0
    %2139 = vmatprep.subr.mxu0 0.0
    %2140 = vmatpush1.msra.mxu0 %v2104
    %2141 = vmatprep.subr.mxu0 0.0
    %2142 = vmatpush1.msra.mxu0 %v2103
    %2143 = vmatprep.subr.mxu0 0.0
    %2144 = vmatpush1.msra.mxu0 %v2102
    %2145 = vmatprep.subr.mxu0 0.0
    %2146 = vmatpush1.msra.mxu0 %v2101
    %2147 = vmatprep.subr.mxu0 0.0
    %2148 = vmatpush2.msra.mxu0 0.0
    %2149 = vmatprep.subr.mxu0 0.0
    %2150 = vmatpush2.msra.mxu0 0.0
    %2151 = vmatprep.subr.mxu0 0.0
    %2152 = vmatpush2.msra.mxu0 0.0
    %2153 = vmatprep.subr.mxu0 0.0
    %2154 = vmatpush2.msra.mxu0 0.0
    %2155 = vmatprep.subr.mxu0 0.0
    %2156 = vmatpush2.msra.mxu0 0.0
    %2157 = vmatprep.subr.mxu0 0.0
    %2158 = vmatpush2.msra.mxu0 0.0
    %2159 = vmatprep.subr.mxu0 0.0
    %2160 = vmatpush2.msra.mxu0 0.0
    %2161 = vmatprep.subr.mxu0 0.0
    %2162 = vmatpush2.msra.mxu0 0.0
    %2163 = vmatprep.subr.mxu0 0.0
    %2164 = vmatpush2.msra.mxu0 0.0
    %2165 = vmatprep.subr.mxu0 0.0
    %2166 = vmatpush2.msra.mxu0 0.0
    %2167 = vmatprep.subr.mxu0 0.0
    %2168 = vmatpush2.msra.mxu0 0.0
    %2169 = vmatprep.subr.mxu0 0.0
    %2170 = vmatpush2.msra.mxu0 0.0
    %2171 = vmatprep.subr.mxu0 0.0
    %2172 = vmatpush2.msra.mxu0 0.0
    %2173 = vmatprep.subr.mxu0 0.0
    %2174 = vmatpush2.msra.mxu0 0.0
    %2175 = vmatprep.subr.mxu0 0.0
    %2176 = vmatpush2.msra.mxu0 0.0
    %2177 = vmatprep.subr.mxu0 0.0
    %2178 = vmatpush2.msra.mxu0 0.0
    %2179 = vmatprep.mubr.f32.mxu0 0.0
    %2180 = vmatmul.mubr.f32.gmra.mxu0 %v2110
    %v2181 = vpop.f32.mrf.mxu0
    %v2182 = vadd.f32 %v2108, %v2181
    %v2183 = vpop.f32.mrf.mxu0
    %2184 = vmatprep.mubr.f32.mxu0 0.0
    %2185 = vmatmul.mubr.f32.gmra.mxu0 %v2113
    %v2186 = vpop.f32.mrf.mxu0
    %v2187 = vadd.f32 %v2108, %v2186
    %v2188 = vpop.f32.mrf.mxu0
    %2189 = vdwg.mxu0
    %2191 = vrot.lane.b32.xlu0 %v2182, 96
    %v2192 = vpop.permute.xlu0 %2191
    %v2193 = vsel %vm344, %v2182, 0
    %v2195 = vsel %vm344, %v2192, 0
    %2197 = vmatprep.subr.mxu0 0.0
    %2198 = vmatpush1.xpose.msra.mxu0 0.0
    %2199 = vmatprep.subr.mxu0 0.0
    %2200 = vmatpush1.xpose.msra.mxu0 0.0
    %2201 = vmatprep.subr.mxu0 0.0
    %2202 = vmatpush1.xpose.msra.mxu0 0.0
    %2203 = vmatprep.subr.mxu0 0.0
    %2204 = vmatpush1.xpose.msra.mxu0 0.0
    %2205 = vmatprep.subr.mxu0 0.0
    %2206 = vmatpush1.xpose.msra.mxu0 0.0
    %2207 = vmatprep.subr.mxu0 0.0
    %2208 = vmatpush1.xpose.msra.mxu0 0.0
    %2209 = vmatprep.subr.mxu0 0.0
    %2210 = vmatpush1.xpose.msra.mxu0 0.0
    %2211 = vmatprep.subr.mxu0 0.0
    %2212 = vmatpush1.xpose.msra.mxu0 0.0
    %2213 = vmatprep.subr.mxu0 0.0
    %2214 = vmatpush1.xpose.msra.mxu0 0.0
    %2215 = vmatprep.subr.mxu0 0.0
    %2216 = vmatpush1.xpose.msra.mxu0 0.0
    %2217 = vmatprep.subr.mxu0 0.0
    %2218 = vmatpush1.xpose.msra.mxu0 0.0
    %2219 = vmatprep.subr.mxu0 0.0
    %2220 = vmatpush1.xpose.msra.mxu0 0.0
    %2221 = vmatprep.subr.mxu0 0.0
    %2222 = vmatpush1.xpose.msra.mxu0 0.0
    %2223 = vmatprep.subr.mxu0 0.0
    %2224 = vmatpush1.xpose.msra.mxu0 0.0
    %2225 = vmatprep.subr.mxu0 0.0
    %2226 = vmatpush1.xpose.msra.mxu0 0.0
    %2227 = vmatprep.subr.mxu0 0.0
    %2228 = vmatpush1.xpose.msra.mxu0 %v2195
    %2229 = vmatprep.subr.mxu0 0.0
    %2230 = vmatpush2.xpose.msra.mxu0 0.0
    %2231 = vmatprep.subr.mxu0 0.0
    %2232 = vmatpush2.xpose.msra.mxu0 0.0
    %2233 = vmatprep.subr.mxu0 0.0
    %2234 = vmatpush2.xpose.msra.mxu0 0.0
    %2235 = vmatprep.subr.mxu0 0.0
    %2236 = vmatpush2.xpose.msra.mxu0 0.0
    %2237 = vmatprep.subr.mxu0 0.0
    %2238 = vmatpush2.xpose.msra.mxu0 0.0
    %2239 = vmatprep.subr.mxu0 0.0
    %2240 = vmatpush2.xpose.msra.mxu0 0.0
    %2241 = vmatprep.subr.mxu0 0.0
    %2242 = vmatpush2.xpose.msra.mxu0 0.0
    %2243 = vmatprep.subr.mxu0 0.0
    %2244 = vmatpush2.xpose.msra.mxu0 0.0
    %2245 = vmatprep.subr.mxu0 0.0
    %2246 = vmatpush2.xpose.msra.mxu0 0.0
    %2247 = vmatprep.subr.mxu0 0.0
    %2248 = vmatpush2.xpose.msra.mxu0 0.0
    %2249 = vmatprep.subr.mxu0 0.0
    %2250 = vmatpush2.xpose.msra.mxu0 0.0
    %2251 = vmatprep.subr.mxu0 0.0
    %2252 = vmatpush2.xpose.msra.mxu0 0.0
    %2253 = vmatprep.subr.mxu0 0.0
    %2254 = vmatpush2.xpose.msra.mxu0 0.0
    %2255 = vmatprep.subr.mxu0 0.0
    %2256 = vmatpush2.xpose.msra.mxu0 0.0
    %2257 = vmatprep.subr.mxu0 0.0
    %2258 = vmatpush2.xpose.msra.mxu0 0.0
    %2259 = vmatprep.subr.mxu0 0.0
    %2260 = vmatpush2.xpose.msra.mxu0 0.0
    %2261 = vmatprep.mubr.f32.mxu0 0.0
    %2262 = vmatmul.mubr.f32.gmra.mxu0 %v2193
    %v2263 = vpop.f32.mrf.mxu0
    %v2264 = vadd.f32 0.0, %v2263
    %v2265 = vpop.f32.mrf.mxu0
    %2266 = vdwg.mxu0
    %2267 = vrot.lane.b32.xlu0 %v2182, 120
    %v2268 = vpop.permute.xlu0 %2267
    %2269 = vrot.lane.b32.xlu0 %v2182, 88
    %v2270 = vpop.permute.xlu0 %2269
    %v2271 = vsel %vm344, %v2268, 0
    %v2273 = vsel %vm344, %v2270, 0
    %2275 = vmatprep.subr.mxu0 0.0
    %2276 = vmatpush1.xpose.msra.mxu0 0.0
    %2277 = vmatprep.subr.mxu0 0.0
    %2278 = vmatpush1.xpose.msra.mxu0 0.0
    %2279 = vmatprep.subr.mxu0 0.0
    %2280 = vmatpush1.xpose.msra.mxu0 0.0
    %2281 = vmatprep.subr.mxu0 0.0
    %2282 = vmatpush1.xpose.msra.mxu0 0.0
    %2283 = vmatprep.subr.mxu0 0.0
    %2284 = vmatpush1.xpose.msra.mxu0 0.0
    %2285 = vmatprep.subr.mxu0 0.0
    %2286 = vmatpush1.xpose.msra.mxu0 0.0
    %2287 = vmatprep.subr.mxu0 0.0
    %2288 = vmatpush1.xpose.msra.mxu0 0.0
    %2289 = vmatprep.subr.mxu0 0.0
    %2290 = vmatpush1.xpose.msra.mxu0 0.0
    %2291 = vmatprep.subr.mxu0 0.0
    %2292 = vmatpush1.xpose.msra.mxu0 0.0
    %2293 = vmatprep.subr.mxu0 0.0
    %2294 = vmatpush1.xpose.msra.mxu0 0.0
    %2295 = vmatprep.subr.mxu0 0.0
    %2296 = vmatpush1.xpose.msra.mxu0 0.0
    %2297 = vmatprep.subr.mxu0 0.0
    %2298 = vmatpush1.xpose.msra.mxu0 0.0
    %2299 = vmatprep.subr.mxu0 0.0
    %2300 = vmatpush1.xpose.msra.mxu0 0.0
    %2301 = vmatprep.subr.mxu0 0.0
    %2302 = vmatpush1.xpose.msra.mxu0 0.0
    %2303 = vmatprep.subr.mxu0 0.0
    %2304 = vmatpush1.xpose.msra.mxu0 0.0
    %2305 = vmatprep.subr.mxu0 0.0
    %2306 = vmatpush1.xpose.msra.mxu0 %v2273
    %2307 = vmatprep.subr.mxu0 0.0
    %2308 = vmatpush2.xpose.msra.mxu0 0.0
    %2309 = vmatprep.subr.mxu0 0.0
    %2310 = vmatpush2.xpose.msra.mxu0 0.0
    %2311 = vmatprep.subr.mxu0 0.0
    %2312 = vmatpush2.xpose.msra.mxu0 0.0
    %2313 = vmatprep.subr.mxu0 0.0
    %2314 = vmatpush2.xpose.msra.mxu0 0.0
    %2315 = vmatprep.subr.mxu0 0.0
    %2316 = vmatpush2.xpose.msra.mxu0 0.0
    %2317 = vmatprep.subr.mxu0 0.0
    %2318 = vmatpush2.xpose.msra.mxu0 0.0
    %2319 = vmatprep.subr.mxu0 0.0
    %2320 = vmatpush2.xpose.msra.mxu0 0.0
    %2321 = vmatprep.subr.mxu0 0.0
    %2322 = vmatpush2.xpose.msra.mxu0 0.0
    %2323 = vmatprep.subr.mxu0 0.0
    %2324 = vmatpush2.xpose.msra.mxu0 0.0
    %2325 = vmatprep.subr.mxu0 0.0
    %2326 = vmatpush2.xpose.msra.mxu0 0.0
    %2327 = vmatprep.subr.mxu0 0.0
    %2328 = vmatpush2.xpose.msra.mxu0 0.0
    %2329 = vmatprep.subr.mxu0 0.0
    %2330 = vmatpush2.xpose.msra.mxu0 0.0
    %2331 = vmatprep.subr.mxu0 0.0
    %2332 = vmatpush2.xpose.msra.mxu0 0.0
    %2333 = vmatprep.subr.mxu0 0.0
    %2334 = vmatpush2.xpose.msra.mxu0 0.0
    %2335 = vmatprep.subr.mxu0 0.0
    %2336 = vmatpush2.xpose.msra.mxu0 0.0
    %2337 = vmatprep.subr.mxu0 0.0
    %2338 = vmatpush2.xpose.msra.mxu0 0.0
    %2339 = vmatprep.mubr.f32.mxu0 0.0
    %2340 = vmatmul.mubr.f32.gmra.mxu0 %v2271
    %v2341 = vpop.f32.mrf.mxu0
    %v2342 = vadd.f32 0.0, %v2341
    %v2343 = vpop.f32.mrf.mxu0
    %2344 = vdwg.mxu0
    %2345 = vrot.lane.b32.xlu0 %v2182, 112
    %v2346 = vpop.permute.xlu0 %2345
    %2347 = vrot.lane.b32.xlu0 %v2182, 80
    %v2348 = vpop.permute.xlu0 %2347
    %v2349 = vsel %vm344, %v2346, 0
    %v2351 = vsel %vm344, %v2348, 0
    %2353 = vmatprep.subr.mxu0 0.0
    %2354 = vmatpush1.xpose.msra.mxu0 0.0
    %2355 = vmatprep.subr.mxu0 0.0
    %2356 = vmatpush1.xpose.msra.mxu0 0.0
    %2357 = vmatprep.subr.mxu0 0.0
    %2358 = vmatpush1.xpose.msra.mxu0 0.0
    %2359 = vmatprep.subr.mxu0 0.0
    %2360 = vmatpush1.xpose.msra.mxu0 0.0
    %2361 = vmatprep.subr.mxu0 0.0
    %2362 = vmatpush1.xpose.msra.mxu0 0.0
    %2363 = vmatprep.subr.mxu0 0.0
    %2364 = vmatpush1.xpose.msra.mxu0 0.0
    %2365 = vmatprep.subr.mxu0 0.0
    %2366 = vmatpush1.xpose.msra.mxu0 0.0
    %2367 = vmatprep.subr.mxu0 0.0
    %2368 = vmatpush1.xpose.msra.mxu0 0.0
    %2369 = vmatprep.subr.mxu0 0.0
    %2370 = vmatpush1.xpose.msra.mxu0 0.0
    %2371 = vmatprep.subr.mxu0 0.0
    %2372 = vmatpush1.xpose.msra.mxu0 0.0
    %2373 = vmatprep.subr.mxu0 0.0
    %2374 = vmatpush1.xpose.msra.mxu0 0.0
    %2375 = vmatprep.subr.mxu0 0.0
    %2376 = vmatpush1.xpose.msra.mxu0 0.0
    %2377 = vmatprep.subr.mxu0 0.0
    %2378 = vmatpush1.xpose.msra.mxu0 0.0
    %2379 = vmatprep.subr.mxu0 0.0
    %2380 = vmatpush1.xpose.msra.mxu0 0.0
    %2381 = vmatprep.subr.mxu0 0.0
    %2382 = vmatpush1.xpose.msra.mxu0 0.0
    %2383 = vmatprep.subr.mxu0 0.0
    %2384 = vmatpush1.xpose.msra.mxu0 %v2351
    %2385 = vmatprep.subr.mxu0 0.0
    %2386 = vmatpush2.xpose.msra.mxu0 0.0
    %2387 = vmatprep.subr.mxu0 0.0
    %2388 = vmatpush2.xpose.msra.mxu0 0.0
    %2389 = vmatprep.subr.mxu0 0.0
    %2390 = vmatpush2.xpose.msra.mxu0 0.0
    %2391 = vmatprep.subr.mxu0 0.0
    %2392 = vmatpush2.xpose.msra.mxu0 0.0
    %2393 = vmatprep.subr.mxu0 0.0
    %2394 = vmatpush2.xpose.msra.mxu0 0.0
    %2395 = vmatprep.subr.mxu0 0.0
    %2396 = vmatpush2.xpose.msra.mxu0 0.0
    %2397 = vmatprep.subr.mxu0 0.0
    %2398 = vmatpush2.xpose.msra.mxu0 0.0
    %2399 = vmatprep.subr.mxu0 0.0
    %2400 = vmatpush2.xpose.msra.mxu0 0.0
    %2401 = vmatprep.subr.mxu0 0.0
    %2402 = vmatpush2.xpose.msra.mxu0 0.0
    %2403 = vmatprep.subr.mxu0 0.0
    %2404 = vmatpush2.xpose.msra.mxu0 0.0
    %2405 = vmatprep.subr.mxu0 0.0
    %2406 = vmatpush2.xpose.msra.mxu0 0.0
    %2407 = vmatprep.subr.mxu0 0.0
    %2408 = vmatpush2.xpose.msra.mxu0 0.0
    %2409 = vmatprep.subr.mxu0 0.0
    %2410 = vmatpush2.xpose.msra.mxu0 0.0
    %2411 = vmatprep.subr.mxu0 0.0
    %2412 = vmatpush2.xpose.msra.mxu0 0.0
    %2413 = vmatprep.subr.mxu0 0.0
    %2414 = vmatpush2.xpose.msra.mxu0 0.0
    %2415 = vmatprep.subr.mxu0 0.0
    %2416 = vmatpush2.xpose.msra.mxu0 0.0
    %2417 = vmatprep.mubr.f32.mxu0 0.0
    %2418 = vmatmul.mubr.f32.gmra.mxu0 %v2349
    %v2419 = vpop.f32.mrf.mxu0
    %v2420 = vadd.f32 0.0, %v2419
    %v2421 = vpop.f32.mrf.mxu0
    %2422 = vdwg.mxu0
    %2423 = vrot.lane.b32.xlu0 %v2182, 104
    %v2424 = vpop.permute.xlu0 %2423
    %2425 = vrot.lane.b32.xlu0 %v2182, 72
    %v2426 = vpop.permute.xlu0 %2425
    %v2427 = vsel %vm344, %v2424, 0
    %v2429 = vsel %vm344, %v2426, 0
    %2431 = vmatprep.subr.mxu0 0.0
    %2432 = vmatpush1.xpose.msra.mxu0 0.0
    %2433 = vmatprep.subr.mxu0 0.0
    %2434 = vmatpush1.xpose.msra.mxu0 0.0
    %2435 = vmatprep.subr.mxu0 0.0
    %2436 = vmatpush1.xpose.msra.mxu0 0.0
    %2437 = vmatprep.subr.mxu0 0.0
    %2438 = vmatpush1.xpose.msra.mxu0 0.0
    %2439 = vmatprep.subr.mxu0 0.0
    %2440 = vmatpush1.xpose.msra.mxu0 0.0
    %2441 = vmatprep.subr.mxu0 0.0
    %2442 = vmatpush1.xpose.msra.mxu0 0.0
    %2443 = vmatprep.subr.mxu0 0.0
    %2444 = vmatpush1.xpose.msra.mxu0 0.0
    %2445 = vmatprep.subr.mxu0 0.0
    %2446 = vmatpush1.xpose.msra.mxu0 0.0
    %2447 = vmatprep.subr.mxu0 0.0
    %2448 = vmatpush1.xpose.msra.mxu0 0.0
    %2449 = vmatprep.subr.mxu0 0.0
    %2450 = vmatpush1.xpose.msra.mxu0 0.0
    %2451 = vmatprep.subr.mxu0 0.0
    %2452 = vmatpush1.xpose.msra.mxu0 0.0
    %2453 = vmatprep.subr.mxu0 0.0
    %2454 = vmatpush1.xpose.msra.mxu0 0.0
    %2455 = vmatprep.subr.mxu0 0.0
    %2456 = vmatpush1.xpose.msra.mxu0 0.0
    %2457 = vmatprep.subr.mxu0 0.0
    %2458 = vmatpush1.xpose.msra.mxu0 0.0
    %2459 = vmatprep.subr.mxu0 0.0
    %2460 = vmatpush1.xpose.msra.mxu0 0.0
    %2461 = vmatprep.subr.mxu0 0.0
    %2462 = vmatpush1.xpose.msra.mxu0 %v2429
    %2463 = vmatprep.subr.mxu0 0.0
    %2464 = vmatpush2.xpose.msra.mxu0 0.0
    %2465 = vmatprep.subr.mxu0 0.0
    %2466 = vmatpush2.xpose.msra.mxu0 0.0
    %2467 = vmatprep.subr.mxu0 0.0
    %2468 = vmatpush2.xpose.msra.mxu0 0.0
    %2469 = vmatprep.subr.mxu0 0.0
    %2470 = vmatpush2.xpose.msra.mxu0 0.0
    %2471 = vmatprep.subr.mxu0 0.0
    %2472 = vmatpush2.xpose.msra.mxu0 0.0
    %2473 = vmatprep.subr.mxu0 0.0
    %2474 = vmatpush2.xpose.msra.mxu0 0.0
    %2475 = vmatprep.subr.mxu0 0.0
    %2476 = vmatpush2.xpose.msra.mxu0 0.0
    %2477 = vmatprep.subr.mxu0 0.0
    %2478 = vmatpush2.xpose.msra.mxu0 0.0
    %2479 = vmatprep.subr.mxu0 0.0
    %2480 = vmatpush2.xpose.msra.mxu0 0.0
    %2481 = vmatprep.subr.mxu0 0.0
    %2482 = vmatpush2.xpose.msra.mxu0 0.0
    %2483 = vmatprep.subr.mxu0 0.0
    %2484 = vmatpush2.xpose.msra.mxu0 0.0
    %2485 = vmatprep.subr.mxu0 0.0
    %2486 = vmatpush2.xpose.msra.mxu0 0.0
    %2487 = vmatprep.subr.mxu0 0.0
    %2488 = vmatpush2.xpose.msra.mxu0 0.0
    %2489 = vmatprep.subr.mxu0 0.0
    %2490 = vmatpush2.xpose.msra.mxu0 0.0
    %2491 = vmatprep.subr.mxu0 0.0
    %2492 = vmatpush2.xpose.msra.mxu0 0.0
    %2493 = vmatprep.subr.mxu0 0.0
    %2494 = vmatpush2.xpose.msra.mxu0 0.0
    %2495 = vmatprep.mubr.f32.mxu0 0.0
    %2496 = vmatmul.mubr.f32.gmra.mxu0 %v2427
    %v2497 = vpop.f32.mrf.mxu0
    %v2498 = vadd.f32 0.0, %v2497
    %v2499 = vpop.f32.mrf.mxu0
    %2500 = vdwg.mxu0
    %2502 = vrot.lane.b32.xlu0 %v2187, 96
    %v2503 = vpop.permute.xlu0 %2502
    %v2504 = vsel %vm344, %v2187, 0
    %v2506 = vsel %vm344, %v2503, 0
    %2508 = vmatprep.subr.mxu0 0.0
    %2509 = vmatpush1.xpose.msra.mxu0 0.0
    %2510 = vmatprep.subr.mxu0 0.0
    %2511 = vmatpush1.xpose.msra.mxu0 0.0
    %2512 = vmatprep.subr.mxu0 0.0
    %2513 = vmatpush1.xpose.msra.mxu0 0.0
    %2514 = vmatprep.subr.mxu0 0.0
    %2515 = vmatpush1.xpose.msra.mxu0 0.0
    %2516 = vmatprep.subr.mxu0 0.0
    %2517 = vmatpush1.xpose.msra.mxu0 0.0
    %2518 = vmatprep.subr.mxu0 0.0
    %2519 = vmatpush1.xpose.msra.mxu0 0.0
    %2520 = vmatprep.subr.mxu0 0.0
    %2521 = vmatpush1.xpose.msra.mxu0 0.0
    %2522 = vmatprep.subr.mxu0 0.0
    %2523 = vmatpush1.xpose.msra.mxu0 0.0
    %2524 = vmatprep.subr.mxu0 0.0
    %2525 = vmatpush1.xpose.msra.mxu0 0.0
    %2526 = vmatprep.subr.mxu0 0.0
    %2527 = vmatpush1.xpose.msra.mxu0 0.0
    %2528 = vmatprep.subr.mxu0 0.0
    %2529 = vmatpush1.xpose.msra.mxu0 0.0
    %2530 = vmatprep.subr.mxu0 0.0
    %2531 = vmatpush1.xpose.msra.mxu0 0.0
    %2532 = vmatprep.subr.mxu0 0.0
    %2533 = vmatpush1.xpose.msra.mxu0 0.0
    %2534 = vmatprep.subr.mxu0 0.0
    %2535 = vmatpush1.xpose.msra.mxu0 0.0
    %2536 = vmatprep.subr.mxu0 0.0
    %2537 = vmatpush1.xpose.msra.mxu0 0.0
    %2538 = vmatprep.subr.mxu0 0.0
    %2539 = vmatpush1.xpose.msra.mxu0 %v2506
    %2540 = vmatprep.subr.mxu0 0.0
    %2541 = vmatpush2.xpose.msra.mxu0 0.0
    %2542 = vmatprep.subr.mxu0 0.0
    %2543 = vmatpush2.xpose.msra.mxu0 0.0
    %2544 = vmatprep.subr.mxu0 0.0
    %2545 = vmatpush2.xpose.msra.mxu0 0.0
    %2546 = vmatprep.subr.mxu0 0.0
    %2547 = vmatpush2.xpose.msra.mxu0 0.0
    %2548 = vmatprep.subr.mxu0 0.0
    %2549 = vmatpush2.xpose.msra.mxu0 0.0
    %2550 = vmatprep.subr.mxu0 0.0
    %2551 = vmatpush2.xpose.msra.mxu0 0.0
    %2552 = vmatprep.subr.mxu0 0.0
    %2553 = vmatpush2.xpose.msra.mxu0 0.0
    %2554 = vmatprep.subr.mxu0 0.0
    %2555 = vmatpush2.xpose.msra.mxu0 0.0
    %2556 = vmatprep.subr.mxu0 0.0
    %2557 = vmatpush2.xpose.msra.mxu0 0.0
    %2558 = vmatprep.subr.mxu0 0.0
    %2559 = vmatpush2.xpose.msra.mxu0 0.0
    %2560 = vmatprep.subr.mxu0 0.0
    %2561 = vmatpush2.xpose.msra.mxu0 0.0
    %2562 = vmatprep.subr.mxu0 0.0
    %2563 = vmatpush2.xpose.msra.mxu0 0.0
    %2564 = vmatprep.subr.mxu0 0.0
    %2565 = vmatpush2.xpose.msra.mxu0 0.0
    %2566 = vmatprep.subr.mxu0 0.0
    %2567 = vmatpush2.xpose.msra.mxu0 0.0
    %2568 = vmatprep.subr.mxu0 0.0
    %2569 = vmatpush2.xpose.msra.mxu0 0.0
    %2570 = vmatprep.subr.mxu0 0.0
    %2571 = vmatpush2.xpose.msra.mxu0 0.0
    %2572 = vmatprep.mubr.f32.mxu0 0.0
    %2573 = vmatmul.mubr.f32.gmra.mxu0 %v2504
    %v2574 = vpop.f32.mrf.mxu0
    %v2575 = vadd.f32 0.0, %v2574
    %v2576 = vpop.f32.mrf.mxu0
    %2577 = vdwg.mxu0
    %2578 = vrot.lane.b32.xlu0 %v2187, 120
    %v2579 = vpop.permute.xlu0 %2578
    %2580 = vrot.lane.b32.xlu0 %v2187, 88
    %v2581 = vpop.permute.xlu0 %2580
    %v2582 = vsel %vm344, %v2579, 0
    %v2584 = vsel %vm344, %v2581, 0
    %2586 = vmatprep.subr.mxu0 0.0
    %2587 = vmatpush1.xpose.msra.mxu0 0.0
    %2588 = vmatprep.subr.mxu0 0.0
    %2589 = vmatpush1.xpose.msra.mxu0 0.0
    %2590 = vmatprep.subr.mxu0 0.0
    %2591 = vmatpush1.xpose.msra.mxu0 0.0
    %2592 = vmatprep.subr.mxu0 0.0
    %2593 = vmatpush1.xpose.msra.mxu0 0.0
    %2594 = vmatprep.subr.mxu0 0.0
    %2595 = vmatpush1.xpose.msra.mxu0 0.0
    %2596 = vmatprep.subr.mxu0 0.0
    %2597 = vmatpush1.xpose.msra.mxu0 0.0
    %2598 = vmatprep.subr.mxu0 0.0
    %2599 = vmatpush1.xpose.msra.mxu0 0.0
    %2600 = vmatprep.subr.mxu0 0.0
    %2601 = vmatpush1.xpose.msra.mxu0 0.0
    %2602 = vmatprep.subr.mxu0 0.0
    %2603 = vmatpush1.xpose.msra.mxu0 0.0
    %2604 = vmatprep.subr.mxu0 0.0
    %2605 = vmatpush1.xpose.msra.mxu0 0.0
    %2606 = vmatprep.subr.mxu0 0.0
    %2607 = vmatpush1.xpose.msra.mxu0 0.0
    %2608 = vmatprep.subr.mxu0 0.0
    %2609 = vmatpush1.xpose.msra.mxu0 0.0
    %2610 = vmatprep.subr.mxu0 0.0
    %2611 = vmatpush1.xpose.msra.mxu0 0.0
    %2612 = vmatprep.subr.mxu0 0.0
    %2613 = vmatpush1.xpose.msra.mxu0 0.0
    %2614 = vmatprep.subr.mxu0 0.0
    %2615 = vmatpush1.xpose.msra.mxu0 0.0
    %2616 = vmatprep.subr.mxu0 0.0
    %2617 = vmatpush1.xpose.msra.mxu0 %v2584
    %2618 = vmatprep.subr.mxu0 0.0
    %2619 = vmatpush2.xpose.msra.mxu0 0.0
    %2620 = vmatprep.subr.mxu0 0.0
    %2621 = vmatpush2.xpose.msra.mxu0 0.0
    %2622 = vmatprep.subr.mxu0 0.0
    %2623 = vmatpush2.xpose.msra.mxu0 0.0
    %2624 = vmatprep.subr.mxu0 0.0
    %2625 = vmatpush2.xpose.msra.mxu0 0.0
    %2626 = vmatprep.subr.mxu0 0.0
    %2627 = vmatpush2.xpose.msra.mxu0 0.0
    %2628 = vmatprep.subr.mxu0 0.0
    %2629 = vmatpush2.xpose.msra.mxu0 0.0
    %2630 = vmatprep.subr.mxu0 0.0
    %2631 = vmatpush2.xpose.msra.mxu0 0.0
    %2632 = vmatprep.subr.mxu0 0.0
    %2633 = vmatpush2.xpose.msra.mxu0 0.0
    %2634 = vmatprep.subr.mxu0 0.0
    %2635 = vmatpush2.xpose.msra.mxu0 0.0
    %2636 = vmatprep.subr.mxu0 0.0
    %2637 = vmatpush2.xpose.msra.mxu0 0.0
    %2638 = vmatprep.subr.mxu0 0.0
    %2639 = vmatpush2.xpose.msra.mxu0 0.0
    %2640 = vmatprep.subr.mxu0 0.0
    %2641 = vmatpush2.xpose.msra.mxu0 0.0
    %2642 = vmatprep.subr.mxu0 0.0
    %2643 = vmatpush2.xpose.msra.mxu0 0.0
    %2644 = vmatprep.subr.mxu0 0.0
    %2645 = vmatpush2.xpose.msra.mxu0 0.0
    %2646 = vmatprep.subr.mxu0 0.0
    %2647 = vmatpush2.xpose.msra.mxu0 0.0
    %2648 = vmatprep.subr.mxu0 0.0
    %2649 = vmatpush2.xpose.msra.mxu0 0.0
    %2650 = vmatprep.mubr.f32.mxu0 0.0
    %2651 = vmatmul.mubr.f32.gmra.mxu0 %v2582
    %v2652 = vpop.f32.mrf.mxu0
    %v2653 = vadd.f32 0.0, %v2652
    %v2654 = vpop.f32.mrf.mxu0
    %2655 = vdwg.mxu0
    %2656 = vrot.lane.b32.xlu0 %v2187, 112
    %v2657 = vpop.permute.xlu0 %2656
    %2658 = vrot.lane.b32.xlu0 %v2187, 80
    %v2659 = vpop.permute.xlu0 %2658
    %v2660 = vsel %vm344, %v2657, 0
    %v2662 = vsel %vm344, %v2659, 0
    %2664 = vmatprep.subr.mxu0 0.0
    %2665 = vmatpush1.xpose.msra.mxu0 0.0
    %2666 = vmatprep.subr.mxu0 0.0
    %2667 = vmatpush1.xpose.msra.mxu0 0.0
    %2668 = vmatprep.subr.mxu0 0.0
    %2669 = vmatpush1.xpose.msra.mxu0 0.0
    %2670 = vmatprep.subr.mxu0 0.0
    %2671 = vmatpush1.xpose.msra.mxu0 0.0
    %2672 = vmatprep.subr.mxu0 0.0
    %2673 = vmatpush1.xpose.msra.mxu0 0.0
    %2674 = vmatprep.subr.mxu0 0.0
    %2675 = vmatpush1.xpose.msra.mxu0 0.0
    %2676 = vmatprep.subr.mxu0 0.0
    %2677 = vmatpush1.xpose.msra.mxu0 0.0
    %2678 = vmatprep.subr.mxu0 0.0
    %2679 = vmatpush1.xpose.msra.mxu0 0.0
    %2680 = vmatprep.subr.mxu0 0.0
    %2681 = vmatpush1.xpose.msra.mxu0 0.0
    %2682 = vmatprep.subr.mxu0 0.0
    %2683 = vmatpush1.xpose.msra.mxu0 0.0
    %2684 = vmatprep.subr.mxu0 0.0
    %2685 = vmatpush1.xpose.msra.mxu0 0.0
    %2686 = vmatprep.subr.mxu0 0.0
    %2687 = vmatpush1.xpose.msra.mxu0 0.0
    %2688 = vmatprep.subr.mxu0 0.0
    %2689 = vmatpush1.xpose.msra.mxu0 0.0
    %2690 = vmatprep.subr.mxu0 0.0
    %2691 = vmatpush1.xpose.msra.mxu0 0.0
    %2692 = vmatprep.subr.mxu0 0.0
    %2693 = vmatpush1.xpose.msra.mxu0 0.0
    %2694 = vmatprep.subr.mxu0 0.0
    %2695 = vmatpush1.xpose.msra.mxu0 %v2662
    %2696 = vmatprep.subr.mxu0 0.0
    %2697 = vmatpush2.xpose.msra.mxu0 0.0
    %2698 = vmatprep.subr.mxu0 0.0
    %2699 = vmatpush2.xpose.msra.mxu0 0.0
    %2700 = vmatprep.subr.mxu0 0.0
    %2701 = vmatpush2.xpose.msra.mxu0 0.0
    %2702 = vmatprep.subr.mxu0 0.0
    %2703 = vmatpush2.xpose.msra.mxu0 0.0
    %2704 = vmatprep.subr.mxu0 0.0
    %2705 = vmatpush2.xpose.msra.mxu0 0.0
    %2706 = vmatprep.subr.mxu0 0.0
    %2707 = vmatpush2.xpose.msra.mxu0 0.0
    %2708 = vmatprep.subr.mxu0 0.0
    %2709 = vmatpush2.xpose.msra.mxu0 0.0
    %2710 = vmatprep.subr.mxu0 0.0
    %2711 = vmatpush2.xpose.msra.mxu0 0.0
    %2712 = vmatprep.subr.mxu0 0.0
    %2713 = vmatpush2.xpose.msra.mxu0 0.0
    %2714 = vmatprep.subr.mxu0 0.0
    %2715 = vmatpush2.xpose.msra.mxu0 0.0
    %2716 = vmatprep.subr.mxu0 0.0
    %2717 = vmatpush2.xpose.msra.mxu0 0.0
    %2718 = vmatprep.subr.mxu0 0.0
    %2719 = vmatpush2.xpose.msra.mxu0 0.0
    %2720 = vmatprep.subr.mxu0 0.0
    %2721 = vmatpush2.xpose.msra.mxu0 0.0
    %2722 = vmatprep.subr.mxu0 0.0
    %2723 = vmatpush2.xpose.msra.mxu0 0.0
    %2724 = vmatprep.subr.mxu0 0.0
    %2725 = vmatpush2.xpose.msra.mxu0 0.0
    %2726 = vmatprep.subr.mxu0 0.0
    %2727 = vmatpush2.xpose.msra.mxu0 0.0
    %2728 = vmatprep.mubr.f32.mxu0 0.0
    %2729 = vmatmul.mubr.f32.gmra.mxu0 %v2660
    %v2730 = vpop.f32.mrf.mxu0
    %v2731 = vadd.f32 0.0, %v2730
    %v2732 = vpop.f32.mrf.mxu0
    %2733 = vdwg.mxu0
    %2734 = vrot.lane.b32.xlu0 %v2187, 104
    %v2735 = vpop.permute.xlu0 %2734
    %2736 = vrot.lane.b32.xlu0 %v2187, 72
    %v2737 = vpop.permute.xlu0 %2736
    %v2738 = vsel %vm344, %v2735, 0
    %v2740 = vsel %vm344, %v2737, 0
    %2742 = vmatprep.subr.mxu0 0.0
    %2743 = vmatpush1.xpose.msra.mxu0 0.0
    %2744 = vmatprep.subr.mxu0 0.0
    %2745 = vmatpush1.xpose.msra.mxu0 0.0
    %2746 = vmatprep.subr.mxu0 0.0
    %2747 = vmatpush1.xpose.msra.mxu0 0.0
    %2748 = vmatprep.subr.mxu0 0.0
    %2749 = vmatpush1.xpose.msra.mxu0 0.0
    %2750 = vmatprep.subr.mxu0 0.0
    %2751 = vmatpush1.xpose.msra.mxu0 0.0
    %2752 = vmatprep.subr.mxu0 0.0
    %2753 = vmatpush1.xpose.msra.mxu0 0.0
    %2754 = vmatprep.subr.mxu0 0.0
    %2755 = vmatpush1.xpose.msra.mxu0 0.0
    %2756 = vmatprep.subr.mxu0 0.0
    %2757 = vmatpush1.xpose.msra.mxu0 0.0
    %2758 = vmatprep.subr.mxu0 0.0
    %2759 = vmatpush1.xpose.msra.mxu0 0.0
    %2760 = vmatprep.subr.mxu0 0.0
    %2761 = vmatpush1.xpose.msra.mxu0 0.0
    %2762 = vmatprep.subr.mxu0 0.0
    %2763 = vmatpush1.xpose.msra.mxu0 0.0
    %2764 = vmatprep.subr.mxu0 0.0
    %2765 = vmatpush1.xpose.msra.mxu0 0.0
    %2766 = vmatprep.subr.mxu0 0.0
    %2767 = vmatpush1.xpose.msra.mxu0 0.0
    %2768 = vmatprep.subr.mxu0 0.0
    %2769 = vmatpush1.xpose.msra.mxu0 0.0
    %2770 = vmatprep.subr.mxu0 0.0
    %2771 = vmatpush1.xpose.msra.mxu0 0.0
    %2772 = vmatprep.subr.mxu0 0.0
    %2773 = vmatpush1.xpose.msra.mxu0 %v2740
    %2774 = vmatprep.subr.mxu0 0.0
    %2775 = vmatpush2.xpose.msra.mxu0 0.0
    %2776 = vmatprep.subr.mxu0 0.0
    %2777 = vmatpush2.xpose.msra.mxu0 0.0
    %2778 = vmatprep.subr.mxu0 0.0
    %2779 = vmatpush2.xpose.msra.mxu0 0.0
    %2780 = vmatprep.subr.mxu0 0.0
    %2781 = vmatpush2.xpose.msra.mxu0 0.0
    %2782 = vmatprep.subr.mxu0 0.0
    %2783 = vmatpush2.xpose.msra.mxu0 0.0
    %2784 = vmatprep.subr.mxu0 0.0
    %2785 = vmatpush2.xpose.msra.mxu0 0.0
    %2786 = vmatprep.subr.mxu0 0.0
    %2787 = vmatpush2.xpose.msra.mxu0 0.0
    %2788 = vmatprep.subr.mxu0 0.0
    %2789 = vmatpush2.xpose.msra.mxu0 0.0
    %2790 = vmatprep.subr.mxu0 0.0
    %2791 = vmatpush2.xpose.msra.mxu0 0.0
    %2792 = vmatprep.subr.mxu0 0.0
    %2793 = vmatpush2.xpose.msra.mxu0 0.0
    %2794 = vmatprep.subr.mxu0 0.0
    %2795 = vmatpush2.xpose.msra.mxu0 0.0
    %2796 = vmatprep.subr.mxu0 0.0
    %2797 = vmatpush2.xpose.msra.mxu0 0.0
    %2798 = vmatprep.subr.mxu0 0.0
    %2799 = vmatpush2.xpose.msra.mxu0 0.0
    %2800 = vmatprep.subr.mxu0 0.0
    %2801 = vmatpush2.xpose.msra.mxu0 0.0
    %2802 = vmatprep.subr.mxu0 0.0
    %2803 = vmatpush2.xpose.msra.mxu0 0.0
    %2804 = vmatprep.subr.mxu0 0.0
    %2805 = vmatpush2.xpose.msra.mxu0 0.0
    %2806 = vmatprep.mubr.f32.mxu0 0.0
    %2807 = vmatmul.mubr.f32.gmra.mxu0 %v2738
    %v2808 = vpop.f32.mrf.mxu0
    %v2809 = vadd.f32 0.0, %v2808
    %v2810 = vpop.f32.mrf.mxu0
    %2811 = vdwg.mxu0
    %v2812 = vsel %vm344, %v2264, -inf
    %2813 = vmax.xlane.f32.xlu0 %v2812
    %v2814 = vpop.xlane.xlu0 %2813
    %v2815 = vsel %vm344, %v2342, -inf
    %2816 = vmax.xlane.f32.xlu0 %v2815
    %v2817 = vpop.xlane.xlu0 %2816
    %v2818 = vsel %vm344, %v2420, -inf
    %2819 = vmax.xlane.f32.xlu0 %v2818
    %v2820 = vpop.xlane.xlu0 %2819
    %v2821 = vsel %vm344, %v2498, -inf
    %2822 = vmax.xlane.f32.xlu0 %v2821
    %v2823 = vpop.xlane.xlu0 %2822
    %v2824 = vsel %vm344, %v2575, -inf
    %2825 = vmax.xlane.f32.xlu0 %v2824
    %v2826 = vpop.xlane.xlu0 %2825
    %v2827 = vsel %vm344, %v2653, -inf
    %2828 = vmax.xlane.f32.xlu0 %v2827
    %v2829 = vpop.xlane.xlu0 %2828
    %v2830 = vsel %vm344, %v2731, -inf
    %2831 = vmax.xlane.f32.xlu0 %v2830
    %v2832 = vpop.xlane.xlu0 %2831
    %v2833 = vsel %vm344, %v2809, -inf
    %2834 = vmax.xlane.f32.xlu0 %v2833
    %v2835 = vpop.xlane.xlu0 %2834
    %v2836 = vsub.f32 %v2264, %v2814
    %v2837 = vsub.f32 %v2342, %v2817
    %v2838 = vsub.f32 %v2420, %v2820
    %v2839 = vsub.f32 %v2498, %v2823
    %v2840 = vsub.f32 %v2575, %v2826
    %v2841 = vsub.f32 %v2653, %v2829
    %v2842 = vsub.f32 %v2731, %v2832
    %v2843 = vsub.f32 %v2809, %v2835
    %v2844 = vmul.f32 %v2836, 1.442695
    %v2845 = vpow.pop %v2844
    %v2846 = vmul.f32 %v2837, 1.442695
    %v2847 = vpow.pop %v2846
    %v2848 = vmul.f32 %v2838, 1.442695
    %v2849 = vpow.pop %v2848
    %v2850 = vmul.f32 %v2839, 1.442695
    %v2851 = vpow.pop %v2850
    %v2852 = vmul.f32 %v2840, 1.442695
    %v2853 = vpow.pop %v2852
    %v2854 = vmul.f32 %v2841, 1.442695
    %v2855 = vpow.pop %v2854
    %v2856 = vmul.f32 %v2842, 1.442695
    %v2857 = vpow.pop %v2856
    %v2858 = vmul.f32 %v2843, 1.442695
    %v2859 = vpow.pop %v2858
    %v2860 = vsel %vm344, %v2845, 0.0
    %2861 = vadd.xlane.f32.xlu0 %v2860
    %v2862 = vpop.xlane.xlu0 %2861
    %v2863 = vsel %vm344, %v2847, 0.0
    %2864 = vadd.xlane.f32.xlu0 %v2863
    %v2865 = vpop.xlane.xlu0 %2864
    %v2866 = vsel %vm344, %v2849, 0.0
    %2867 = vadd.xlane.f32.xlu0 %v2866
    %v2868 = vpop.xlane.xlu0 %2867
    %v2869 = vsel %vm344, %v2851, 0.0
    %2870 = vadd.xlane.f32.xlu0 %v2869
    %v2871 = vpop.xlane.xlu0 %2870
    %v2872 = vsel %vm344, %v2853, 0.0
    %2873 = vadd.xlane.f32.xlu0 %v2872
    %v2874 = vpop.xlane.xlu0 %2873
    %v2875 = vsel %vm344, %v2855, 0.0
    %2876 = vadd.xlane.f32.xlu0 %v2875
    %v2877 = vpop.xlane.xlu0 %2876
    %v2878 = vsel %vm344, %v2857, 0.0
    %2879 = vadd.xlane.f32.xlu0 %v2878
    %v2880 = vpop.xlane.xlu0 %2879
    %v2881 = vsel %vm344, %v2859, 0.0
    %2882 = vadd.xlane.f32.xlu0 %v2881
    %v2883 = vpop.xlane.xlu0 %2882
    %v2884 = vrcp.pop %v2862
    %v2885 = vrcp.pop %v2865
    %v2886 = vrcp.pop %v2868
    %v2887 = vrcp.pop %v2871
    %v2888 = vrcp.pop %v2874
    %v2889 = vrcp.pop %v2877
    %v2890 = vrcp.pop %v2880
    %v2891 = vrcp.pop %v2883
    %v2892 = vmul.f32 %v2845, %v2884
    %v2893 = vmul.f32 %v2847, %v2885
    %v2894 = vmul.f32 %v2849, %v2886
    %v2895 = vmul.f32 %v2851, %v2887
    %v2896 = vmul.f32 %v2853, %v2888
    %v2897 = vmul.f32 %v2855, %v2889
    %v2898 = vmul.f32 %v2857, %v2890
    %v2899 = vmul.f32 %v2859, %v2891
    %2900 = vrot.lane.b32.xlu0 %v2182, 64
    %v2901 = vpop.permute.xlu0 %2900
    %v2904 = vsel %vm344, %v2892, 0
    %2906 = vmatprep.subr.mxu0 0.0
    %2907 = vmatpush1.msra.mxu0 0.0
    %2908 = vmatprep.subr.mxu0 0.0
    %2909 = vmatpush1.msra.mxu0 0.0
    %2910 = vmatprep.subr.mxu0 0.0
    %2911 = vmatpush1.msra.mxu0 0.0
    %2912 = vmatprep.subr.mxu0 0.0
    %2913 = vmatpush1.msra.mxu0 0.0
    %2914 = vmatprep.subr.mxu0 0.0
    %2915 = vmatpush1.msra.mxu0 0.0
    %2916 = vmatprep.subr.mxu0 0.0
    %2917 = vmatpush1.msra.mxu0 0.0
    %2918 = vmatprep.subr.mxu0 0.0
    %2919 = vmatpush1.msra.mxu0 0.0
    %2920 = vmatprep.subr.mxu0 0.0
    %2921 = vmatpush1.msra.mxu0 0.0
    %2922 = vmatprep.subr.mxu0 0.0
    %2923 = vmatpush1.msra.mxu0 0.0
    %2924 = vmatprep.subr.mxu0 0.0
    %2925 = vmatpush1.msra.mxu0 0.0
    %2926 = vmatprep.subr.mxu0 0.0
    %2927 = vmatpush1.msra.mxu0 0.0
    %2928 = vmatprep.subr.mxu0 0.0
    %2929 = vmatpush1.msra.mxu0 0.0
    %2930 = vmatprep.subr.mxu0 0.0
    %2931 = vmatpush1.msra.mxu0 0.0
    %2932 = vmatprep.subr.mxu0 0.0
    %2933 = vmatpush1.msra.mxu0 0.0
    %2934 = vmatprep.subr.mxu0 0.0
    %2935 = vmatpush1.msra.mxu0 0.0
    %2936 = vmatprep.subr.mxu0 0.0
    %2937 = vmatpush1.msra.mxu0 %v2901
    %2938 = vmatprep.subr.mxu0 0.0
    %2939 = vmatpush2.msra.mxu0 0.0
    %2940 = vmatprep.subr.mxu0 0.0
    %2941 = vmatpush2.msra.mxu0 0.0
    %2942 = vmatprep.subr.mxu0 0.0
    %2943 = vmatpush2.msra.mxu0 0.0
    %2944 = vmatprep.subr.mxu0 0.0
    %2945 = vmatpush2.msra.mxu0 0.0
    %2946 = vmatprep.subr.mxu0 0.0
    %2947 = vmatpush2.msra.mxu0 0.0
    %2948 = vmatprep.subr.mxu0 0.0
    %2949 = vmatpush2.msra.mxu0 0.0
    %2950 = vmatprep.subr.mxu0 0.0
    %2951 = vmatpush2.msra.mxu0 0.0
    %2952 = vmatprep.subr.mxu0 0.0
    %2953 = vmatpush2.msra.mxu0 0.0
    %2954 = vmatprep.subr.mxu0 0.0
    %2955 = vmatpush2.msra.mxu0 0.0
    %2956 = vmatprep.subr.mxu0 0.0
    %2957 = vmatpush2.msra.mxu0 0.0
    %2958 = vmatprep.subr.mxu0 0.0
    %2959 = vmatpush2.msra.mxu0 0.0
    %2960 = vmatprep.subr.mxu0 0.0
    %2961 = vmatpush2.msra.mxu0 0.0
    %2962 = vmatprep.subr.mxu0 0.0
    %2963 = vmatpush2.msra.mxu0 0.0
    %2964 = vmatprep.subr.mxu0 0.0
    %2965 = vmatpush2.msra.mxu0 0.0
    %2966 = vmatprep.subr.mxu0 0.0
    %2967 = vmatpush2.msra.mxu0 0.0
    %2968 = vmatprep.subr.mxu0 0.0
    %2969 = vmatpush2.msra.mxu0 0.0
    %2970 = vmatprep.mubr.f32.mxu0 0.0
    %2971 = vmatmul.mubr.f32.gmra.mxu0 %v2904
    %v2972 = vpop.f32.mrf.mxu0
    %v2973 = vadd.f32 0.0, %v2972
    %v2974 = vpop.f32.mrf.mxu0
    %2975 = vdwg.mxu0
    %2976 = vrot.lane.b32.xlu0 %v2182, 56
    %v2977 = vpop.permute.xlu0 %2976
    %v2980 = vsel %vm344, %v2893, 0
    %2982 = vmatprep.subr.mxu0 0.0
    %2983 = vmatpush1.msra.mxu0 0.0
    %2984 = vmatprep.subr.mxu0 0.0
    %2985 = vmatpush1.msra.mxu0 0.0
    %2986 = vmatprep.subr.mxu0 0.0
    %2987 = vmatpush1.msra.mxu0 0.0
    %2988 = vmatprep.subr.mxu0 0.0
    %2989 = vmatpush1.msra.mxu0 0.0
    %2990 = vmatprep.subr.mxu0 0.0
    %2991 = vmatpush1.msra.mxu0 0.0
    %2992 = vmatprep.subr.mxu0 0.0
    %2993 = vmatpush1.msra.mxu0 0.0
    %2994 = vmatprep.subr.mxu0 0.0
    %2995 = vmatpush1.msra.mxu0 0.0
    %2996 = vmatprep.subr.mxu0 0.0
    %2997 = vmatpush1.msra.mxu0 0.0
    %2998 = vmatprep.subr.mxu0 0.0
    %2999 = vmatpush1.msra.mxu0 0.0
    %3000 = vmatprep.subr.mxu0 0.0
    %3001 = vmatpush1.msra.mxu0 0.0
    %3002 = vmatprep.subr.mxu0 0.0
    %3003 = vmatpush1.msra.mxu0 0.0
    %3004 = vmatprep.subr.mxu0 0.0
    %3005 = vmatpush1.msra.mxu0 0.0
    %3006 = vmatprep.subr.mxu0 0.0
    %3007 = vmatpush1.msra.mxu0 0.0
    %3008 = vmatprep.subr.mxu0 0.0
    %3009 = vmatpush1.msra.mxu0 0.0
    %3010 = vmatprep.subr.mxu0 0.0
    %3011 = vmatpush1.msra.mxu0 0.0
    %3012 = vmatprep.subr.mxu0 0.0
    %3013 = vmatpush1.msra.mxu0 %v2977
    %3014 = vmatprep.subr.mxu0 0.0
    %3015 = vmatpush2.msra.mxu0 0.0
    %3016 = vmatprep.subr.mxu0 0.0
    %3017 = vmatpush2.msra.mxu0 0.0
    %3018 = vmatprep.subr.mxu0 0.0
    %3019 = vmatpush2.msra.mxu0 0.0
    %3020 = vmatprep.subr.mxu0 0.0
    %3021 = vmatpush2.msra.mxu0 0.0
    %3022 = vmatprep.subr.mxu0 0.0
    %3023 = vmatpush2.msra.mxu0 0.0
    %3024 = vmatprep.subr.mxu0 0.0
    %3025 = vmatpush2.msra.mxu0 0.0
    %3026 = vmatprep.subr.mxu0 0.0
    %3027 = vmatpush2.msra.mxu0 0.0
    %3028 = vmatprep.subr.mxu0 0.0
    %3029 = vmatpush2.msra.mxu0 0.0
    %3030 = vmatprep.subr.mxu0 0.0
    %3031 = vmatpush2.msra.mxu0 0.0
    %3032 = vmatprep.subr.mxu0 0.0
    %3033 = vmatpush2.msra.mxu0 0.0
    %3034 = vmatprep.subr.mxu0 0.0
    %3035 = vmatpush2.msra.mxu0 0.0
    %3036 = vmatprep.subr.mxu0 0.0
    %3037 = vmatpush2.msra.mxu0 0.0
    %3038 = vmatprep.subr.mxu0 0.0
    %3039 = vmatpush2.msra.mxu0 0.0
    %3040 = vmatprep.subr.mxu0 0.0
    %3041 = vmatpush2.msra.mxu0 0.0
    %3042 = vmatprep.subr.mxu0 0.0
    %3043 = vmatpush2.msra.mxu0 0.0
    %3044 = vmatprep.subr.mxu0 0.0
    %3045 = vmatpush2.msra.mxu0 0.0
    %3046 = vmatprep.mubr.f32.mxu0 0.0
    %3047 = vmatmul.mubr.f32.gmra.mxu0 %v2980
    %v3048 = vpop.f32.mrf.mxu0
    %v3049 = vadd.f32 0.0, %v3048
    %v3050 = vpop.f32.mrf.mxu0
    %3051 = vdwg.mxu0
    %3052 = vrot.lane.b32.xlu0 %v2182, 48
    %v3053 = vpop.permute.xlu0 %3052
    %v3056 = vsel %vm344, %v2894, 0
    %3058 = vmatprep.subr.mxu0 0.0
    %3059 = vmatpush1.msra.mxu0 0.0
    %3060 = vmatprep.subr.mxu0 0.0
    %3061 = vmatpush1.msra.mxu0 0.0
    %3062 = vmatprep.subr.mxu0 0.0
    %3063 = vmatpush1.msra.mxu0 0.0
    %3064 = vmatprep.subr.mxu0 0.0
    %3065 = vmatpush1.msra.mxu0 0.0
    %3066 = vmatprep.subr.mxu0 0.0
    %3067 = vmatpush1.msra.mxu0 0.0
    %3068 = vmatprep.subr.mxu0 0.0
    %3069 = vmatpush1.msra.mxu0 0.0
    %3070 = vmatprep.subr.mxu0 0.0
    %3071 = vmatpush1.msra.mxu0 0.0
    %3072 = vmatprep.subr.mxu0 0.0
    %3073 = vmatpush1.msra.mxu0 0.0
    %3074 = vmatprep.subr.mxu0 0.0
    %3075 = vmatpush1.msra.mxu0 0.0
    %3076 = vmatprep.subr.mxu0 0.0
    %3077 = vmatpush1.msra.mxu0 0.0
    %3078 = vmatprep.subr.mxu0 0.0
    %3079 = vmatpush1.msra.mxu0 0.0
    %3080 = vmatprep.subr.mxu0 0.0
    %3081 = vmatpush1.msra.mxu0 0.0
    %3082 = vmatprep.subr.mxu0 0.0
    %3083 = vmatpush1.msra.mxu0 0.0
    %3084 = vmatprep.subr.mxu0 0.0
    %3085 = vmatpush1.msra.mxu0 0.0
    %3086 = vmatprep.subr.mxu0 0.0
    %3087 = vmatpush1.msra.mxu0 0.0
    %3088 = vmatprep.subr.mxu0 0.0
    %3089 = vmatpush1.msra.mxu0 %v3053
    %3090 = vmatprep.subr.mxu0 0.0
    %3091 = vmatpush2.msra.mxu0 0.0
    %3092 = vmatprep.subr.mxu0 0.0
    %3093 = vmatpush2.msra.mxu0 0.0
    %3094 = vmatprep.subr.mxu0 0.0
    %3095 = vmatpush2.msra.mxu0 0.0
    %3096 = vmatprep.subr.mxu0 0.0
    %3097 = vmatpush2.msra.mxu0 0.0
    %3098 = vmatprep.subr.mxu0 0.0
    %3099 = vmatpush2.msra.mxu0 0.0
    %3100 = vmatprep.subr.mxu0 0.0
    %3101 = vmatpush2.msra.mxu0 0.0
    %3102 = vmatprep.subr.mxu0 0.0
    %3103 = vmatpush2.msra.mxu0 0.0
    %3104 = vmatprep.subr.mxu0 0.0
    %3105 = vmatpush2.msra.mxu0 0.0
    %3106 = vmatprep.subr.mxu0 0.0
    %3107 = vmatpush2.msra.mxu0 0.0
    %3108 = vmatprep.subr.mxu0 0.0
    %3109 = vmatpush2.msra.mxu0 0.0
    %3110 = vmatprep.subr.mxu0 0.0
    %3111 = vmatpush2.msra.mxu0 0.0
    %3112 = vmatprep.subr.mxu0 0.0
    %3113 = vmatpush2.msra.mxu0 0.0
    %3114 = vmatprep.subr.mxu0 0.0
    %3115 = vmatpush2.msra.mxu0 0.0
    %3116 = vmatprep.subr.mxu0 0.0
    %3117 = vmatpush2.msra.mxu0 0.0
    %3118 = vmatprep.subr.mxu0 0.0
    %3119 = vmatpush2.msra.mxu0 0.0
    %3120 = vmatprep.subr.mxu0 0.0
    %3121 = vmatpush2.msra.mxu0 0.0
    %3122 = vmatprep.mubr.f32.mxu0 0.0
    %3123 = vmatmul.mubr.f32.gmra.mxu0 %v3056
    %v3124 = vpop.f32.mrf.mxu0
    %v3125 = vadd.f32 0.0, %v3124
    %v3126 = vpop.f32.mrf.mxu0
    %3127 = vdwg.mxu0
    %3128 = vrot.lane.b32.xlu0 %v2182, 40
    %v3129 = vpop.permute.xlu0 %3128
    %v3132 = vsel %vm344, %v2895, 0
    %3134 = vmatprep.subr.mxu0 0.0
    %3135 = vmatpush1.msra.mxu0 0.0
    %3136 = vmatprep.subr.mxu0 0.0
    %3137 = vmatpush1.msra.mxu0 0.0
    %3138 = vmatprep.subr.mxu0 0.0
    %3139 = vmatpush1.msra.mxu0 0.0
    %3140 = vmatprep.subr.mxu0 0.0
    %3141 = vmatpush1.msra.mxu0 0.0
    %3142 = vmatprep.subr.mxu0 0.0
    %3143 = vmatpush1.msra.mxu0 0.0
    %3144 = vmatprep.subr.mxu0 0.0
    %3145 = vmatpush1.msra.mxu0 0.0
    %3146 = vmatprep.subr.mxu0 0.0
    %3147 = vmatpush1.msra.mxu0 0.0
    %3148 = vmatprep.subr.mxu0 0.0
    %3149 = vmatpush1.msra.mxu0 0.0
    %3150 = vmatprep.subr.mxu0 0.0
    %3151 = vmatpush1.msra.mxu0 0.0
    %3152 = vmatprep.subr.mxu0 0.0
    %3153 = vmatpush1.msra.mxu0 0.0
    %3154 = vmatprep.subr.mxu0 0.0
    %3155 = vmatpush1.msra.mxu0 0.0
    %3156 = vmatprep.subr.mxu0 0.0
    %3157 = vmatpush1.msra.mxu0 0.0
    %3158 = vmatprep.subr.mxu0 0.0
    %3159 = vmatpush1.msra.mxu0 0.0
    %3160 = vmatprep.subr.mxu0 0.0
    %3161 = vmatpush1.msra.mxu0 0.0
    %3162 = vmatprep.subr.mxu0 0.0
    %3163 = vmatpush1.msra.mxu0 0.0
    %3164 = vmatprep.subr.mxu0 0.0
    %3165 = vmatpush1.msra.mxu0 %v3129
    %3166 = vmatprep.subr.mxu0 0.0
    %3167 = vmatpush2.msra.mxu0 0.0
    %3168 = vmatprep.subr.mxu0 0.0
    %3169 = vmatpush2.msra.mxu0 0.0
    %3170 = vmatprep.subr.mxu0 0.0
    %3171 = vmatpush2.msra.mxu0 0.0
    %3172 = vmatprep.subr.mxu0 0.0
    %3173 = vmatpush2.msra.mxu0 0.0
    %3174 = vmatprep.subr.mxu0 0.0
    %3175 = vmatpush2.msra.mxu0 0.0
    %3176 = vmatprep.subr.mxu0 0.0
    %3177 = vmatpush2.msra.mxu0 0.0
    %3178 = vmatprep.subr.mxu0 0.0
    %3179 = vmatpush2.msra.mxu0 0.0
    %3180 = vmatprep.subr.mxu0 0.0
    %3181 = vmatpush2.msra.mxu0 0.0
    %3182 = vmatprep.subr.mxu0 0.0
    %3183 = vmatpush2.msra.mxu0 0.0
    %3184 = vmatprep.subr.mxu0 0.0
    %3185 = vmatpush2.msra.mxu0 0.0
    %3186 = vmatprep.subr.mxu0 0.0
    %3187 = vmatpush2.msra.mxu0 0.0
    %3188 = vmatprep.subr.mxu0 0.0
    %3189 = vmatpush2.msra.mxu0 0.0
    %3190 = vmatprep.subr.mxu0 0.0
    %3191 = vmatpush2.msra.mxu0 0.0
    %3192 = vmatprep.subr.mxu0 0.0
    %3193 = vmatpush2.msra.mxu0 0.0
    %3194 = vmatprep.subr.mxu0 0.0
    %3195 = vmatpush2.msra.mxu0 0.0
    %3196 = vmatprep.subr.mxu0 0.0
    %3197 = vmatpush2.msra.mxu0 0.0
    %3198 = vmatprep.mubr.f32.mxu0 0.0
    %3199 = vmatmul.mubr.f32.gmra.mxu0 %v3132
    %v3200 = vpop.f32.mrf.mxu0
    %v3201 = vadd.f32 0.0, %v3200
    %v3202 = vpop.f32.mrf.mxu0
    %3203 = vdwg.mxu0
    %3205 = vrot.lane.b32.xlu0 %v3049, 8
    %v3206 = vpop.permute.xlu0 %3205
    %3209 = vrot.lane.b32.xlu0 %v3125, 16
    %v3210 = vpop.permute.xlu0 %3209
    %3213 = vrot.lane.b32.xlu0 %v3201, 24
    %v3214 = vpop.permute.xlu0 %3213
    %v3216 = vsel %vm344, %v2973, %v3206
    %v3217 = vsel %vm1369, %v3216, %v3210
    %v3218 = vsel %vm1371, %v3217, %v3214
    %3219 = vrot.lane.b32.xlu0 %v2187, 64
    %v3220 = vpop.permute.xlu0 %3219
    %v3223 = vsel %vm344, %v2896, 0
    %3225 = vmatprep.subr.mxu0 0.0
    %3226 = vmatpush1.msra.mxu0 0.0
    %3227 = vmatprep.subr.mxu0 0.0
    %3228 = vmatpush1.msra.mxu0 0.0
    %3229 = vmatprep.subr.mxu0 0.0
    %3230 = vmatpush1.msra.mxu0 0.0
    %3231 = vmatprep.subr.mxu0 0.0
    %3232 = vmatpush1.msra.mxu0 0.0
    %3233 = vmatprep.subr.mxu0 0.0
    %3234 = vmatpush1.msra.mxu0 0.0
    %3235 = vmatprep.subr.mxu0 0.0
    %3236 = vmatpush1.msra.mxu0 0.0
    %3237 = vmatprep.subr.mxu0 0.0
    %3238 = vmatpush1.msra.mxu0 0.0
    %3239 = vmatprep.subr.mxu0 0.0
    %3240 = vmatpush1.msra.mxu0 0.0
    %3241 = vmatprep.subr.mxu0 0.0
    %3242 = vmatpush1.msra.mxu0 0.0
    %3243 = vmatprep.subr.mxu0 0.0
    %3244 = vmatpush1.msra.mxu0 0.0
    %3245 = vmatprep.subr.mxu0 0.0
    %3246 = vmatpush1.msra.mxu0 0.0
    %3247 = vmatprep.subr.mxu0 0.0
    %3248 = vmatpush1.msra.mxu0 0.0
    %3249 = vmatprep.subr.mxu0 0.0
    %3250 = vmatpush1.msra.mxu0 0.0
    %3251 = vmatprep.subr.mxu0 0.0
    %3252 = vmatpush1.msra.mxu0 0.0
    %3253 = vmatprep.subr.mxu0 0.0
    %3254 = vmatpush1.msra.mxu0 0.0
    %3255 = vmatprep.subr.mxu0 0.0
    %3256 = vmatpush1.msra.mxu0 %v3220
    %3257 = vmatprep.subr.mxu0 0.0
    %3258 = vmatpush2.msra.mxu0 0.0
    %3259 = vmatprep.subr.mxu0 0.0
    %3260 = vmatpush2.msra.mxu0 0.0
    %3261 = vmatprep.subr.mxu0 0.0
    %3262 = vmatpush2.msra.mxu0 0.0
    %3263 = vmatprep.subr.mxu0 0.0
    %3264 = vmatpush2.msra.mxu0 0.0
    %3265 = vmatprep.subr.mxu0 0.0
    %3266 = vmatpush2.msra.mxu0 0.0
    %3267 = vmatprep.subr.mxu0 0.0
    %3268 = vmatpush2.msra.mxu0 0.0
    %3269 = vmatprep.subr.mxu0 0.0
    %3270 = vmatpush2.msra.mxu0 0.0
    %3271 = vmatprep.subr.mxu0 0.0
    %3272 = vmatpush2.msra.mxu0 0.0
    %3273 = vmatprep.subr.mxu0 0.0
    %3274 = vmatpush2.msra.mxu0 0.0
    %3275 = vmatprep.subr.mxu0 0.0
    %3276 = vmatpush2.msra.mxu0 0.0
    %3277 = vmatprep.subr.mxu0 0.0
    %3278 = vmatpush2.msra.mxu0 0.0
    %3279 = vmatprep.subr.mxu0 0.0
    %3280 = vmatpush2.msra.mxu0 0.0
    %3281 = vmatprep.subr.mxu0 0.0
    %3282 = vmatpush2.msra.mxu0 0.0
    %3283 = vmatprep.subr.mxu0 0.0
    %3284 = vmatpush2.msra.mxu0 0.0
    %3285 = vmatprep.subr.mxu0 0.0
    %3286 = vmatpush2.msra.mxu0 0.0
    %3287 = vmatprep.subr.mxu0 0.0
    %3288 = vmatpush2.msra.mxu0 0.0
    %3289 = vmatprep.mubr.f32.mxu0 0.0
    %3290 = vmatmul.mubr.f32.gmra.mxu0 %v3223
    %v3291 = vpop.f32.mrf.mxu0
    %v3292 = vadd.f32 0.0, %v3291
    %v3293 = vpop.f32.mrf.mxu0
    %3294 = vdwg.mxu0
    %3295 = vrot.lane.b32.xlu0 %v2187, 56
    %v3296 = vpop.permute.xlu0 %3295
    %v3299 = vsel %vm344, %v2897, 0
    %3301 = vmatprep.subr.mxu0 0.0
    %3302 = vmatpush1.msra.mxu0 0.0
    %3303 = vmatprep.subr.mxu0 0.0
    %3304 = vmatpush1.msra.mxu0 0.0
    %3305 = vmatprep.subr.mxu0 0.0
    %3306 = vmatpush1.msra.mxu0 0.0
    %3307 = vmatprep.subr.mxu0 0.0
    %3308 = vmatpush1.msra.mxu0 0.0
    %3309 = vmatprep.subr.mxu0 0.0
    %3310 = vmatpush1.msra.mxu0 0.0
    %3311 = vmatprep.subr.mxu0 0.0
    %3312 = vmatpush1.msra.mxu0 0.0
    %3313 = vmatprep.subr.mxu0 0.0
    %3314 = vmatpush1.msra.mxu0 0.0
    %3315 = vmatprep.subr.mxu0 0.0
    %3316 = vmatpush1.msra.mxu0 0.0
    %3317 = vmatprep.subr.mxu0 0.0
    %3318 = vmatpush1.msra.mxu0 0.0
    %3319 = vmatprep.subr.mxu0 0.0
    %3320 = vmatpush1.msra.mxu0 0.0
    %3321 = vmatprep.subr.mxu0 0.0
    %3322 = vmatpush1.msra.mxu0 0.0
    %3323 = vmatprep.subr.mxu0 0.0
    %3324 = vmatpush1.msra.mxu0 0.0
    %3325 = vmatprep.subr.mxu0 0.0
    %3326 = vmatpush1.msra.mxu0 0.0
    %3327 = vmatprep.subr.mxu0 0.0
    %3328 = vmatpush1.msra.mxu0 0.0
    %3329 = vmatprep.subr.mxu0 0.0
    %3330 = vmatpush1.msra.mxu0 0.0
    %3331 = vmatprep.subr.mxu0 0.0
    %3332 = vmatpush1.msra.mxu0 %v3296
    %3333 = vmatprep.subr.mxu0 0.0
    %3334 = vmatpush2.msra.mxu0 0.0
    %3335 = vmatprep.subr.mxu0 0.0
    %3336 = vmatpush2.msra.mxu0 0.0
    %3337 = vmatprep.subr.mxu0 0.0
    %3338 = vmatpush2.msra.mxu0 0.0
    %3339 = vmatprep.subr.mxu0 0.0
    %3340 = vmatpush2.msra.mxu0 0.0
    %3341 = vmatprep.subr.mxu0 0.0
    %3342 = vmatpush2.msra.mxu0 0.0
    %3343 = vmatprep.subr.mxu0 0.0
    %3344 = vmatpush2.msra.mxu0 0.0
    %3345 = vmatprep.subr.mxu0 0.0
    %3346 = vmatpush2.msra.mxu0 0.0
    %3347 = vmatprep.subr.mxu0 0.0
    %3348 = vmatpush2.msra.mxu0 0.0
    %3349 = vmatprep.subr.mxu0 0.0
    %3350 = vmatpush2.msra.mxu0 0.0
    %3351 = vmatprep.subr.mxu0 0.0
    %3352 = vmatpush2.msra.mxu0 0.0
    %3353 = vmatprep.subr.mxu0 0.0
    %3354 = vmatpush2.msra.mxu0 0.0
    %3355 = vmatprep.subr.mxu0 0.0
    %3356 = vmatpush2.msra.mxu0 0.0
    %3357 = vmatprep.subr.mxu0 0.0
    %3358 = vmatpush2.msra.mxu0 0.0
    %3359 = vmatprep.subr.mxu0 0.0
    %3360 = vmatpush2.msra.mxu0 0.0
    %3361 = vmatprep.subr.mxu0 0.0
    %3362 = vmatpush2.msra.mxu0 0.0
    %3363 = vmatprep.subr.mxu0 0.0
    %3364 = vmatpush2.msra.mxu0 0.0
    %3365 = vmatprep.mubr.f32.mxu0 0.0
    %3366 = vmatmul.mubr.f32.gmra.mxu0 %v3299
    %v3367 = vpop.f32.mrf.mxu0
    %v3368 = vadd.f32 0.0, %v3367
    %v3369 = vpop.f32.mrf.mxu0
    %3370 = vdwg.mxu0
    %3371 = vrot.lane.b32.xlu0 %v2187, 48
    %v3372 = vpop.permute.xlu0 %3371
    %v3375 = vsel %vm344, %v2898, 0
    %3377 = vmatprep.subr.mxu0 0.0
    %3378 = vmatpush1.msra.mxu0 0.0
    %3379 = vmatprep.subr.mxu0 0.0
    %3380 = vmatpush1.msra.mxu0 0.0
    %3381 = vmatprep.subr.mxu0 0.0
    %3382 = vmatpush1.msra.mxu0 0.0
    %3383 = vmatprep.subr.mxu0 0.0
    %3384 = vmatpush1.msra.mxu0 0.0
    %3385 = vmatprep.subr.mxu0 0.0
    %3386 = vmatpush1.msra.mxu0 0.0
    %3387 = vmatprep.subr.mxu0 0.0
    %3388 = vmatpush1.msra.mxu0 0.0
    %3389 = vmatprep.subr.mxu0 0.0
    %3390 = vmatpush1.msra.mxu0 0.0
    %3391 = vmatprep.subr.mxu0 0.0
    %3392 = vmatpush1.msra.mxu0 0.0
    %3393 = vmatprep.subr.mxu0 0.0
    %3394 = vmatpush1.msra.mxu0 0.0
    %3395 = vmatprep.subr.mxu0 0.0
    %3396 = vmatpush1.msra.mxu0 0.0
    %3397 = vmatprep.subr.mxu0 0.0
    %3398 = vmatpush1.msra.mxu0 0.0
    %3399 = vmatprep.subr.mxu0 0.0
    %3400 = vmatpush1.msra.mxu0 0.0
    %3401 = vmatprep.subr.mxu0 0.0
    %3402 = vmatpush1.msra.mxu0 0.0
    %3403 = vmatprep.subr.mxu0 0.0
    %3404 = vmatpush1.msra.mxu0 0.0
    %3405 = vmatprep.subr.mxu0 0.0
    %3406 = vmatpush1.msra.mxu0 0.0
    %3407 = vmatprep.subr.mxu0 0.0
    %3408 = vmatpush1.msra.mxu0 %v3372
    %3409 = vmatprep.subr.mxu0 0.0
    %3410 = vmatpush2.msra.mxu0 0.0
    %3411 = vmatprep.subr.mxu0 0.0
    %3412 = vmatpush2.msra.mxu0 0.0
    %3413 = vmatprep.subr.mxu0 0.0
    %3414 = vmatpush2.msra.mxu0 0.0
    %3415 = vmatprep.subr.mxu0 0.0
    %3416 = vmatpush2.msra.mxu0 0.0
    %3417 = vmatprep.subr.mxu0 0.0
    %3418 = vmatpush2.msra.mxu0 0.0
    %3419 = vmatprep.subr.mxu0 0.0
    %3420 = vmatpush2.msra.mxu0 0.0
    %3421 = vmatprep.subr.mxu0 0.0
    %3422 = vmatpush2.msra.mxu0 0.0
    %3423 = vmatprep.subr.mxu0 0.0
    %3424 = vmatpush2.msra.mxu0 0.0
    %3425 = vmatprep.subr.mxu0 0.0
    %3426 = vmatpush2.msra.mxu0 0.0
    %3427 = vmatprep.subr.mxu0 0.0
    %3428 = vmatpush2.msra.mxu0 0.0
    %3429 = vmatprep.subr.mxu0 0.0
    %3430 = vmatpush2.msra.mxu0 0.0
    %3431 = vmatprep.subr.mxu0 0.0
    %3432 = vmatpush2.msra.mxu0 0.0
    %3433 = vmatprep.subr.mxu0 0.0
    %3434 = vmatpush2.msra.mxu0 0.0
    %3435 = vmatprep.subr.mxu0 0.0
    %3436 = vmatpush2.msra.mxu0 0.0
    %3437 = vmatprep.subr.mxu0 0.0
    %3438 = vmatpush2.msra.mxu0 0.0
    %3439 = vmatprep.subr.mxu0 0.0
    %3440 = vmatpush2.msra.mxu0 0.0
    %3441 = vmatprep.mubr.f32.mxu0 0.0
    %3442 = vmatmul.mubr.f32.gmra.mxu0 %v3375
    %v3443 = vpop.f32.mrf.mxu0
    %v3444 = vadd.f32 0.0, %v3443
    %v3445 = vpop.f32.mrf.mxu0
    %3446 = vdwg.mxu0
    %3447 = vrot.lane.b32.xlu0 %v2187, 40
    %v3448 = vpop.permute.xlu0 %3447
    %v3451 = vsel %vm344, %v2899, 0
    %3453 = vmatprep.subr.mxu0 0.0
    %3454 = vmatpush1.msra.mxu0 0.0
    %3455 = vmatprep.subr.mxu0 0.0
    %3456 = vmatpush1.msra.mxu0 0.0
    %3457 = vmatprep.subr.mxu0 0.0
    %3458 = vmatpush1.msra.mxu0 0.0
    %3459 = vmatprep.subr.mxu0 0.0
    %3460 = vmatpush1.msra.mxu0 0.0
    %3461 = vmatprep.subr.mxu0 0.0
    %3462 = vmatpush1.msra.mxu0 0.0
    %3463 = vmatprep.subr.mxu0 0.0
    %3464 = vmatpush1.msra.mxu0 0.0
    %3465 = vmatprep.subr.mxu0 0.0
    %3466 = vmatpush1.msra.mxu0 0.0
    %3467 = vmatprep.subr.mxu0 0.0
    %3468 = vmatpush1.msra.mxu0 0.0
    %3469 = vmatprep.subr.mxu0 0.0
    %3470 = vmatpush1.msra.mxu0 0.0
    %3471 = vmatprep.subr.mxu0 0.0
    %3472 = vmatpush1.msra.mxu0 0.0
    %3473 = vmatprep.subr.mxu0 0.0
    %3474 = vmatpush1.msra.mxu0 0.0
    %3475 = vmatprep.subr.mxu0 0.0
    %3476 = vmatpush1.msra.mxu0 0.0
    %3477 = vmatprep.subr.mxu0 0.0
    %3478 = vmatpush1.msra.mxu0 0.0
    %3479 = vmatprep.subr.mxu0 0.0
    %3480 = vmatpush1.msra.mxu0 0.0
    %3481 = vmatprep.subr.mxu0 0.0
    %3482 = vmatpush1.msra.mxu0 0.0
    %3483 = vmatprep.subr.mxu0 0.0
    %3484 = vmatpush1.msra.mxu0 %v3448
    %3485 = vmatprep.subr.mxu0 0.0
    %3486 = vmatpush2.msra.mxu0 0.0
    %3487 = vmatprep.subr.mxu0 0.0
    %3488 = vmatpush2.msra.mxu0 0.0
    %3489 = vmatprep.subr.mxu0 0.0
    %3490 = vmatpush2.msra.mxu0 0.0
    %3491 = vmatprep.subr.mxu0 0.0
    %3492 = vmatpush2.msra.mxu0 0.0
    %3493 = vmatprep.subr.mxu0 0.0
    %3494 = vmatpush2.msra.mxu0 0.0
    %3495 = vmatprep.subr.mxu0 0.0
    %3496 = vmatpush2.msra.mxu0 0.0
    %3497 = vmatprep.subr.mxu0 0.0
    %3498 = vmatpush2.msra.mxu0 0.0
    %3499 = vmatprep.subr.mxu0 0.0
    %3500 = vmatpush2.msra.mxu0 0.0
    %3501 = vmatprep.subr.mxu0 0.0
    %3502 = vmatpush2.msra.mxu0 0.0
    %3503 = vmatprep.subr.mxu0 0.0
    %3504 = vmatpush2.msra.mxu0 0.0
    %3505 = vmatprep.subr.mxu0 0.0
    %3506 = vmatpush2.msra.mxu0 0.0
    %3507 = vmatprep.subr.mxu0 0.0
    %3508 = vmatpush2.msra.mxu0 0.0
    %3509 = vmatprep.subr.mxu0 0.0
    %3510 = vmatpush2.msra.mxu0 0.0
    %3511 = vmatprep.subr.mxu0 0.0
    %3512 = vmatpush2.msra.mxu0 0.0
    %3513 = vmatprep.subr.mxu0 0.0
    %3514 = vmatpush2.msra.mxu0 0.0
    %3515 = vmatprep.subr.mxu0 0.0
    %3516 = vmatpush2.msra.mxu0 0.0
    %3517 = vmatprep.mubr.f32.mxu0 0.0
    %3518 = vmatmul.mubr.f32.gmra.mxu0 %v3451
    %v3519 = vpop.f32.mrf.mxu0
    %v3520 = vadd.f32 0.0, %v3519
    %v3521 = vpop.f32.mrf.mxu0
    %3522 = vdwg.mxu0
    %3524 = vrot.lane.b32.xlu0 %v3368, 8
    %v3525 = vpop.permute.xlu0 %3524
    %3528 = vrot.lane.b32.xlu0 %v3444, 16
    %v3529 = vpop.permute.xlu0 %3528
    %3532 = vrot.lane.b32.xlu0 %v3520, 24
    %v3533 = vpop.permute.xlu0 %3532
    %v3535 = vsel %vm344, %v3292, %v3525
    %v3536 = vsel %vm1369, %v3535, %v3529
    %v3537 = vsel %vm1371, %v3536, %v3533
    %s3538 = scalar_lea.vmem [#allocation7], 32
    %v3539 = vld [vmem:[%s3538] sm:$0xff]
    %v3540 = vld [vmem:[%s3538 + $0x8] sm:$0xff]
    %v3541 = vld [vmem:[%s3538 + $0x10] sm:$0xff]
    %v3542 = vld [vmem:[%s3538 + $0x18] sm:$0xff]
    %v3543 = vlaneseq
    %v3544 = vshrl.u32 %v3543, 7
    %v3545 = vsub.s32 1, %v3544
    %v3546 = vrot.slane %v2099, %v3545
    %v3548 = vsel %vm259, %v3218, 0
    %v3551 = vsel %vm259, %v3537, 0
    %3553 = vmatprep.subr.mxu0 0.0
    %3554 = vmatpush1.msra.mxu0 0.0
    %3555 = vmatprep.subr.mxu0 0.0
    %3556 = vmatpush1.msra.mxu0 0.0
    %3557 = vmatprep.subr.mxu0 0.0
    %3558 = vmatpush1.msra.mxu0 0.0
    %3559 = vmatprep.subr.mxu0 0.0
    %3560 = vmatpush1.msra.mxu0 0.0
    %3561 = vmatprep.subr.mxu0 0.0
    %3562 = vmatpush1.msra.mxu0 0.0
    %3563 = vmatprep.subr.mxu0 0.0
    %3564 = vmatpush1.msra.mxu0 0.0
    %3565 = vmatprep.subr.mxu0 0.0
    %3566 = vmatpush1.msra.mxu0 0.0
    %3567 = vmatprep.subr.mxu0 0.0
    %3568 = vmatpush1.msra.mxu0 0.0
    %3569 = vmatprep.subr.mxu0 0.0
    %3570 = vmatpush1.msra.mxu0 0.0
    %3571 = vmatprep.subr.mxu0 0.0
    %3572 = vmatpush1.msra.mxu0 0.0
    %3573 = vmatprep.subr.mxu0 0.0
    %3574 = vmatpush1.msra.mxu0 0.0
    %3575 = vmatprep.subr.mxu0 0.0
    %3576 = vmatpush1.msra.mxu0 0.0
    %3577 = vmatprep.subr.mxu0 0.0
    %3578 = vmatpush1.msra.mxu0 %v3542
    %3579 = vmatprep.subr.mxu0 0.0
    %3580 = vmatpush1.msra.mxu0 %v3541
    %3581 = vmatprep.subr.mxu0 0.0
    %3582 = vmatpush1.msra.mxu0 %v3540
    %3583 = vmatprep.subr.mxu0 0.0
    %3584 = vmatpush1.msra.mxu0 %v3539
    %3585 = vmatprep.subr.mxu0 0.0
    %3586 = vmatpush2.msra.mxu0 0.0
    %3587 = vmatprep.subr.mxu0 0.0
    %3588 = vmatpush2.msra.mxu0 0.0
    %3589 = vmatprep.subr.mxu0 0.0
    %3590 = vmatpush2.msra.mxu0 0.0
    %3591 = vmatprep.subr.mxu0 0.0
    %3592 = vmatpush2.msra.mxu0 0.0
    %3593 = vmatprep.subr.mxu0 0.0
    %3594 = vmatpush2.msra.mxu0 0.0
    %3595 = vmatprep.subr.mxu0 0.0
    %3596 = vmatpush2.msra.mxu0 0.0
    %3597 = vmatprep.subr.mxu0 0.0
    %3598 = vmatpush2.msra.mxu0 0.0
    %3599 = vmatprep.subr.mxu0 0.0
    %3600 = vmatpush2.msra.mxu0 0.0
    %3601 = vmatprep.subr.mxu0 0.0
    %3602 = vmatpush2.msra.mxu0 0.0
    %3603 = vmatprep.subr.mxu0 0.0
    %3604 = vmatpush2.msra.mxu0 0.0
    %3605 = vmatprep.subr.mxu0 0.0
    %3606 = vmatpush2.msra.mxu0 0.0
    %3607 = vmatprep.subr.mxu0 0.0
    %3608 = vmatpush2.msra.mxu0 0.0
    %3609 = vmatprep.subr.mxu0 0.0
    %3610 = vmatpush2.msra.mxu0 0.0
    %3611 = vmatprep.subr.mxu0 0.0
    %3612 = vmatpush2.msra.mxu0 0.0
    %3613 = vmatprep.subr.mxu0 0.0
    %3614 = vmatpush2.msra.mxu0 0.0
    %3615 = vmatprep.subr.mxu0 0.0
    %3616 = vmatpush2.msra.mxu0 0.0
    %3617 = vmatprep.mubr.f32.mxu0 0.0
    %3618 = vmatmul.mubr.f32.gmra.mxu0 %v3548
    %v3619 = vpop.f32.mrf.mxu0
    %v3620 = vadd.f32 %v3546, %v3619
    %v3621 = vpop.f32.mrf.mxu0
    %3622 = vmatprep.mubr.f32.mxu0 0.0
    %3623 = vmatmul.mubr.f32.gmra.mxu0 %v3551
    %v3624 = vpop.f32.mrf.mxu0
    %v3625 = vadd.f32 %v3546, %v3624
    %v3626 = vpop.f32.mrf.mxu0
    %3627 = vdwg.mxu0
    %v3628 = vadd.f32 %v2096, %v3620
    %v3629 = vadd.f32 %v2097, %v3625
    %v3630 = vsel %vm259, %v3628, 0.0
    %3631 = vadd.xlane.f32.xlu0 %v3630
    %v3632 = vpop.xlane.xlu0 %3631
    %v3633 = vsel %vm259, %v3629, 0.0
    %3634 = vadd.xlane.f32.xlu0 %v3633
    %v3635 = vpop.xlane.xlu0 %3634
    %v3636 = vmul.f32 %v3632, %v1789
    %v3637 = vmul.f32 %v3635, %v1789
    %v3638 = vsub.f32 %v3628, %v3636
    %v3639 = vsub.f32 %v3629, %v3637
    %v3640 = vmul.f32 %v3638, %v3638
    %v3641 = vmul.f32 %v3639, %v3639
    %v3642 = vsel %vm259, %v3640, 0.0
    %3643 = vadd.xlane.f32.xlu0 %v3642
    %v3644 = vpop.xlane.xlu0 %3643
    %v3645 = vsel %vm259, %v3641, 0.0
    %3646 = vadd.xlane.f32.xlu0 %v3645
    %v3647 = vpop.xlane.xlu0 %3646
    %v3648 = vmul.f32 %v3644, %v1789
    %v3649 = vmul.f32 %v3647, %v1789
    %v3650 = vadd.f32 %v3648, 1e-05
    %v3651 = vadd.f32 %v3649, 1e-05
    %v3652 = vrsqrt.pop %v3650
    %v3653 = vrsqrt.pop %v3651
    %v3654 = vmul.f32 %v3638, %v3652
    %v3655 = vmul.f32 %v3639, %v3653
    %v3656 = vlaneseq
    %v3657 = vshrl.u32 %v3656, 7
    %v3658 = vsub.s32 2, %v3657
    %v3659 = vrot.slane %v2099, %v3658
    %v3660 = vmul.f32 %v3654, %v3659
    %v3661 = vmul.f32 %v3655, %v3659
    %v3662 = vlaneseq
    %v3663 = vshrl.u32 %v3662, 7
    %v3664 = vsub.s32 3, %v3663
    %v3665 = vrot.slane %v2099, %v3664
    %v3666 = vadd.f32 %v3660, %v3665
    %v3667 = vadd.f32 %v3661, %v3665
    %s3668 = scalar_lea.vmem [#allocation9], 32
    %v3669 = vld [vmem:[%s3668] sm:$0xff]
    %v3670 = vld [vmem:[%s3668 + $0x8] sm:$0xff]
    %v3671 = vld [vmem:[%s3668 + $0x10] sm:$0xff]
    %v3672 = vld [vmem:[%s3668 + $0x18] sm:$0xff]
    %v3673 = vlaneseq
    %v3674 = vshrl.u32 %v3673, 7
    %v3675 = vsub.s32 4, %v3674
    %v3676 = vrot.slane %v2099, %v3675
    %v3678 = vsel %vm259, %v3666, 0
    %v3681 = vsel %vm259, %v3667, 0
    %3683 = vmatprep.subr.mxu0 0.0
    %3684 = vmatpush1.msra.mxu0 0.0
    %3685 = vmatprep.subr.mxu0 0.0
    %3686 = vmatpush1.msra.mxu0 0.0
    %3687 = vmatprep.subr.mxu0 0.0
    %3688 = vmatpush1.msra.mxu0 0.0
    %3689 = vmatprep.subr.mxu0 0.0
    %3690 = vmatpush1.msra.mxu0 0.0
    %3691 = vmatprep.subr.mxu0 0.0
    %3692 = vmatpush1.msra.mxu0 0.0
    %3693 = vmatprep.subr.mxu0 0.0
    %3694 = vmatpush1.msra.mxu0 0.0
    %3695 = vmatprep.subr.mxu0 0.0
    %3696 = vmatpush1.msra.mxu0 0.0
    %3697 = vmatprep.subr.mxu0 0.0
    %3698 = vmatpush1.msra.mxu0 0.0
    %3699 = vmatprep.subr.mxu0 0.0
    %3700 = vmatpush1.msra.mxu0 0.0
    %3701 = vmatprep.subr.mxu0 0.0
    %3702 = vmatpush1.msra.mxu0 0.0
    %3703 = vmatprep.subr.mxu0 0.0
    %3704 = vmatpush1.msra.mxu0 0.0
    %3705 = vmatprep.subr.mxu0 0.0
    %3706 = vmatpush1.msra.mxu0 0.0
    %3707 = vmatprep.subr.mxu0 0.0
    %3708 = vmatpush1.msra.mxu0 %v3672
    %3709 = vmatprep.subr.mxu0 0.0
    %3710 = vmatpush1.msra.mxu0 %v3671
    %3711 = vmatprep.subr.mxu0 0.0
    %3712 = vmatpush1.msra.mxu0 %v3670
    %3713 = vmatprep.subr.mxu0 0.0
    %3714 = vmatpush1.msra.mxu0 %v3669
    %3715 = vmatprep.subr.mxu0 0.0
    %3716 = vmatpush2.msra.mxu0 0.0
    %3717 = vmatprep.subr.mxu0 0.0
    %3718 = vmatpush2.msra.mxu0 0.0
    %3719 = vmatprep.subr.mxu0 0.0
    %3720 = vmatpush2.msra.mxu0 0.0
    %3721 = vmatprep.subr.mxu0 0.0
    %3722 = vmatpush2.msra.mxu0 0.0
    %3723 = vmatprep.subr.mxu0 0.0
    %3724 = vmatpush2.msra.mxu0 0.0
    %3725 = vmatprep.subr.mxu0 0.0
    %3726 = vmatpush2.msra.mxu0 0.0
    %3727 = vmatprep.subr.mxu0 0.0
    %3728 = vmatpush2.msra.mxu0 0.0
    %3729 = vmatprep.subr.mxu0 0.0
    %3730 = vmatpush2.msra.mxu0 0.0
    %3731 = vmatprep.subr.mxu0 0.0
    %3732 = vmatpush2.msra.mxu0 0.0
    %3733 = vmatprep.subr.mxu0 0.0
    %3734 = vmatpush2.msra.mxu0 0.0
    %3735 = vmatprep.subr.mxu0 0.0
    %3736 = vmatpush2.msra.mxu0 0.0
    %3737 = vmatprep.subr.mxu0 0.0
    %3738 = vmatpush2.msra.mxu0 0.0
    %3739 = vmatprep.subr.mxu0 0.0
    %3740 = vmatpush2.msra.mxu0 0.0
    %3741 = vmatprep.subr.mxu0 0.0
    %3742 = vmatpush2.msra.mxu0 0.0
    %3743 = vmatprep.subr.mxu0 0.0
    %3744 = vmatpush2.msra.mxu0 0.0
    %3745 = vmatprep.subr.mxu0 0.0
    %3746 = vmatpush2.msra.mxu0 0.0
    %3747 = vmatprep.mubr.f32.mxu0 0.0
    %3748 = vmatmul.mubr.f32.gmra.mxu0 %v3678
    %v3749 = vpop.f32.mrf.mxu0
    %v3750 = vadd.f32 %v3676, %v3749
    %v3751 = vpop.f32.mrf.mxu0
    %3752 = vmatprep.mubr.f32.mxu0 0.0
    %3753 = vmatmul.mubr.f32.gmra.mxu0 %v3681
    %v3754 = vpop.f32.mrf.mxu0
    %v3755 = vadd.f32 %v3676, %v3754
    %v3756 = vpop.f32.mrf.mxu0
    %3757 = vdwg.mxu0
    %v3758 = vmul.f32 %v3750, 0.5
    %v3759 = vmul.f32 %v3755, 0.5
    %v3760 = vmul.f32 %v3750, 0.70710677
    %v3761 = vmul.f32 %v3755, 0.70710677
    %vm3762 = vcmp.ge.f32.partialorder %v3760, 0.0
    %vm3763 = vcmp.ge.f32.partialorder %v3761, 0.0
    %v3764 = vsel %vm3762, 1.0, -1.0
    %v3765 = vsel %vm3763, 1.0, -1.0
    %v3766 = vand.u32 2147483647, %v3760
    %v3767 = vand.u32 2147483647, %v3761
    %v3768 = vmul.f32 %v3766, 0.3275911
    %v3769 = vmul.f32 %v3767, 0.3275911
    %v3770 = vadd.f32 %v3768, 1.0
    %v3771 = vadd.f32 %v3769, 1.0
    %v3772 = vrcp.pop %v3770
    %v3773 = vmul.f32 1.0, %v3772
    %v3774 = vrcp.pop %v3771
    %v3775 = vmul.f32 1.0, %v3774
    %v3776 = vmul.f32 %v3773, 1.0614054
    %v3777 = vmul.f32 %v3775, 1.0614054
    %v3778 = vadd.f32 %v3776, -1.4531521
    %v3779 = vadd.f32 %v3777, -1.4531521
    %v3780 = vmul.f32 %v3778, %v3773
    %v3781 = vmul.f32 %v3779, %v3775
    %v3782 = vadd.f32 %v3780, 1.4214138
    %v3783 = vadd.f32 %v3781, 1.4214138
    %v3784 = vmul.f32 %v3782, %v3773
    %v3785 = vmul.f32 %v3783, %v3775
    %v3786 = vadd.f32 %v3784, -0.28449672
    %v3787 = vadd.f32 %v3785, -0.28449672
    %v3788 = vmul.f32 %v3786, %v3773
    %v3789 = vmul.f32 %v3787, %v3775
    %v3790 = vadd.f32 %v3788, 0.2548296
    %v3791 = vadd.f32 %v3789, 0.2548296
    %v3792 = vmul.f32 %v3790, %v3773
    %v3793 = vmul.f32 %v3791, %v3775
    %v3794 = vsub.f32 0.0, %v3766
    %v3795 = vsub.f32 0.0, %v3767
    %v3796 = vmul.f32 %v3794, %v3766
    %v3797 = vmul.f32 %v3795, %v3767
    %v3798 = vmul.f32 %v3796, 1.442695
    %v3799 = vpow.pop %v3798
    %v3800 = vmul.f32 %v3797, 1.442695
    %v3801 = vpow.pop %v3800
    %v3802 = vmul.f32 %v3792, %v3799
    %v3803 = vmul.f32 %v3793, %v3801
    %v3804 = vsub.f32 1.0, %v3802
    %v3805 = vsub.f32 1.0, %v3803
    %v3806 = vmul.f32 %v3764, %v3804
    %v3807 = vmul.f32 %v3765, %v3805
    %v3808 = vadd.f32 %v3806, 1.0
    %v3809 = vadd.f32 %v3807, 1.0
    %v3810 = vmul.f32 %v3758, %v3808
    %v3811 = vmul.f32 %v3759, %v3809
    %s3812 = scalar_lea.vmem [#allocation10], 64
    %v3813 = vld [vmem:[%s3812] sm:$0xff]
    %v3814 = vld [vmem:[%s3812 + $0x8] sm:$0xff]
    %v3815 = vld [vmem:[%s3812 + $0x10] sm:$0xff]
    %v3816 = vld [vmem:[%s3812 + $0x18] sm:$0xff]
    %v3817 = vld [vmem:[%s3812 + $0x20] sm:$0xff]
    %v3818 = vld [vmem:[%s3812 + $0x28] sm:$0xff]
    %v3819 = vld [vmem:[%s3812 + $0x30] sm:$0xff]
    %v3820 = vld [vmem:[%s3812 + $0x38] sm:$0xff]
    %v3821 = vlaneseq
    %v3822 = vshrl.u32 %v3821, 7
    %v3823 = vsub.s32 5, %v3822
    %v3824 = vrot.slane %v2099, %v3823
    %v3826 = vsel %vm168, %v3810, 0
    %v3829 = vsel %vm168, %v3811, 0
    %3831 = vmatprep.subr.mxu0 0.0
    %3832 = vmatpush1.msra.mxu0 0.0
    %3833 = vmatprep.subr.mxu0 0.0
    %3834 = vmatpush1.msra.mxu0 0.0
    %3835 = vmatprep.subr.mxu0 0.0
    %3836 = vmatpush1.msra.mxu0 0.0
    %3837 = vmatprep.subr.mxu0 0.0
    %3838 = vmatpush1.msra.mxu0 0.0
    %3839 = vmatprep.subr.mxu0 0.0
    %3840 = vmatpush1.msra.mxu0 0.0
    %3841 = vmatprep.subr.mxu0 0.0
    %3842 = vmatpush1.msra.mxu0 0.0
    %3843 = vmatprep.subr.mxu0 0.0
    %3844 = vmatpush1.msra.mxu0 0.0
    %3845 = vmatprep.subr.mxu0 0.0
    %3846 = vmatpush1.msra.mxu0 0.0
    %3847 = vmatprep.subr.mxu0 0.0
    %3848 = vmatpush1.msra.mxu0 %v3820
    %3849 = vmatprep.subr.mxu0 0.0
    %3850 = vmatpush1.msra.mxu0 %v3819
    %3851 = vmatprep.subr.mxu0 0.0
    %3852 = vmatpush1.msra.mxu0 %v3818
    %3853 = vmatprep.subr.mxu0 0.0
    %3854 = vmatpush1.msra.mxu0 %v3817
    %3855 = vmatprep.subr.mxu0 0.0
    %3856 = vmatpush1.msra.mxu0 %v3816
    %3857 = vmatprep.subr.mxu0 0.0
    %3858 = vmatpush1.msra.mxu0 %v3815
    %3859 = vmatprep.subr.mxu0 0.0
    %3860 = vmatpush1.msra.mxu0 %v3814
    %3861 = vmatprep.subr.mxu0 0.0
    %3862 = vmatpush1.msra.mxu0 %v3813
    %3863 = vmatprep.subr.mxu0 0.0
    %3864 = vmatpush2.msra.mxu0 0.0
    %3865 = vmatprep.subr.mxu0 0.0
    %3866 = vmatpush2.msra.mxu0 0.0
    %3867 = vmatprep.subr.mxu0 0.0
    %3868 = vmatpush2.msra.mxu0 0.0
    %3869 = vmatprep.subr.mxu0 0.0
    %3870 = vmatpush2.msra.mxu0 0.0
    %3871 = vmatprep.subr.mxu0 0.0
    %3872 = vmatpush2.msra.mxu0 0.0
    %3873 = vmatprep.subr.mxu0 0.0
    %3874 = vmatpush2.msra.mxu0 0.0
    %3875 = vmatprep.subr.mxu0 0.0
    %3876 = vmatpush2.msra.mxu0 0.0
    %3877 = vmatprep.subr.mxu0 0.0
    %3878 = vmatpush2.msra.mxu0 0.0
    %3879 = vmatprep.subr.mxu0 0.0
    %3880 = vmatpush2.msra.mxu0 0.0
    %3881 = vmatprep.subr.mxu0 0.0
    %3882 = vmatpush2.msra.mxu0 0.0
    %3883 = vmatprep.subr.mxu0 0.0
    %3884 = vmatpush2.msra.mxu0 0.0
    %3885 = vmatprep.subr.mxu0 0.0
    %3886 = vmatpush2.msra.mxu0 0.0
    %3887 = vmatprep.subr.mxu0 0.0
    %3888 = vmatpush2.msra.mxu0 0.0
    %3889 = vmatprep.subr.mxu0 0.0
    %3890 = vmatpush2.msra.mxu0 0.0
    %3891 = vmatprep.subr.mxu0 0.0
    %3892 = vmatpush2.msra.mxu0 0.0
    %3893 = vmatprep.subr.mxu0 0.0
    %3894 = vmatpush2.msra.mxu0 0.0
    %3895 = vmatprep.mubr.f32.mxu0 0.0
    %3896 = vmatmul.mubr.f32.gmra.mxu0 %v3826
    %v3897 = vpop.f32.mrf.mxu0
    %v3898 = vadd.f32 %v3824, %v3897
    %v3899 = vpop.f32.mrf.mxu0
    %3900 = vmatprep.mubr.f32.mxu0 0.0
    %3901 = vmatmul.mubr.f32.gmra.mxu0 %v3829
    %v3902 = vpop.f32.mrf.mxu0
    %v3903 = vadd.f32 %v3824, %v3902
    %v3904 = vpop.f32.mrf.mxu0
    %3905 = vdwg.mxu0
    %v3906 = vadd.f32 %v3666, %v3898
    %v3907 = vadd.f32 %v3667, %v3903
    %v3908 = vsel %vm259, %v3906, 0.0
    %3909 = vadd.xlane.f32.xlu0 %v3908
    %v3910 = vpop.xlane.xlu0 %3909
    %v3911 = vsel %vm259, %v3907, 0.0
    %3912 = vadd.xlane.f32.xlu0 %v3911
    %v3913 = vpop.xlane.xlu0 %3912
    %v3914 = vmul.f32 %v3910, %v1789
    %v3915 = vmul.f32 %v3913, %v1789
    %v3916 = vsub.f32 %v3906, %v3914
    %v3917 = vsub.f32 %v3907, %v3915
    %v3918 = vmul.f32 %v3916, %v3916
    %v3919 = vmul.f32 %v3917, %v3917
    %v3920 = vsel %vm259, %v3918, 0.0
    %3921 = vadd.xlane.f32.xlu0 %v3920
    %v3922 = vpop.xlane.xlu0 %3921
    %v3923 = vsel %vm259, %v3919, 0.0
    %3924 = vadd.xlane.f32.xlu0 %v3923
    %v3925 = vpop.xlane.xlu0 %3924
    %v3926 = vmul.f32 %v3922, %v1789
    %v3927 = vmul.f32 %v3925, %v1789
    %v3928 = vadd.f32 %v3926, 1e-05
    %v3929 = vadd.f32 %v3927, 1e-05
    %v3930 = vrsqrt.pop %v3928
    %v3931 = vrsqrt.pop %v3929
    %v3932 = vmul.f32 %v3916, %v3930
    %v3933 = vmul.f32 %v3917, %v3931
    %v3934 = vlaneseq
    %v3935 = vshrl.u32 %v3934, 7
    %v3936 = vsub.s32 6, %v3935
    %v3937 = vrot.slane %v2099, %v3936
    %v3938 = vmul.f32 %v3932, %v3937
    %v3939 = vmul.f32 %v3933, %v3937
    %v3940 = vlaneseq
    %v3941 = vshrl.u32 %v3940, 7
    %v3942 = vsub.s32 7, %v3941
    %v3943 = vrot.slane %v2099, %v3942
    %v3944 = vadd.f32 %v3938, %v3943
    %v3945 = vadd.f32 %v3939, %v3943
    %v3946 = vld [vmem:[#allocation13] sm:$0xff]
    %v3947 = vsel %vm259, %v3944, 0.0
    %3948 = vadd.xlane.f32.xlu0 %v3947
    %v3949 = vpop.xlane.xlu0 %3948
    %v3950 = vsel %vm259, %v3945, 0.0
    %3951 = vadd.xlane.f32.xlu0 %v3950
    %v3952 = vpop.xlane.xlu0 %3951
    %v3953 = vmul.f32 %v3949, %v1789
    %v3954 = vmul.f32 %v3952, %v1789
    %v3955 = vsub.f32 %v3944, %v3953
    %v3956 = vsub.f32 %v3945, %v3954
    %v3957 = vmul.f32 %v3955, %v3955
    %v3958 = vmul.f32 %v3956, %v3956
    %v3959 = vsel %vm259, %v3957, 0.0
    %3960 = vadd.xlane.f32.xlu0 %v3959
    %v3961 = vpop.xlane.xlu0 %3960
    %v3962 = vsel %vm259, %v3958, 0.0
    %3963 = vadd.xlane.f32.xlu0 %v3962
    %v3964 = vpop.xlane.xlu0 %3963
    %v3965 = vmul.f32 %v3961, %v1789
    %v3966 = vmul.f32 %v3964, %v1789
    %v3967 = vadd.f32 %v3965, 1e-05
    %v3968 = vadd.f32 %v3966, 1e-05
    %v3969 = vrsqrt.pop %v3967
    %v3970 = vrsqrt.pop %v3968
    %v3971 = vmul.f32 %v3955, %v3969
    %v3972 = vmul.f32 %v3956, %v3970
    %v3973 = vlaneseq
    %v3974 = vshrl.u32 %v3973, 7
    %v3975 = vsub.s32 0, %v3974
    %v3976 = vrot.slane %v3946, %v3975
    %v3977 = vmul.f32 %v3971, %v3976
    %v3978 = vmul.f32 %v3972, %v3976
    %v3979 = vlaneseq
    %v3980 = vshrl.u32 %v3979, 7
    %v3981 = vsub.s32 1, %v3980
    %v3982 = vrot.slane %v3946, %v3981
    %v3983 = vadd.f32 %v3977, %v3982
    %v3984 = vadd.f32 %v3978, %v3982
    %v3985 = vld [vmem:[%s8] sm:$0xff]
    %v3986 = vld [vmem:[%s8 + $0x8] sm:$0xff]
    %v3987 = vld [vmem:[%s8 + $0x10] sm:$0xff]
    %v3988 = vld [vmem:[%s8 + $0x18] sm:$0xff]
    %v3989 = vlaneseq
    %v3990 = vshrl.u32 %v3989, 7
    %v3991 = vsub.s32 2, %v3990
    %v3992 = vrot.slane %v3946, %v3991
    %v3994 = vsel %vm259, %v3983, 0
    %v3997 = vsel %vm259, %v3984, 0
    %3999 = vmatprep.subr.mxu0 0.0
    %4000 = vmatpush1.msra.mxu0 0.0
    %4001 = vmatprep.subr.mxu0 0.0
    %4002 = vmatpush1.msra.mxu0 0.0
    %4003 = vmatprep.subr.mxu0 0.0
    %4004 = vmatpush1.msra.mxu0 0.0
    %4005 = vmatprep.subr.mxu0 0.0
    %4006 = vmatpush1.msra.mxu0 0.0
    %4007 = vmatprep.subr.mxu0 0.0
    %4008 = vmatpush1.msra.mxu0 0.0
    %4009 = vmatprep.subr.mxu0 0.0
    %4010 = vmatpush1.msra.mxu0 0.0
    %4011 = vmatprep.subr.mxu0 0.0
    %4012 = vmatpush1.msra.mxu0 0.0
    %4013 = vmatprep.subr.mxu0 0.0
    %4014 = vmatpush1.msra.mxu0 0.0
    %4015 = vmatprep.subr.mxu0 0.0
    %4016 = vmatpush1.msra.mxu0 0.0
    %4017 = vmatprep.subr.mxu0 0.0
    %4018 = vmatpush1.msra.mxu0 0.0
    %4019 = vmatprep.subr.mxu0 0.0
    %4020 = vmatpush1.msra.mxu0 0.0
    %4021 = vmatprep.subr.mxu0 0.0
    %4022 = vmatpush1.msra.mxu0 0.0
    %4023 = vmatprep.subr.mxu0 0.0
    %4024 = vmatpush1.msra.mxu0 %v3988
    %4025 = vmatprep.subr.mxu0 0.0
    %4026 = vmatpush1.msra.mxu0 %v3987
    %4027 = vmatprep.subr.mxu0 0.0
    %4028 = vmatpush1.msra.mxu0 %v3986
    %4029 = vmatprep.subr.mxu0 0.0
    %4030 = vmatpush1.msra.mxu0 %v3985
    %4031 = vmatprep.subr.mxu0 0.0
    %4032 = vmatpush2.msra.mxu0 0.0
    %4033 = vmatprep.subr.mxu0 0.0
    %4034 = vmatpush2.msra.mxu0 0.0
    %4035 = vmatprep.subr.mxu0 0.0
    %4036 = vmatpush2.msra.mxu0 0.0
    %4037 = vmatprep.subr.mxu0 0.0
    %4038 = vmatpush2.msra.mxu0 0.0
    %4039 = vmatprep.subr.mxu0 0.0
    %4040 = vmatpush2.msra.mxu0 0.0
    %4041 = vmatprep.subr.mxu0 0.0
    %4042 = vmatpush2.msra.mxu0 0.0
    %4043 = vmatprep.subr.mxu0 0.0
    %4044 = vmatpush2.msra.mxu0 0.0
    %4045 = vmatprep.subr.mxu0 0.0
    %4046 = vmatpush2.msra.mxu0 0.0
    %4047 = vmatprep.subr.mxu0 0.0
    %4048 = vmatpush2.msra.mxu0 0.0
    %4049 = vmatprep.subr.mxu0 0.0
    %4050 = vmatpush2.msra.mxu0 0.0
    %4051 = vmatprep.subr.mxu0 0.0
    %4052 = vmatpush2.msra.mxu0 0.0
    %4053 = vmatprep.subr.mxu0 0.0
    %4054 = vmatpush2.msra.mxu0 0.0
    %4055 = vmatprep.subr.mxu0 0.0
    %4056 = vmatpush2.msra.mxu0 0.0
    %4057 = vmatprep.subr.mxu0 0.0
    %4058 = vmatpush2.msra.mxu0 0.0
    %4059 = vmatprep.subr.mxu0 0.0
    %4060 = vmatpush2.msra.mxu0 0.0
    %4061 = vmatprep.subr.mxu0 0.0
    %4062 = vmatpush2.msra.mxu0 0.0
    %4063 = vmatprep.mubr.f32.mxu0 0.0
    %4064 = vmatmul.mubr.f32.gmra.mxu0 %v3994
    %v4065 = vpop.f32.mrf.mxu0
    %v4066 = vadd.f32 %v3992, %v4065
    %v4067 = vpop.f32.mrf.mxu0
    %4068 = vmatprep.mubr.f32.mxu0 0.0
    %4069 = vmatmul.mubr.f32.gmra.mxu0 %v3997
    %v4070 = vpop.f32.mrf.mxu0
    %v4071 = vadd.f32 %v3992, %v4070
    %v4072 = vpop.f32.mrf.mxu0
    %4073 = vdwg.mxu0
    %4074 = vst [vmem:[%s10] sm:$0xff] %v4066
    %4075 = vst [vmem:[%s10 + $0x8] sm:$0xff] %v4071
    // Predicated region
    $region74: #{forward.1} parent=1 // pred_check
      _
    $region75: #{forward.1} parent=1 // pred_check_branch
      %4077 = sbr.rel (0) target = $region77
    $region76: #{forward.1} parent=1 // pred_region
      _
    $region77: #{forward.1} parent=1 // pred_fallthru
      _
    // Predicated region
    $region78: #{forward.1} parent=1 // pred_check
      _
    $region79: #{forward.1} parent=1 // pred_check_branch
      %4079 = sbr.rel (0) target = $region81
    $region80: #{forward.1} parent=1 // pred_region
      _
    $region81: #{forward.1} parent=1 // pred_fallthru
      _
    %4080 = vsyncpa [#allocation3], 1
    %4081 = vsyncpa [#allocation5], 1
    %4082 = vsyncpa [#allocation8], 1
    %4083 = vsyncpa [#allocation11], 1
    %4084 = vsyncpa [#allocation14], 1

</llo_original>
